<compile_context>
chip_gen: v7x
topology: tpu7x:2x2x1
jax: 0.10.0
libtpu: 0.0.40
codegen_flags: <defaults>
</compile_context>

<pallas_src>
import collections
import functools

import jax
import jax.numpy as jnp
import numpy as np
from jax.experimental import pallas as pl
from jax.experimental.pallas import tpu as pltpu

_EPS = 1e-5          # PyTorch BatchNorm2d default eps
_SLOPE = 0.01        # PyTorch LeakyReLU default negative_slope
_ACT_DTYPE = jnp.bfloat16   # MXU operand dtype (accumulation stays f32)
_OUT_PAD_ROWS = 8    # pad tiny-row outputs to a full sublane group

# One fused-matmul stage:  y = act( W @ X  [+ carry_w @ y_prev]  + bias )
Stage = collections.namedtuple("Stage", ["w", "x", "carry_w", "bias", "leaky"])


# ----------------------------------------------------------------------------
# VMEM-aware M tiling
# ----------------------------------------------------------------------------
def _vmem_capacity_bytes():
    try:
        return int(pltpu.get_tpu_info().vmem_capacity_bytes)
    except Exception:
        return 64 * 1024 * 1024       # conservative (v7x per-TensorCore)


def _pick_tm(m, bytes_per_col):
    """Largest 128-aligned tile of M whose double-buffered streamed operands
    stay under ~VMEM/8 for this generation; prefer >=2 blocks (pipelining and
    v7x dual-TC sharding) whenever a 128-aligned split of M exists."""
    if m % 128 != 0:
        # TODO(synk): pad M to a multiple of 128 for large ragged shapes.
        return m
    budget = max(_vmem_capacity_bytes() // 8, 1 << 20)
    cap = max(128, budget // max(2 * bytes_per_col, 1))
    candidates = [t for t in range(128, m + 1, 128) if m % t == 0]
    fitting = [t for t in candidates if t <= cap] or [128]
    multi = [t for t in fitting if m // t >= 2]
    return max(multi) if multi else max(fitting)


# ----------------------------------------------------------------------------
# Generic fused matmul chain (+ affine + LeakyReLU [+ second stage] [+ residual])
# ----------------------------------------------------------------------------
def _make_fused_kernel(spec, has_residual):
    # spec: tuple of (has_part, has_carry, leaky) per stage.
    def kernel(*refs):
        pos = 0
        y = None
        for has_part, has_carry, leaky in spec:
            acc = None
            if has_part:
                w = refs[pos][...]
                x = refs[pos + 1][...]
                pos += 2
                acc = jnp.dot(w, x, preferred_element_type=jnp.float32)
            if has_carry:
                wc = refs[pos][...]
                pos += 1
                d = jnp.dot(wc, y.astype(wc.dtype),
                            preferred_element_type=jnp.float32)
                acc = d if acc is None else acc + d
            acc = acc + refs[pos][...].astype(jnp.float32)
            pos += 1
            if leaky:
                acc = jnp.where(acc >= 0.0, acc, _SLOPE * acc)
            y = acc
        if has_residual:
            y = y + refs[pos][...].astype(jnp.float32)
            pos += 1
        o_ref = refs[pos]
        o_ref[...] = y.astype(o_ref.dtype)

    return kernel


def fused_block(stages, *, residual=None, out_dtype=_ACT_DTYPE):
    """Lane-dense fused matmul block; output shape (rows, M), M = B*OH*OW."""
    m = next(st.x.shape[1] for st in stages if st.x is not None)

    # Streamed bytes per output column (drives VMEM-aware tile sizing).
    bytes_per_col = 0
    for st in stages:
        if st.x is not None:
            bytes_per_col += st.x.shape[0] * st.x.dtype.itemsize
        if st.bias.shape == (1, m):
            bytes_per_col += st.bias.dtype.itemsize
    if residual is not None:
        bytes_per_col += residual.shape[0] * residual.dtype.itemsize
    last = stages[-1]
    rows = (last.carry_w.shape[0] if last.carry_w is not None
            else last.w.shape[0])
    bytes_per_col += rows * np.dtype(out_dtype).itemsize

    tm = _pick_tm(m, bytes_per_col)
    n_blocks = m // tm
    # Deeper buffering on the big streamed operands only when there is a real
    # pipeline to hide behind (helps v5e's lower HBM BW; no-op at small grids).
    stream_kwargs = {"pipeline_mode": pl.Buffered(3)} if n_blocks >= 4 else {}

    inputs, in_specs, spec = [], [], []
    for st in stages:
        has_part = st.x is not None
        if has_part:
            inputs.append(st.w)
            in_specs.append(pl.BlockSpec(st.w.shape, lambda i: (0, 0)))
            inputs.append(st.x)
            in_specs.append(pl.BlockSpec((st.x.shape[0], tm),
                                         lambda i: (0, i), **stream_kwargs))
        if st.carry_w is not None:
            inputs.append(st.carry_w)
            in_specs.append(pl.BlockSpec(st.carry_w.shape, lambda i: (0, 0)))
        inputs.append(st.bias)
        if st.bias.shape == (1, m):                 # per-column bias (Linear)
            in_specs.append(pl.BlockSpec((1, tm), lambda i: (0, i)))
        else:                                        # per-row bias (folded BN)
            in_specs.append(pl.BlockSpec(st.bias.shape, lambda i: (0, 0)))
        spec.append((has_part, st.carry_w is not None, st.leaky))

    if residual is not None:
        inputs.append(residual)
        in_specs.append(pl.BlockSpec((residual.shape[0], tm), lambda i: (0, i)))

    return pl.pallas_call(
        _make_fused_kernel(tuple(spec), residual is not None),
        out_shape=jax.ShapeDtypeStruct((rows, m), out_dtype),
        grid=(n_blocks,),
        in_specs=in_specs,
        out_specs=pl.BlockSpec((rows, tm), lambda i: (0, i)),
        compiler_params=pltpu.CompilerParams(
            dimension_semantics=("parallel",)),
    )(*inputs)


# ----------------------------------------------------------------------------
# NonLocal block: fused conv1/conv2/conv3 + per-batch attention (grid=(B,))
# ----------------------------------------------------------------------------
def _nl_conv_attn_kernel(w_ref, p_ref, b_ref, o_ref, *, n_c):
    # Fused conv1/conv2/conv3 on shared 3x3 valid-conv patches: (3*n_c, L).
    y = jnp.dot(w_ref[...], p_ref[0], preferred_element_type=jnp.float32)
    y = y + b_ref[...].astype(jnp.float32)
    y = jnp.where(y >= 0.0, y, _SLOPE * y)
    x1 = y[:n_c]
    x2 = y[n_c:2 * n_c]
    x3 = y[2 * n_c:]

    # st[j, i] = sum_c x2[c, j] * x1[c, i]  (== torch S[i, j]); contract the
    # channel axis directly (no x2.T relayout through the XLU).
    st = jax.lax.dot_general(x2, x1, (((0,), (0,)), ((), ())),
                             preferred_element_type=jnp.float32)
    # torch softmax(dim=1): normalize over i for each j -> lane-axis reduction.
    st = st - jnp.max(st, axis=1, keepdims=True)
    e = jnp.exp(st)
    p = e * pl.reciprocal(jnp.sum(e, axis=1, keepdims=True), approx=True)
    # out[c, i] = sum_j P[i, j] * x3[c, j]
    o_ref[0] = jnp.dot(x3, p, preferred_element_type=jnp.float32).astype(o_ref.dtype)


def nl_conv_attn(w_cat, patches_b, b_cat, *, n_c):
    b, rows, l = patches_b.shape
    return pl.pallas_call(
        functools.partial(_nl_conv_attn_kernel, n_c=n_c),
        out_shape=jax.ShapeDtypeStruct((b, n_c, l), _ACT_DTYPE),
        grid=(b,),
        in_specs=[pl.BlockSpec(w_cat.shape, lambda i: (0, 0)),
                  pl.BlockSpec((1, rows, l), lambda i: (i, 0, 0)),
                  pl.BlockSpec(b_cat.shape, lambda i: (0, 0))],
        out_specs=pl.BlockSpec((1, n_c, l), lambda i: (i, 0, 0)),
        compiler_params=pltpu.CompilerParams(
            dimension_semantics=("parallel",)),
    )(w_cat, patches_b, b_cat)


# ----------------------------------------------------------------------------
# Channel-major transposed im2col: (C, B*H*W) -> (C*kh*kw, B*OH*OW)
# ----------------------------------------------------------------------------
def im2col_t(a_cm, batch, h, w, kh, kw, pad, *, per_batch=False):
    c = a_cm.shape[0]
    a4 = a_cm.reshape(c, batch, h, w)
    if pad:
        a4 = jnp.pad(a4, ((0, 0), (0, 0), (pad, pad), (pad, pad)))
    oh = h + 2 * pad - kh + 1
    ow = w + 2 * pad - kw + 1
    views = [a4[:, :, i:i + oh, j:j + ow] for i in range(kh) for j in range(kw)]
    p = jnp.stack(views, axis=1)                       # (C, kh*kw, B, OH, OW)
    if per_batch:
        p = p.transpose(2, 0, 1, 3, 4)                 # (B, C, kh*kw, OH, OW)
        return p.reshape(batch, c * kh * kw, oh * ow), oh, ow
    return p.reshape(c * kh * kw, batch * oh * ow), oh, ow


# ----------------------------------------------------------------------------
# Parameter preprocessing (BN folding, convT -> conv, fc+dec0 fold)
# ----------------------------------------------------------------------------
def _fold_convbn(p):
    w = p["w"]                                         # (OC, IC, kh, kw)
    oc = w.shape[0]
    scale = p["gamma"] / jnp.sqrt(p["var"] + _EPS)
    bias = (p["b"] - p["mean"]) * scale + p["beta"]
    wmat = (w * scale[:, None, None, None]).reshape(oc, -1).astype(_ACT_DTYPE)
    return wmat, bias.reshape(oc, 1).astype(jnp.float32)


def prepare_params(params, n_c, dim1, dim2):
    prep = {}
    s = dim1 * dim2

    # fc (Linear) + dec0 (1x1 ConvBN) folded into one affine producing n_c*S
    # outputs per batch element (LeakyReLU applied in-kernel).
    wfc = params["fc"]["w"]                                # (2*S, K)
    bfc = params["fc"]["b"]                                # (2*S,)
    d0 = params["dec0"]
    scale0 = d0["gamma"] / jnp.sqrt(d0["var"] + _EPS)
    w0 = d0["w"][:, :, 0, 0] * scale0[:, None]             # (n_c, 2)
    b0 = (d0["b"] - d0["mean"]) * scale0 + d0["beta"]       # (n_c,)
    k_in = wfc.shape[1]
    wfc_r = wfc.reshape(2, s, k_in)
    wcomb = jnp.einsum("oc,csk->osk", w0, wfc_r,
                       precision="highest").reshape(n_c * s, k_in)
    bcomb = (jnp.einsum("oc,cs->os", w0, bfc.reshape(2, s),
                        precision="highest") + b0[:, None]).reshape(1, n_c * s)
    prep["fc0_wt"] = wcomb.T.astype(_ACT_DTYPE)             # (K, n_c*S)
    prep["fc0_b"] = bcomb.astype(jnp.float32)

    nl = params["nl"]
    w1, b1 = _fold_convbn(nl["conv1"])
    w2, b2 = _fold_convbn(nl["conv2"])
    w3, b3 = _fold_convbn(nl["conv3"])
    prep["nl_w123"] = jnp.concatenate([w1, w2, w3], axis=0)  # (3*n_c, n_c*9)
    prep["nl_b123"] = jnp.concatenate([b1, b2, b3], axis=0)
    # ConvTranspose2d(k=3, s=1, p=0) == Conv2d with flipped kernel, swapped
    # in/out channels and full (k-1) padding.
    p4 = dict(nl["conv4"])
    p4["w"] = jnp.transpose(nl["conv4"]["w"][:, :, ::-1, ::-1], (1, 0, 2, 3))
    prep["nl_conv4"] = _fold_convbn(p4)

    def prep_ds(dp):
        dw1, db1 = _fold_convbn(dp["conv1"])                 # (4n_c, n_c*9)
        dw2, db2 = _fold_convbn(dp["conv2"])                 # (8n_c, 5n_c*9)
        dw3, db3 = _fold_convbn(dp["conv3"])                 # (n_c, 13n_c*9)
        dw4, db4 = _fold_convbn(dp["conv4"])                 # (n_c, 14n_c)
        return dict(w1=dw1, b1=db1, w2=dw2, b2=db2, w3=dw3, b3=db3,
                    w4a=dw4[:, :13 * n_c], w4b=dw4[:, 13 * n_c:], b4=db4)

    prep["ds1"] = prep_ds(params["ds1"])
    prep["ds2"] = prep_ds(params["ds2"])

    prep["dec4"] = _fold_convbn(params["dec4"])
    # dec5 (1x1 Conv, 2 out channels): pad output rows to 8 for full-sublane
    # stores; the wrapper slices the first 2 rows back out.
    w5 = params["dec5"]["w"].reshape(2, n_c)
    b5 = params["dec5"]["b"]
    w5p = jnp.zeros((_OUT_PAD_ROWS, n_c), jnp.float32).at[:2].set(w5)
    b5p = jnp.zeros((_OUT_PAD_ROWS,), jnp.float32).at[:2].set(b5)
    prep["dec5_w"] = w5p.astype(_ACT_DTYPE)
    prep["dec5_b"] = b5p.reshape(_OUT_PAD_ROWS, 1).astype(jnp.float32)
    return prep


# ----------------------------------------------------------------------------
# Module forwards (channel-major activations throughout)
# ----------------------------------------------------------------------------
def nonlocal_forward(prep, a, *, n_c, batch, h, w):
    pch_b, oh, ow = im2col_t(a, batch, h, w, 3, 3, 0, per_batch=True)
    attn_b = nl_conv_attn(prep["nl_w123"], pch_b, prep["nl_b123"], n_c=n_c)
    attn = attn_b.transpose(1, 0, 2).reshape(n_c, batch * oh * ow)
    # convT (as conv, pad=2) + folded BN + LeakyReLU + residual add, one call.
    pch2, _, _ = im2col_t(attn, batch, oh, ow, 3, 3, 2)
    w4, b4 = prep["nl_conv4"]
    return fused_block([Stage(w4, pch2, None, b4, True)], residual=a)


def dsrefine_forward(dp, a, *, batch, h, w):
    pa, _, _ = im2col_t(a, batch, h, w, 3, 3, 1)
    x1 = fused_block([Stage(dp["w1"], pa, None, dp["b1"], True)])
    cat5 = jnp.concatenate([a, x1], axis=0)                  # [x, c1]
    p5, _, _ = im2col_t(cat5, batch, h, w, 3, 3, 1)
    x2 = fused_block([Stage(dp["w2"], p5, None, dp["b2"], True)])
    cat13 = jnp.concatenate([cat5, x2], axis=0)              # [x, c1, c2]
    p13, _, _ = im2col_t(cat13, batch, h, w, 3, 3, 1)
    # conv3 (3x3 on cat13, single K=13*n_c*9 dot) and conv4 (1x1 on
    # cat([cat13, x3]); K=13*n_c dot + small carry dot on x3), fused.
    return fused_block([
        Stage(dp["w3"], p13, None, dp["b3"], True),
        Stage(dp["w4a"], cat13, dp["w4b"], dp["b4"], True),
    ])


def crdecoder_forward(prep, x, *, n_c, dim1, dim2):
    batch = x.shape[0]
    s = dim1 * dim2
    m = batch * s
    # fc + dec0 folded: one lane-dense (B, n_c*S) call with LeakyReLU fused.
    y = fused_block([Stage(x.astype(_ACT_DTYPE), prep["fc0_wt"],
                           None, prep["fc0_b"], True)])
    a = y.reshape(batch, n_c, s).transpose(1, 0, 2).reshape(n_c, m)
    # NonLocalBlock
    a = nonlocal_forward(prep, a, n_c=n_c, batch=batch, h=dim1, w=dim2)
    # DSRefineNet x 2
    a = dsrefine_forward(prep["ds1"], a, batch=batch, h=dim1, w=dim2)
    a = dsrefine_forward(prep["ds2"], a, batch=batch, h=dim1, w=dim2)
    # dec4 (ConvBN 3x3, p=1) + dec5 (Conv2d 1x1) fused in one two-stage call.
    pch, _, _ = im2col_t(a, batch, dim1, dim2, 3, 3, 1)
    wd4, bd4 = prep["dec4"]
    out_cm = fused_block([
        Stage(wd4, pch, None, bd4, True),
        Stage(None, None, prep["dec5_w"], prep["dec5_b"], False),
    ], out_dtype=jnp.float32)                    # (8, B*S); rows 2..7 are pad
    out_cm = out_cm[:2]
    return out_cm.reshape(2, batch, dim1, dim2).transpose(1, 0, 2, 3)


# ----------------------------------------------------------------------------
# Deterministic parameter initialisation (synthetic weights, PyTorch layouts)
# ----------------------------------------------------------------------------
class KeyGen:
    def __init__(self, key):
        self._key = key

    def __call__(self):
        self._key, sub = jax.random.split(self._key)
        return sub


def _init_convbn(kg, ic, oc, kh, kw):
    return {
        "w": 0.1 * jax.random.normal(kg(), (oc, ic, kh, kw), jnp.float32),
        "b": 0.1 * jax.random.normal(kg(), (oc,), jnp.float32),
        "gamma": 1.0 + 0.1 * jax.random.normal(kg(), (oc,), jnp.float32),
        "beta": 0.1 * jax.random.normal(kg(), (oc,), jnp.float32),
        "mean": jnp.zeros((oc,), jnp.float32),
        "var": jnp.ones((oc,), jnp.float32),
    }


def _init_convT_bn(kg, ic, oc, kh, kw):
    return {
        "w": 0.1 * jax.random.normal(kg(), (ic, oc, kh, kw), jnp.float32),
        "b": 0.1 * jax.random.normal(kg(), (oc,), jnp.float32),
        "gamma": 1.0 + 0.1 * jax.random.normal(kg(), (oc,), jnp.float32),
        "beta": 0.1 * jax.random.normal(kg(), (oc,), jnp.float32),
        "mean": jnp.zeros((oc,), jnp.float32),
        "var": jnp.ones((oc,), jnp.float32),
    }


def init_crdecoder(key, bits, n_c, dim1, dim2):
    kg = KeyGen(key)
    fc = {
        "w": 0.1 * jax.random.normal(kg(), (2 * dim1 * dim2, bits // 4), jnp.float32),
        "b": 0.1 * jax.random.normal(kg(), (2 * dim1 * dim2,), jnp.float32),
    }
    dec0 = _init_convbn(kg, 2, n_c, 1, 1)
    nl = {
        "conv1": _init_convbn(kg, n_c, n_c, 3, 3),
        "conv2": _init_convbn(kg, n_c, n_c, 3, 3),
        "conv3": _init_convbn(kg, n_c, n_c, 3, 3),
        "conv4": _init_convT_bn(kg, n_c, n_c, 3, 3),
    }

    def ds():
        return {
            "conv1": _init_convbn(kg, n_c, 4 * n_c, 3, 3),
            "conv2": _init_convbn(kg, 5 * n_c, 8 * n_c, 3, 3),
            "conv3": _init_convbn(kg, 13 * n_c, n_c, 3, 3),
            "conv4": _init_convbn(kg, 14 * n_c, n_c, 1, 1),
        }

    ds1, ds2 = ds(), ds()
    dec4 = _init_convbn(kg, n_c, n_c, 3, 3)
    dec5 = {
        "w": 0.1 * jax.random.normal(kg(), (2, n_c, 1, 1), jnp.float32),
        "b": 0.1 * jax.random.normal(kg(), (2,), jnp.float32),
    }
    return {"fc": fc, "dec0": dec0, "nl": nl, "ds1": ds1, "ds2": ds2,
            "dec4": dec4, "dec5": dec5}


# ----------------------------------------------------------------------------
if __name__ == "__main__":
    bits, n_c, dim1, dim2, batch = 32, 8, 8, 8, 2

    key = jax.random.PRNGKey(0)
    pkey, xkey = jax.random.split(key)
    params = init_crdecoder(pkey, bits, n_c, dim1, dim2)
    prep = prepare_params(params, n_c, dim1, dim2)   # fold BN / flip convT once
    x = jax.random.normal(xkey, (batch, bits // 4), jnp.float32)

    fwd = jax.jit(functools.partial(crdecoder_forward, n_c=n_c, dim1=dim1, dim2=dim2))
    out = jax.block_until_ready(fwd(prep, x))

    assert out.shape == (batch, 2, dim1, dim2), out.shape
    assert bool(jnp.all(jnp.isfinite(out)))
    print("KERNEL_OK")
</pallas_src>

<mosaic_0001>
module attributes {stable_mosaic.version = 11 : i64} {
  func.func @kernel(%arg0: i32, %arg1: memref<2x8xbf16, #tpu.memory_space<vmem>>, %arg2: memref<8x256xbf16, #tpu.memory_space<vmem>>, %arg3: memref<1x256xf32, #tpu.memory_space<vmem>>, %arg4: memref<2x256xbf16, #tpu.memory_space<vmem>>) attributes {dimension_semantics = [#tpu.dimension_semantics<parallel>], iteration_bounds = array<i64: 2>, scalar_prefetch = 0 : i64, scratch_operands = 0 : i64, tpu.core_type = #tpu.core_type<tc>, window_params = [{pipeline_mode = #tpu.pipeline_mode<synchronous>, transform_indices = @transform_0, window_bounds = array<i64: 2, 8>}, {transform_indices = @transform_1, window_bounds = array<i64: 8, 256>}, {transform_indices = @transform_2, window_bounds = array<i64: 1, 256>}, {transform_indices = @transform_3, window_bounds = array<i64: 2, 256>}]} {
    %c0 = arith.constant 0 : index
    %c0_0 = arith.constant 0 : index
    %0 = vector.load %arg1[%c0, %c0_0] : memref<2x8xbf16, #tpu.memory_space<vmem>>, vector<2x8xbf16>
    %c0_1 = arith.constant 0 : index
    %c0_2 = arith.constant 0 : index
    %1 = vector.load %arg2[%c0_1, %c0_2] : memref<8x256xbf16, #tpu.memory_space<vmem>>, vector<8x256xbf16>
    %cst = arith.constant dense<0.000000e+00> : vector<2x256xf32>
    %2 = tpu.matmul %0, %1, %cst {dimension_numbers = #tpu.dot_dimension_numbers<[1], [0], [0], [1], [0, 0, 1, 1], [], []>} : vector<2x8xbf16>, vector<8x256xbf16>, vector<2x256xf32> -> vector<2x256xf32>
    %c0_3 = arith.constant 0 : index
    %c0_4 = arith.constant 0 : index
    %3 = vector.load %arg3[%c0_3, %c0_4] : memref<1x256xf32, #tpu.memory_space<vmem>>, vector<1x256xf32>
    %4 = vector.broadcast %3 : vector<1x256xf32> to vector<2x256xf32>
    %5 = arith.addf %2, %4 : vector<2x256xf32>
    %cst_5 = arith.constant 0.000000e+00 : f32
    %6 = vector.broadcast %cst_5 : f32 to vector<2x256xf32>
    %7 = arith.cmpf oge, %5, %6 : vector<2x256xf32>
    %cst_6 = arith.constant 0.00999999977 : f32
    %8 = vector.broadcast %cst_6 : f32 to vector<2x256xf32>
    %9 = arith.mulf %8, %5 : vector<2x256xf32>
    %10 = arith.select %7, %5, %9 : vector<2x256xi1>, vector<2x256xf32>
    %11 = arith.truncf %10 : vector<2x256xf32> to vector<2x256xbf16>
    %c0_7 = arith.constant 0 : index
    %c0_8 = arith.constant 0 : index
    %12 = vector.load %arg4[%c0_7, %c0_8] : memref<2x256xbf16, #tpu.memory_space<vmem>>, vector<2x256xbf16>
    tpu.vector_store %arg4[%c0_7, %c0_8], %11 {strides = array<i32>} : memref<2x256xbf16, #tpu.memory_space<vmem>>, vector<2x256xbf16>,
    return
  }
  func.func @transform_0(%arg0: i32) -> (i32, i32) {
    %c0_i32 = arith.constant 0 : i32
    %c0_i32_0 = arith.constant 0 : i32
    %c0_i32_1 = arith.constant 0 : i32
    return %c0_i32, %c0_i32_0 : i32, i32
  }
  func.func @transform_1(%arg0: i32) -> (i32, i32) {
    %c0_i32 = arith.constant 0 : i32
    %c0_i32_0 = arith.constant 0 : i32
    return %c0_i32, %arg0 : i32, i32
  }
  func.func @transform_2(%arg0: i32) -> (i32, i32) {
    %c0_i32 = arith.constant 0 : i32
    %c0_i32_0 = arith.constant 0 : i32
    return %c0_i32, %arg0 : i32, i32
  }
  func.func @transform_3(%arg0: i32) -> (i32, i32) {
    %c0_i32 = arith.constant 0 : i32
    %c0_i32_0 = arith.constant 0 : i32
    return %c0_i32, %arg0 : i32, i32
  }
}

module attributes {stable_mosaic.version = 11 : i64} {
  func.func @_nl_conv_attn_kernel(%arg0: i32, %arg1: memref<24x72xbf16, #tpu.memory_space<vmem>>, %arg2: memref<1x72x36xbf16, #tpu.memory_space<vmem>>, %arg3: memref<24x1xf32, #tpu.memory_space<vmem>>, %arg4: memref<1x8x36xbf16, #tpu.memory_space<vmem>>) attributes {dimension_semantics = [#tpu.dimension_semantics<parallel>], iteration_bounds = array<i64: 2>, scalar_prefetch = 0 : i64, scratch_operands = 0 : i64, tpu.core_type = #tpu.core_type<tc>, window_params = [{pipeline_mode = #tpu.pipeline_mode<synchronous>, transform_indices = @transform_0, window_bounds = array<i64: 24, 72>}, {transform_indices = @transform_1, window_bounds = array<i64: 1, 72, 36>}, {pipeline_mode = #tpu.pipeline_mode<synchronous>, transform_indices = @transform_2, window_bounds = array<i64: 24, 1>}, {transform_indices = @transform_3, window_bounds = array<i64: 1, 8, 36>}]} {
    %c0 = arith.constant 0 : index
    %c0_0 = arith.constant 0 : index
    %0 = vector.load %arg1[%c0, %c0_0] : memref<24x72xbf16, #tpu.memory_space<vmem>>, vector<24x72xbf16>
    %c0_1 = arith.constant 0 : index
    %c0_2 = arith.constant 0 : index
    %c0_3 = arith.constant 0 : index
    %1 = vector.load %arg2[%c0_1, %c0_2, %c0_3] : memref<1x72x36xbf16, #tpu.memory_space<vmem>>, vector<1x72x36xbf16>
    %2 = vector.shape_cast %1 : vector<1x72x36xbf16> to vector<72x36xbf16>
    %cst = arith.constant dense<0.000000e+00> : vector<24x36xf32>
    %3 = tpu.matmul %0, %2, %cst {dimension_numbers = #tpu.dot_dimension_numbers<[1], [0], [0], [1], [0, 0, 1, 1], [], []>} : vector<24x72xbf16>, vector<72x36xbf16>, vector<24x36xf32> -> vector<24x36xf32>
    %c0_4 = arith.constant 0 : index
    %c0_5 = arith.constant 0 : index
    %4 = vector.load %arg3[%c0_4, %c0_5] : memref<24x1xf32, #tpu.memory_space<vmem>>, vector<24x1xf32>
    %5 = vector.broadcast %4 : vector<24x1xf32> to vector<24x36xf32>
    %6 = arith.addf %3, %5 : vector<24x36xf32>
    %cst_6 = arith.constant 0.000000e+00 : f32
    %7 = vector.broadcast %cst_6 : f32 to vector<24x36xf32>
    %8 = arith.cmpf oge, %6, %7 : vector<24x36xf32>
    %cst_7 = arith.constant 0.00999999977 : f32
    %9 = vector.broadcast %cst_7 : f32 to vector<24x36xf32>
    %10 = arith.mulf %9, %6 : vector<24x36xf32>
    %11 = arith.select %8, %6, %10 : vector<24x36xi1>, vector<24x36xf32>
    %12 = vector.extract_strided_slice %11 {offsets = [0, 0], sizes = [8, 36], strides = [1, 1]} : vector<24x36xf32> to vector<8x36xf32>
    %13 = vector.extract_strided_slice %11 {offsets = [8, 0], sizes = [8, 36], strides = [1, 1]} : vector<24x36xf32> to vector<8x36xf32>
    %14 = vector.extract_strided_slice %11 {offsets = [16, 0], sizes = [8, 36], strides = [1, 1]} : vector<24x36xf32> to vector<8x36xf32>
    %cst_8 = arith.constant dense<0.000000e+00> : vector<36x36xf32>
    %15 = tpu.matmul %13, %12, %cst_8 {dimension_numbers = #tpu.dot_dimension_numbers<[0], [0], [1], [1], [0, 1, 1, 1], [], []>} : vector<8x36xf32>, vector<8x36xf32>, vector<36x36xf32> -> vector<36x36xf32>
    %cst_9 = arith.constant dense<0xFF800000> : vector<36xf32>
    %16 = vector.multi_reduction <maximumf>, %15, %cst_9 [1] : vector<36x36xf32> to vector<36xf32>
    %17 = vector.shape_cast %16 : vector<36xf32> to vector<36x1xf32>
    %18 = vector.broadcast %17 : vector<36x1xf32> to vector<36x36xf32>
    %19 = arith.subf %15, %18 : vector<36x36xf32>
    %20 = math.exp %19 : vector<36x36xf32>
    %cst_10 = arith.constant dense<0.000000e+00> : vector<36xf32>
    %21 = vector.multi_reduction <add>, %20, %cst_10 [1] : vector<36x36xf32> to vector<36xf32>
    %22 = vector.shape_cast %21 : vector<36xf32> to vector<36x1xf32>
    %23 = tpu.reciprocal %22 {approx = true} : vector<36x1xf32> -> vector<36x1xf32>
    %24 = vector.broadcast %23 : vector<36x1xf32> to vector<36x36xf32>
    %25 = arith.mulf %20, %24 : vector<36x36xf32>
    %cst_11 = arith.constant dense<0.000000e+00> : vector<8x36xf32>
    %26 = tpu.matmul %14, %25, %cst_11 {dimension_numbers = #tpu.dot_dimension_numbers<[1], [0], [0], [1], [0, 0, 1, 1], [], []>} : vector<8x36xf32>, vector<36x36xf32>, vector<8x36xf32> -> vector<8x36xf32>
    %27 = arith.truncf %26 : vector<8x36xf32> to vector<8x36xbf16>
    %c0_12 = arith.constant 0 : index
    %c0_13 = arith.constant 0 : index
    %c0_14 = arith.constant 0 : index
    %28 = vector.load %arg4[%c0_12, %c0_13, %c0_14] : memref<1x8x36xbf16, #tpu.memory_space<vmem>>, vector<1x8x36xbf16>
    %29 = vector.shape_cast %28 : vector<1x8x36xbf16> to vector<8x36xbf16>
    %30 = vector.shape_cast %27 : vector<8x36xbf16> to vector<1x8x36xbf16>
    tpu.vector_store %arg4[%c0_12, %c0_13, %c0_14], %30 {strides = array<i32>} : memref<1x8x36xbf16, #tpu.memory_space<vmem>>, vector<1x8x36xbf16>,
    return
  }
  func.func @transform_0(%arg0: i32) -> (i32, i32) {
    %c0_i32 = arith.constant 0 : i32
    %c0_i32_0 = arith.constant 0 : i32
    %c0_i32_1 = arith.constant 0 : i32
    return %c0_i32, %c0_i32_0 : i32, i32
  }
  func.func @transform_1(%arg0: i32) -> (i32, i32, i32) {
    %c0_i32 = arith.constant 0 : i32
    %c0_i32_0 = arith.constant 0 : i32
    %c0_i32_1 = arith.constant 0 : i32
    return %arg0, %c0_i32, %c0_i32_0 : i32, i32, i32
  }
  func.func @transform_2(%arg0: i32) -> (i32, i32) {
    %c0_i32 = arith.constant 0 : i32
    %c0_i32_0 = arith.constant 0 : i32
    %c0_i32_1 = arith.constant 0 : i32
    return %c0_i32, %c0_i32_0 : i32, i32
  }
  func.func @transform_3(%arg0: i32) -> (i32, i32, i32) {
    %c0_i32 = arith.constant 0 : i32
    %c0_i32_0 = arith.constant 0 : i32
    %c0_i32_1 = arith.constant 0 : i32
    return %arg0, %c0_i32, %c0_i32_0 : i32, i32, i32
  }
}

module attributes {stable_mosaic.version = 11 : i64} {
  func.func @kernel(%arg0: i32, %arg1: memref<8x72xbf16, #tpu.memory_space<vmem>>, %arg2: memref<72x128xbf16, #tpu.memory_space<vmem>>, %arg3: memref<8x1xf32, #tpu.memory_space<vmem>>, %arg4: memref<8x128xbf16, #tpu.memory_space<vmem>>, %arg5: memref<8x128xbf16, #tpu.memory_space<vmem>>) attributes {dimension_semantics = [#tpu.dimension_semantics<parallel>], iteration_bounds = array<i64: 1>, scalar_prefetch = 0 : i64, scratch_operands = 0 : i64, tpu.core_type = #tpu.core_type<tc>, window_params = [{pipeline_mode = #tpu.pipeline_mode<synchronous>, transform_indices = @transform_0, window_bounds = array<i64: 8, 72>}, {transform_indices = @transform_1, window_bounds = array<i64: 72, 128>}, {pipeline_mode = #tpu.pipeline_mode<synchronous>, transform_indices = @transform_2, window_bounds = array<i64: 8, 1>}, {transform_indices = @transform_3, window_bounds = array<i64: 8, 128>}, {transform_indices = @transform_4, window_bounds = array<i64: 8, 128>}]} {
    %c0 = arith.constant 0 : index
    %c0_0 = arith.constant 0 : index
    %0 = vector.load %arg1[%c0, %c0_0] : memref<8x72xbf16, #tpu.memory_space<vmem>>, vector<8x72xbf16>
    %c0_1 = arith.constant 0 : index
    %c0_2 = arith.constant 0 : index
    %1 = vector.load %arg2[%c0_1, %c0_2] : memref<72x128xbf16, #tpu.memory_space<vmem>>, vector<72x128xbf16>
    %cst = arith.constant dense<0.000000e+00> : vector<8x128xf32>
    %2 = tpu.matmul %0, %1, %cst {dimension_numbers = #tpu.dot_dimension_numbers<[1], [0], [0], [1], [0, 0, 1, 1], [], []>} : vector<8x72xbf16>, vector<72x128xbf16>, vector<8x128xf32> -> vector<8x128xf32>
    %c0_3 = arith.constant 0 : index
    %c0_4 = arith.constant 0 : index
    %3 = vector.load %arg3[%c0_3, %c0_4] : memref<8x1xf32, #tpu.memory_space<vmem>>, vector<8x1xf32>
    %4 = vector.broadcast %3 : vector<8x1xf32> to vector<8x128xf32>
    %5 = arith.addf %2, %4 : vector<8x128xf32>
    %cst_5 = arith.constant 0.000000e+00 : f32
    %6 = vector.broadcast %cst_5 : f32 to vector<8x128xf32>
    %7 = arith.cmpf oge, %5, %6 : vector<8x128xf32>
    %cst_6 = arith.constant 0.00999999977 : f32
    %8 = vector.broadcast %cst_6 : f32 to vector<8x128xf32>
    %9 = arith.mulf %8, %5 : vector<8x128xf32>
    %10 = arith.select %7, %5, %9 : vector<8x128xi1>, vector<8x128xf32>
    %c0_7 = arith.constant 0 : index
    %c0_8 = arith.constant 0 : index
    %11 = vector.load %arg4[%c0_7, %c0_8] : memref<8x128xbf16, #tpu.memory_space<vmem>>, vector<8x128xbf16>
    %12 = arith.extf %11 : vector<8x128xbf16> to vector<8x128xf32>
    %13 = arith.addf %10, %12 : vector<8x128xf32>
    %14 = arith.truncf %13 : vector<8x128xf32> to vector<8x128xbf16>
    %c0_9 = arith.constant 0 : index
    %c0_10 = arith.constant 0 : index
    %15 = vector.load %arg5[%c0_9, %c0_10] : memref<8x128xbf16, #tpu.memory_space<vmem>>, vector<8x128xbf16>
    tpu.vector_store %arg5[%c0_9, %c0_10], %14 {strides = array<i32>} : memref<8x128xbf16, #tpu.memory_space<vmem>>, vector<8x128xbf16>,
    return
  }
  func.func @transform_0(%arg0: i32) -> (i32, i32) {
    %c0_i32 = arith.constant 0 : i32
    %c0_i32_0 = arith.constant 0 : i32
    %c0_i32_1 = arith.constant 0 : i32
    return %c0_i32, %c0_i32_0 : i32, i32
  }
  func.func @transform_1(%arg0: i32) -> (i32, i32) {
    %c0_i32 = arith.constant 0 : i32
    %c0_i32_0 = arith.constant 0 : i32
    return %c0_i32, %arg0 : i32, i32
  }
  func.func @transform_2(%arg0: i32) -> (i32, i32) {
    %c0_i32 = arith.constant 0 : i32
    %c0_i32_0 = arith.constant 0 : i32
    %c0_i32_1 = arith.constant 0 : i32
    return %c0_i32, %c0_i32_0 : i32, i32
  }
  func.func @transform_3(%arg0: i32) -> (i32, i32) {
    %c0_i32 = arith.constant 0 : i32
    %c0_i32_0 = arith.constant 0 : i32
    return %c0_i32, %arg0 : i32, i32
  }
  func.func @transform_4(%arg0: i32) -> (i32, i32) {
    %c0_i32 = arith.constant 0 : i32
    %c0_i32_0 = arith.constant 0 : i32
    return %c0_i32, %arg0 : i32, i32
  }
}

module attributes {stable_mosaic.version = 11 : i64} {
  func.func @kernel(%arg0: i32, %arg1: memref<32x72xbf16, #tpu.memory_space<vmem>>, %arg2: memref<72x128xbf16, #tpu.memory_space<vmem>>, %arg3: memref<32x1xf32, #tpu.memory_space<vmem>>, %arg4: memref<32x128xbf16, #tpu.memory_space<vmem>>) attributes {dimension_semantics = [#tpu.dimension_semantics<parallel>], iteration_bounds = array<i64: 1>, scalar_prefetch = 0 : i64, scratch_operands = 0 : i64, tpu.core_type = #tpu.core_type<tc>, window_params = [{pipeline_mode = #tpu.pipeline_mode<synchronous>, transform_indices = @transform_0, window_bounds = array<i64: 32, 72>}, {transform_indices = @transform_1, window_bounds = array<i64: 72, 128>}, {pipeline_mode = #tpu.pipeline_mode<synchronous>, transform_indices = @transform_2, window_bounds = array<i64: 32, 1>}, {transform_indices = @transform_3, window_bounds = array<i64: 32, 128>}]} {
    %c0 = arith.constant 0 : index
    %c0_0 = arith.constant 0 : index
    %0 = vector.load %arg1[%c0, %c0_0] : memref<32x72xbf16, #tpu.memory_space<vmem>>, vector<32x72xbf16>
    %c0_1 = arith.constant 0 : index
    %c0_2 = arith.constant 0 : index
    %1 = vector.load %arg2[%c0_1, %c0_2] : memref<72x128xbf16, #tpu.memory_space<vmem>>, vector<72x128xbf16>
    %cst = arith.constant dense<0.000000e+00> : vector<32x128xf32>
    %2 = tpu.matmul %0, %1, %cst {dimension_numbers = #tpu.dot_dimension_numbers<[1], [0], [0], [1], [0, 0, 1, 1], [], []>} : vector<32x72xbf16>, vector<72x128xbf16>, vector<32x128xf32> -> vector<32x128xf32>
    %c0_3 = arith.constant 0 : index
    %c0_4 = arith.constant 0 : index
    %3 = vector.load %arg3[%c0_3, %c0_4] : memref<32x1xf32, #tpu.memory_space<vmem>>, vector<32x1xf32>
    %4 = vector.broadcast %3 : vector<32x1xf32> to vector<32x128xf32>
    %5 = arith.addf %2, %4 : vector<32x128xf32>
    %cst_5 = arith.constant 0.000000e+00 : f32
    %6 = vector.broadcast %cst_5 : f32 to vector<32x128xf32>
    %7 = arith.cmpf oge, %5, %6 : vector<32x128xf32>
    %cst_6 = arith.constant 0.00999999977 : f32
    %8 = vector.broadcast %cst_6 : f32 to vector<32x128xf32>
    %9 = arith.mulf %8, %5 : vector<32x128xf32>
    %10 = arith.select %7, %5, %9 : vector<32x128xi1>, vector<32x128xf32>
    %11 = arith.truncf %10 : vector<32x128xf32> to vector<32x128xbf16>
    %c0_7 = arith.constant 0 : index
    %c0_8 = arith.constant 0 : index
    %12 = vector.load %arg4[%c0_7, %c0_8] : memref<32x128xbf16, #tpu.memory_space<vmem>>, vector<32x128xbf16>
    tpu.vector_store %arg4[%c0_7, %c0_8], %11 {strides = array<i32>} : memref<32x128xbf16, #tpu.memory_space<vmem>>, vector<32x128xbf16>,
    return
  }
  func.func @transform_0(%arg0: i32) -> (i32, i32) {
    %c0_i32 = arith.constant 0 : i32
    %c0_i32_0 = arith.constant 0 : i32
    %c0_i32_1 = arith.constant 0 : i32
    return %c0_i32, %c0_i32_0 : i32, i32
  }
  func.func @transform_1(%arg0: i32) -> (i32, i32) {
    %c0_i32 = arith.constant 0 : i32
    %c0_i32_0 = arith.constant 0 : i32
    return %c0_i32, %arg0 : i32, i32
  }
  func.func @transform_2(%arg0: i32) -> (i32, i32) {
    %c0_i32 = arith.constant 0 : i32
    %c0_i32_0 = arith.constant 0 : i32
    %c0_i32_1 = arith.constant 0 : i32
    return %c0_i32, %c0_i32_0 : i32, i32
  }
  func.func @transform_3(%arg0: i32) -> (i32, i32) {
    %c0_i32 = arith.constant 0 : i32
    %c0_i32_0 = arith.constant 0 : i32
    return %c0_i32, %arg0 : i32, i32
  }
}

module attributes {stable_mosaic.version = 11 : i64} {
  func.func @kernel(%arg0: i32, %arg1: memref<64x360xbf16, #tpu.memory_space<vmem>>, %arg2: memref<360x128xbf16, #tpu.memory_space<vmem>>, %arg3: memref<64x1xf32, #tpu.memory_space<vmem>>, %arg4: memref<64x128xbf16, #tpu.memory_space<vmem>>) attributes {dimension_semantics = [#tpu.dimension_semantics<parallel>], iteration_bounds = array<i64: 1>, scalar_prefetch = 0 : i64, scratch_operands = 0 : i64, tpu.core_type = #tpu.core_type<tc>, window_params = [{pipeline_mode = #tpu.pipeline_mode<synchronous>, transform_indices = @transform_0, window_bounds = array<i64: 64, 360>}, {transform_indices = @transform_1, window_bounds = array<i64: 360, 128>}, {pipeline_mode = #tpu.pipeline_mode<synchronous>, transform_indices = @transform_2, window_bounds = array<i64: 64, 1>}, {transform_indices = @transform_3, window_bounds = array<i64: 64, 128>}]} {
    %c0 = arith.constant 0 : index
    %c0_0 = arith.constant 0 : index
    %0 = vector.load %arg1[%c0, %c0_0] : memref<64x360xbf16, #tpu.memory_space<vmem>>, vector<64x360xbf16>
    %c0_1 = arith.constant 0 : index
    %c0_2 = arith.constant 0 : index
    %1 = vector.load %arg2[%c0_1, %c0_2] : memref<360x128xbf16, #tpu.memory_space<vmem>>, vector<360x128xbf16>
    %cst = arith.constant dense<0.000000e+00> : vector<64x128xf32>
    %2 = tpu.matmul %0, %1, %cst {dimension_numbers = #tpu.dot_dimension_numbers<[1], [0], [0], [1], [0, 0, 1, 1], [], []>} : vector<64x360xbf16>, vector<360x128xbf16>, vector<64x128xf32> -> vector<64x128xf32>
    %c0_3 = arith.constant 0 : index
    %c0_4 = arith.constant 0 : index
    %3 = vector.load %arg3[%c0_3, %c0_4] : memref<64x1xf32, #tpu.memory_space<vmem>>, vector<64x1xf32>
    %4 = vector.broadcast %3 : vector<64x1xf32> to vector<64x128xf32>
    %5 = arith.addf %2, %4 : vector<64x128xf32>
    %cst_5 = arith.constant 0.000000e+00 : f32
    %6 = vector.broadcast %cst_5 : f32 to vector<64x128xf32>
    %7 = arith.cmpf oge, %5, %6 : vector<64x128xf32>
    %cst_6 = arith.constant 0.00999999977 : f32
    %8 = vector.broadcast %cst_6 : f32 to vector<64x128xf32>
    %9 = arith.mulf %8, %5 : vector<64x128xf32>
    %10 = arith.select %7, %5, %9 : vector<64x128xi1>, vector<64x128xf32>
    %11 = arith.truncf %10 : vector<64x128xf32> to vector<64x128xbf16>
    %c0_7 = arith.constant 0 : index
    %c0_8 = arith.constant 0 : index
    %12 = vector.load %arg4[%c0_7, %c0_8] : memref<64x128xbf16, #tpu.memory_space<vmem>>, vector<64x128xbf16>
    tpu.vector_store %arg4[%c0_7, %c0_8], %11 {strides = array<i32>} : memref<64x128xbf16, #tpu.memory_space<vmem>>, vector<64x128xbf16>,
    return
  }
  func.func @transform_0(%arg0: i32) -> (i32, i32) {
    %c0_i32 = arith.constant 0 : i32
    %c0_i32_0 = arith.constant 0 : i32
    %c0_i32_1 = arith.constant 0 : i32
    return %c0_i32, %c0_i32_0 : i32, i32
  }
  func.func @transform_1(%arg0: i32) -> (i32, i32) {
    %c0_i32 = arith.constant 0 : i32
    %c0_i32_0 = arith.constant 0 : i32
    return %c0_i32, %arg0 : i32, i32
  }
  func.func @transform_2(%arg0: i32) -> (i32, i32) {
    %c0_i32 = arith.constant 0 : i32
    %c0_i32_0 = arith.constant 0 : i32
    %c0_i32_1 = arith.constant 0 : i32
    return %c0_i32, %c0_i32_0 : i32, i32
  }
  func.func @transform_3(%arg0: i32) -> (i32, i32) {
    %c0_i32 = arith.constant 0 : i32
    %c0_i32_0 = arith.constant 0 : i32
    return %c0_i32, %arg0 : i32, i32
  }
}

module attributes {stable_mosaic.version = 11 : i64} {
  func.func @kernel(%arg0: i32, %arg1: memref<8x936xbf16, #tpu.memory_space<vmem>>, %arg2: memref<936x128xbf16, #tpu.memory_space<vmem>>, %arg3: memref<8x1xf32, #tpu.memory_space<vmem>>, %arg4: memref<8x104xbf16, #tpu.memory_space<vmem>>, %arg5: memref<104x128xbf16, #tpu.memory_space<vmem>>, %arg6: memref<8x8xbf16, #tpu.memory_space<vmem>>, %arg7: memref<8x1xf32, #tpu.memory_space<vmem>>, %arg8: memref<8x128xbf16, #tpu.memory_space<vmem>>) attributes {dimension_semantics = [#tpu.dimension_semantics<parallel>], iteration_bounds = array<i64: 1>, scalar_prefetch = 0 : i64, scratch_operands = 0 : i64, tpu.core_type = #tpu.core_type<tc>, window_params = [{pipeline_mode = #tpu.pipeline_mode<synchronous>, transform_indices = @transform_0, window_bounds = array<i64: 8, 936>}, {transform_indices = @transform_1, window_bounds = array<i64: 936, 128>}, {pipeline_mode = #tpu.pipeline_mode<synchronous>, transform_indices = @transform_2, window_bounds = array<i64: 8, 1>}, {pipeline_mode = #tpu.pipeline_mode<synchronous>, transform_indices = @transform_3, window_bounds = array<i64: 8, 104>}, {transform_indices = @transform_4, window_bounds = array<i64: 104, 128>}, {pipeline_mode = #tpu.pipeline_mode<synchronous>, transform_indices = @transform_5, window_bounds = array<i64: 8, 8>}, {pipeline_mode = #tpu.pipeline_mode<synchronous>, transform_indices = @transform_6, window_bounds = array<i64: 8, 1>}, {transform_indices = @transform_7, window_bounds = array<i64: 8, 128>}]} {
    %c0 = arith.constant 0 : index
    %c0_0 = arith.constant 0 : index
    %0 = vector.load %arg1[%c0, %c0_0] : memref<8x936xbf16, #tpu.memory_space<vmem>>, vector<8x936xbf16>
    %c0_1 = arith.constant 0 : index
    %c0_2 = arith.constant 0 : index
    %1 = vector.load %arg2[%c0_1, %c0_2] : memref<936x128xbf16, #tpu.memory_space<vmem>>, vector<936x128xbf16>
    %cst = arith.constant dense<0.000000e+00> : vector<8x128xf32>
    %2 = tpu.matmul %0, %1, %cst {dimension_numbers = #tpu.dot_dimension_numbers<[1], [0], [0], [1], [0, 0, 1, 1], [], []>} : vector<8x936xbf16>, vector<936x128xbf16>, vector<8x128xf32> -> vector<8x128xf32>
    %c0_3 = arith.constant 0 : index
    %c0_4 = arith.constant 0 : index
    %3 = vector.load %arg3[%c0_3, %c0_4] : memref<8x1xf32, #tpu.memory_space<vmem>>, vector<8x1xf32>
    %4 = vector.broadcast %3 : vector<8x1xf32> to vector<8x128xf32>
    %5 = arith.addf %2, %4 : vector<8x128xf32>
    %cst_5 = arith.constant 0.000000e+00 : f32
    %6 = vector.broadcast %cst_5 : f32 to vector<8x128xf32>
    %7 = arith.cmpf oge, %5, %6 : vector<8x128xf32>
    %cst_6 = arith.constant 0.00999999977 : f32
    %8 = vector.broadcast %cst_6 : f32 to vector<8x128xf32>
    %9 = arith.mulf %8, %5 : vector<8x128xf32>
    %10 = arith.select %7, %5, %9 : vector<8x128xi1>, vector<8x128xf32>
    %c0_7 = arith.constant 0 : index
    %c0_8 = arith.constant 0 : index
    %11 = vector.load %arg4[%c0_7, %c0_8] : memref<8x104xbf16, #tpu.memory_space<vmem>>, vector<8x104xbf16>
    %c0_9 = arith.constant 0 : index
    %c0_10 = arith.constant 0 : index
    %12 = vector.load %arg5[%c0_9, %c0_10] : memref<104x128xbf16, #tpu.memory_space<vmem>>, vector<104x128xbf16>
    %cst_11 = arith.constant dense<0.000000e+00> : vector<8x128xf32>
    %13 = tpu.matmul %11, %12, %cst_11 {dimension_numbers = #tpu.dot_dimension_numbers<[1], [0], [0], [1], [0, 0, 1, 1], [], []>} : vector<8x104xbf16>, vector<104x128xbf16>, vector<8x128xf32> -> vector<8x128xf32>
    %c0_12 = arith.constant 0 : index
    %c0_13 = arith.constant 0 : index
    %14 = vector.load %arg6[%c0_12, %c0_13] : memref<8x8xbf16, #tpu.memory_space<vmem>>, vector<8x8xbf16>
    %15 = arith.truncf %10 : vector<8x128xf32> to vector<8x128xbf16>
    %cst_14 = arith.constant dense<0.000000e+00> : vector<8x128xf32>
    %16 = tpu.matmul %14, %15, %cst_14 {dimension_numbers = #tpu.dot_dimension_numbers<[1], [0], [0], [1], [0, 0, 1, 1], [], []>} : vector<8x8xbf16>, vector<8x128xbf16>, vector<8x128xf32> -> vector<8x128xf32>
    %17 = arith.addf %13, %16 : vector<8x128xf32>
    %c0_15 = arith.constant 0 : index
    %c0_16 = arith.constant 0 : index
    %18 = vector.load %arg7[%c0_15, %c0_16] : memref<8x1xf32, #tpu.memory_space<vmem>>, vector<8x1xf32>
    %19 = vector.broadcast %18 : vector<8x1xf32> to vector<8x128xf32>
    %20 = arith.addf %17, %19 : vector<8x128xf32>
    %cst_17 = arith.constant 0.000000e+00 : f32
    %21 = vector.broadcast %cst_17 : f32 to vector<8x128xf32>
    %22 = arith.cmpf oge, %20, %21 : vector<8x128xf32>
    %cst_18 = arith.constant 0.00999999977 : f32
    %23 = vector.broadcast %cst_18 : f32 to vector<8x128xf32>
    %24 = arith.mulf %23, %20 : vector<8x128xf32>
    %25 = arith.select %22, %20, %24 : vector<8x128xi1>, vector<8x128xf32>
    %26 = arith.truncf %25 : vector<8x128xf32> to vector<8x128xbf16>
    %c0_19 = arith.constant 0 : index
    %c0_20 = arith.constant 0 : index
    %27 = vector.load %arg8[%c0_19, %c0_20] : memref<8x128xbf16, #tpu.memory_space<vmem>>, vector<8x128xbf16>
    tpu.vector_store %arg8[%c0_19, %c0_20], %26 {strides = array<i32>} : memref<8x128xbf16, #tpu.memory_space<vmem>>, vector<8x128xbf16>,
    return
  }
  func.func @transform_0(%arg0: i32) -> (i32, i32) {
    %c0_i32 = arith.constant 0 : i32
    %c0_i32_0 = arith.constant 0 : i32
    %c0_i32_1 = arith.constant 0 : i32
    return %c0_i32, %c0_i32_0 : i32, i32
  }
  func.func @transform_1(%arg0: i32) -> (i32, i32) {
    %c0_i32 = arith.constant 0 : i32
    %c0_i32_0 = arith.constant 0 : i32
    return %c0_i32, %arg0 : i32, i32
  }
  func.func @transform_2(%arg0: i32) -> (i32, i32) {
    %c0_i32 = arith.constant 0 : i32
    %c0_i32_0 = arith.constant 0 : i32
    %c0_i32_1 = arith.constant 0 : i32
    return %c0_i32, %c0_i32_0 : i32, i32
  }
  func.func @transform_3(%arg0: i32) -> (i32, i32) {
    %c0_i32 = arith.constant 0 : i32
    %c0_i32_0 = arith.constant 0 : i32
    %c0_i32_1 = arith.constant 0 : i32
    return %c0_i32, %c0_i32_0 : i32, i32
  }
  func.func @transform_4(%arg0: i32) -> (i32, i32) {
    %c0_i32 = arith.constant 0 : i32
    %c0_i32_0 = arith.constant 0 : i32
    return %c0_i32, %arg0 : i32, i32
  }
  func.func @transform_5(%arg0: i32) -> (i32, i32) {
    %c0_i32 = arith.constant 0 : i32
    %c0_i32_0 = arith.constant 0 : i32
    %c0_i32_1 = arith.constant 0 : i32
    return %c0_i32, %c0_i32_0 : i32, i32
  }
  func.func @transform_6(%arg0: i32) -> (i32, i32) {
    %c0_i32 = arith.constant 0 : i32
    %c0_i32_0 = arith.constant 0 : i32
    %c0_i32_1 = arith.constant 0 : i32
    return %c0_i32, %c0_i32_0 : i32, i32
  }
  func.func @transform_7(%arg0: i32) -> (i32, i32) {
    %c0_i32 = arith.constant 0 : i32
    %c0_i32_0 = arith.constant 0 : i32
    return %c0_i32, %arg0 : i32, i32
  }
}

module attributes {stable_mosaic.version = 11 : i64} {
  func.func @kernel(%arg0: i32, %arg1: memref<8x72xbf16, #tpu.memory_space<vmem>>, %arg2: memref<72x128xbf16, #tpu.memory_space<vmem>>, %arg3: memref<8x1xf32, #tpu.memory_space<vmem>>, %arg4: memref<8x8xbf16, #tpu.memory_space<vmem>>, %arg5: memref<8x1xf32, #tpu.memory_space<vmem>>, %arg6: memref<8x128xf32, #tpu.memory_space<vmem>>) attributes {dimension_semantics = [#tpu.dimension_semantics<parallel>], iteration_bounds = array<i64: 1>, scalar_prefetch = 0 : i64, scratch_operands = 0 : i64, tpu.core_type = #tpu.core_type<tc>, window_params = [{pipeline_mode = #tpu.pipeline_mode<synchronous>, transform_indices = @transform_0, window_bounds = array<i64: 8, 72>}, {transform_indices = @transform_1, window_bounds = array<i64: 72, 128>}, {pipeline_mode = #tpu.pipeline_mode<synchronous>, transform_indices = @transform_2, window_bounds = array<i64: 8, 1>}, {pipeline_mode = #tpu.pipeline_mode<synchronous>, transform_indices = @transform_3, window_bounds = array<i64: 8, 8>}, {pipeline_mode = #tpu.pipeline_mode<synchronous>, transform_indices = @transform_4, window_bounds = array<i64: 8, 1>}, {transform_indices = @transform_5, window_bounds = array<i64: 8, 128>}]} {
    %c0 = arith.constant 0 : index
    %c0_0 = arith.constant 0 : index
    %0 = vector.load %arg1[%c0, %c0_0] : memref<8x72xbf16, #tpu.memory_space<vmem>>, vector<8x72xbf16>
    %c0_1 = arith.constant 0 : index
    %c0_2 = arith.constant 0 : index
    %1 = vector.load %arg2[%c0_1, %c0_2] : memref<72x128xbf16, #tpu.memory_space<vmem>>, vector<72x128xbf16>
    %cst = arith.constant dense<0.000000e+00> : vector<8x128xf32>
    %2 = tpu.matmul %0, %1, %cst {dimension_numbers = #tpu.dot_dimension_numbers<[1], [0], [0], [1], [0, 0, 1, 1], [], []>} : vector<8x72xbf16>, vector<72x128xbf16>, vector<8x128xf32> -> vector<8x128xf32>
    %c0_3 = arith.constant 0 : index
    %c0_4 = arith.constant 0 : index
    %3 = vector.load %arg3[%c0_3, %c0_4] : memref<8x1xf32, #tpu.memory_space<vmem>>, vector<8x1xf32>
    %4 = vector.broadcast %3 : vector<8x1xf32> to vector<8x128xf32>
    %5 = arith.addf %2, %4 : vector<8x128xf32>
    %cst_5 = arith.constant 0.000000e+00 : f32
    %6 = vector.broadcast %cst_5 : f32 to vector<8x128xf32>
    %7 = arith.cmpf oge, %5, %6 : vector<8x128xf32>
    %cst_6 = arith.constant 0.00999999977 : f32
    %8 = vector.broadcast %cst_6 : f32 to vector<8x128xf32>
    %9 = arith.mulf %8, %5 : vector<8x128xf32>
    %10 = arith.select %7, %5, %9 : vector<8x128xi1>, vector<8x128xf32>
    %c0_7 = arith.constant 0 : index
    %c0_8 = arith.constant 0 : index
    %11 = vector.load %arg4[%c0_7, %c0_8] : memref<8x8xbf16, #tpu.memory_space<vmem>>, vector<8x8xbf16>
    %12 = arith.truncf %10 : vector<8x128xf32> to vector<8x128xbf16>
    %cst_9 = arith.constant dense<0.000000e+00> : vector<8x128xf32>
    %13 = tpu.matmul %11, %12, %cst_9 {dimension_numbers = #tpu.dot_dimension_numbers<[1], [0], [0], [1], [0, 0, 1, 1], [], []>} : vector<8x8xbf16>, vector<8x128xbf16>, vector<8x128xf32> -> vector<8x128xf32>
    %c0_10 = arith.constant 0 : index
    %c0_11 = arith.constant 0 : index
    %14 = vector.load %arg5[%c0_10, %c0_11] : memref<8x1xf32, #tpu.memory_space<vmem>>, vector<8x1xf32>
    %15 = vector.broadcast %14 : vector<8x1xf32> to vector<8x128xf32>
    %16 = arith.addf %13, %15 : vector<8x128xf32>
    %c0_12 = arith.constant 0 : index
    %c0_13 = arith.constant 0 : index
    %17 = vector.load %arg6[%c0_12, %c0_13] : memref<8x128xf32, #tpu.memory_space<vmem>>, vector<8x128xf32>
    tpu.vector_store %arg6[%c0_12, %c0_13], %16 {strides = array<i32>} : memref<8x128xf32, #tpu.memory_space<vmem>>, vector<8x128xf32>,
    return
  }
  func.func @transform_0(%arg0: i32) -> (i32, i32) {
    %c0_i32 = arith.constant 0 : i32
    %c0_i32_0 = arith.constant 0 : i32
    %c0_i32_1 = arith.constant 0 : i32
    return %c0_i32, %c0_i32_0 : i32, i32
  }
  func.func @transform_1(%arg0: i32) -> (i32, i32) {
    %c0_i32 = arith.constant 0 : i32
    %c0_i32_0 = arith.constant 0 : i32
    return %c0_i32, %arg0 : i32, i32
  }
  func.func @transform_2(%arg0: i32) -> (i32, i32) {
    %c0_i32 = arith.constant 0 : i32
    %c0_i32_0 = arith.constant 0 : i32
    %c0_i32_1 = arith.constant 0 : i32
    return %c0_i32, %c0_i32_0 : i32, i32
  }
  func.func @transform_3(%arg0: i32) -> (i32, i32) {
    %c0_i32 = arith.constant 0 : i32
    %c0_i32_0 = arith.constant 0 : i32
    %c0_i32_1 = arith.constant 0 : i32
    return %c0_i32, %c0_i32_0 : i32, i32
  }
  func.func @transform_4(%arg0: i32) -> (i32, i32) {
    %c0_i32 = arith.constant 0 : i32
    %c0_i32_0 = arith.constant 0 : i32
    %c0_i32_1 = arith.constant 0 : i32
    return %c0_i32, %c0_i32_0 : i32, i32
  }
  func.func @transform_5(%arg0: i32) -> (i32, i32) {
    %c0_i32 = arith.constant 0 : i32
    %c0_i32_0 = arith.constant 0 : i32
    return %c0_i32, %arg0 : i32, i32
  }
}

</mosaic_0001>

<llo_original>
// kernel: crdecoder_forward.10
$region0: #{crdecoder_forward.10}
  #allocation0 [shape = 'u32[]', space=smem, size = 0x4, offset = 0x4, fixed_abs, tag = 'smem constant byte address 0x4 - core index']
  #allocation1 [shape = 'u32[144,128]{1,0:T(1,128)}', space=vmem, size = 0x12000, scoped, tag = 'internal scratch']
  %s0 = inlined_call_operand.vmem [shape: bf16[2,8], index: 0, kind: input, shape index: {}]
  %s1 = inlined_call_operand.hbm [shape: bf16[8,512], index: 1, kind: input, shape index: {}]
  %s2 = inlined_call_operand.hbm [shape: f32[1,512], index: 2, kind: input, shape index: {}]
  %s3 = inlined_call_operand.vmem [shape: bf16[2,512], index: 3, kind: output, shape index: {}]
  %s4 = sld [smem:[#allocation0]]
  $region53: #{crdecoder_forward.10} parent=0
    _
  %s6 = ssub.s32 1, %s4
  %s7 = scalar_select 0, %s6, %s4
  $region1: #{crdecoder_forward.10} parent=0
    #allocation2 [shape = 'u8[8192]{0}', space=vmem, size = 0x2000, scoped, tag = 'input window, operand 1']
    #allocation3 [shape = 's32[2]{0}', space=sflag, size = 0x8, scoped, tag = 'scoped memory for crdecoder_forward.10']
    #allocation4 [shape = 'u8[2048]{0}', space=vmem, size = 0x800, scoped, tag = 'input window, operand 2']
    #allocation5 [shape = 's32[2]{0}', space=sflag, size = 0x8, scoped, tag = 'scoped memory for crdecoder_forward.10']
    %8 = vsyncpa [#allocation3], 0
    %s9 = scalar_lea.sflag [#allocation3], 1
    %10 = vsyncpa %s9, 0
    %11 = vsyncpa [#allocation5], 0
    %s12 = scalar_lea.sflag [#allocation5], 1
    %13 = vsyncpa %s12, 0
    loop: start=0, step=1, limit=4
    $region2: #{crdecoder_forward.10} parent=1 // loop_pre_header
      _
    $region3: #{crdecoder_forward.10} parent=1 // loop_header
      %s15 = sphi 0, %s19
      %p16 = scmp.ge.s32.totalorder %s15, 4
      %s23 = sphi 0, %s23
      %s25 = sphi 0, %s23
      %s26 = sphi 0, %s25
      %s40 = sphi 0, %s26
      %s46 = sphi 0, %s48
      %s49 = sphi 0, %s46
      %s50 = sphi 0, %s49
      %s66 = sphi 0, %s50
      %s72 = sphi 0, %s74
      %s75 = sphi 0, %s72
      %s76 = sphi 0, %s75
      %s92 = sphi 0, %s76
      %s98 = sphi 0, %s100
      %s101 = sphi 0, %s98
      %s102 = sphi 0, %s101
      %s118 = sphi 0, %s102
    $region4: #{crdecoder_forward.10} parent=1 // loop_header_branch
      %18 = sbr.rel (%p16) target = $region8
    $region5: #{crdecoder_forward.10} parent=1 // loop_body
      %s20 = ssub.s32 %s15, 1
      %s21 = ssub.s32 %s15, 2
      %s22 = sadd.s32 %s15, 1
      %s24 = sadd.s32 %s23, 1
      %p27 = scmp.eq.s32.totalorder %s15, 1
      %p28 = scmp.ne.s32.totalorder %s23, %s25
      %p29 = scmp.eq.s32.totalorder %s15, 0
      %p30 = por %p28, %p29
      %p31 = scmp.ne.s32.totalorder %s23, %s25
      %p32 = scmp.eq.s32.totalorder %s20, 1
      %p33 = por %p31, %p32
      %p34 = scmp.ne.s32.totalorder %s25, %s26
      %p35 = scmp.eq.s32.totalorder %s20, 0
      %p36 = por %p34, %p35
      %p37 = scmp.ne.s32.totalorder %s25, %s26
      %p38 = scmp.eq.s32.totalorder %s21, 1
      %p39 = por %p37, %p38
      %p41 = scmp.ne.s32.totalorder %s26, %s40
      %p42 = scmp.eq.s32.totalorder %s21, 0
      %p43 = por %p41, %p42
      %s44 = ssub.s32 %s15, %s22
      %p45 = scmp.eq.s32.totalorder %s44, 0
      %s47 = sadd.s32 %s46, 1
      %s48 = scalar_select %p45, %s46, %s47
      %p51 = pneg %p45
      %p52 = scmp.eq.s32.totalorder %s15, 1
      %p53 = por %p51, %p52
      %p54 = scmp.ne.s32.totalorder %s46, %s49
      %p55 = scmp.eq.s32.totalorder %s15, 0
      %p56 = por %p54, %p55
      %p57 = scmp.ne.s32.totalorder %s46, %s49
      %p58 = scmp.eq.s32.totalorder %s20, 1
      %p59 = por %p57, %p58
      %p60 = scmp.ne.s32.totalorder %s49, %s50
      %p61 = scmp.eq.s32.totalorder %s20, 0
      %p62 = por %p60, %p61
      %p63 = scmp.ne.s32.totalorder %s49, %s50
      %p64 = scmp.eq.s32.totalorder %s21, 1
      %p65 = por %p63, %p64
      %p67 = scmp.ne.s32.totalorder %s50, %s66
      %p68 = scmp.eq.s32.totalorder %s21, 0
      %p69 = por %p67, %p68
      %s70 = ssub.s32 %s15, %s22
      %p71 = scmp.eq.s32.totalorder %s70, 0
      %s73 = sadd.s32 %s72, 1
      %s74 = scalar_select %p71, %s72, %s73
      %p77 = pneg %p71
      %p78 = scmp.eq.s32.totalorder %s15, 1
      %p79 = por %p77, %p78
      %p80 = scmp.ne.s32.totalorder %s72, %s75
      %p81 = scmp.eq.s32.totalorder %s15, 0
      %p82 = por %p80, %p81
      %p83 = scmp.ne.s32.totalorder %s72, %s75
      %p84 = scmp.eq.s32.totalorder %s20, 1
      %p85 = por %p83, %p84
      %p86 = scmp.ne.s32.totalorder %s75, %s76
      %p87 = scmp.eq.s32.totalorder %s20, 0
      %p88 = por %p86, %p87
      %p89 = scmp.ne.s32.totalorder %s75, %s76
      %p90 = scmp.eq.s32.totalorder %s21, 1
      %p91 = por %p89, %p90
      %p93 = scmp.ne.s32.totalorder %s76, %s92
      %p94 = scmp.eq.s32.totalorder %s21, 0
      %p95 = por %p93, %p94
      %s96 = ssub.s32 %s15, %s22
      %p97 = scmp.eq.s32.totalorder %s96, 0
      %s99 = sadd.s32 %s98, 1
      %s100 = scalar_select %p97, %s98, %s99
      %p103 = pneg %p97
      %p104 = scmp.eq.s32.totalorder %s15, 1
      %p105 = por %p103, %p104
      %p106 = scmp.ne.s32.totalorder %s98, %s101
      %p107 = scmp.eq.s32.totalorder %s15, 0
      %p108 = por %p106, %p107
      %p109 = scmp.ne.s32.totalorder %s98, %s101
      %p110 = scmp.eq.s32.totalorder %s20, 1
      %p111 = por %p109, %p110
      %p112 = scmp.ne.s32.totalorder %s101, %s102
      %p113 = scmp.eq.s32.totalorder %s20, 0
      %p114 = por %p112, %p113
      %p115 = scmp.ne.s32.totalorder %s101, %s102
      %p116 = scmp.eq.s32.totalorder %s21, 1
      %p117 = por %p115, %p116
      %p119 = scmp.ne.s32.totalorder %s102, %s118
      %p120 = scmp.eq.s32.totalorder %s21, 0
      %p121 = por %p119, %p120
      %p122 = scmp.le.s32.totalorder 1, %s15
      %p123 = scmp.lt.s32.totalorder %s15, 3
      %p124 = pnand %p122, %p123
      %p125 = pneg %p124
      // Predicated region
      $region9: #{crdecoder_forward.10} parent=5 // pred_check
        _
      $region10: #{crdecoder_forward.10} parent=5 // pred_check_branch
        %127 = sbr.rel (%p124) target = $region12
      $region11: #{crdecoder_forward.10} parent=5 // pred_region
        %s128 = ssub.s32 %s15, 1
        // Predicated region
        $region13: #{crdecoder_forward.10} parent=11 // pred_check
          %p129 = pneg %p36
        $region14: #{crdecoder_forward.10} parent=11 // pred_check_branch
          %131 = sbr.rel (%p129) target = $region16
        $region15: #{crdecoder_forward.10} parent=11 // pred_region
          _
        $region16: #{crdecoder_forward.10} parent=11 // pred_fallthru
          _
      $region12: #{crdecoder_forward.10} parent=5 // pred_fallthru
        _
      %p132 = scmp.lt.s32.totalorder %s15, 2
      // Predicated region
      $region17: #{crdecoder_forward.10} parent=5 // pred_check
        %p133 = pneg %p132
      $region18: #{crdecoder_forward.10} parent=5 // pred_check_branch
        %135 = sbr.rel (%p133) target = $region20
      $region19: #{crdecoder_forward.10} parent=5 // pred_region
        // Predicated region
        $region21: #{crdecoder_forward.10} parent=19 // pred_check
          %p136 = pneg %p56
        $region22: #{crdecoder_forward.10} parent=19 // pred_check_branch
          %138 = sbr.rel (%p136) target = $region24
        $region23: #{crdecoder_forward.10} parent=19 // pred_region
          %s139 = sand.u32 %s46, 1
          %s140 = scalar_lea.sflag [#allocation3], %s139
          %s141 = sand.u32 %s46, 1
          %s142 = smul.addr %s141, 8
          %s143 = scalar_lea.vmem [#allocation2], %s142
          %s144 = smul.u32 2, %s15
          %s146 = ssub.s32 128, 128
          %147 = vsyncadd %s140, %s146
          %s148 = smul.addr %s144, 64
          %s149 = scalar_lea.hbm %s1, %s148
          %s151 = sshll.u32 %s143, 4
          %s152 = int_to_ptr.vmem [resolvable:$true] %s151
          %154 = dma.hbm_to_vmem [thread:$0]  %s149, 128, %s152, %s140
        $region24: #{crdecoder_forward.10} parent=19 // pred_fallthru
          _
        // Predicated region
        $region25: #{crdecoder_forward.10} parent=19 // pred_check
          %p155 = pneg %p82
        $region26: #{crdecoder_forward.10} parent=19 // pred_check_branch
          %157 = sbr.rel (%p155) target = $region28
        $region27: #{crdecoder_forward.10} parent=19 // pred_region
          %s158 = sand.u32 %s72, 1
          %s159 = scalar_lea.sflag [#allocation5], %s158
          %s160 = sand.u32 %s72, 1
          %s161 = smul.addr %s160, 2
          %s162 = scalar_lea.vmem [#allocation4], %s161
          %s163 = smul.u32 2, %s15
          %s165 = ssub.s32 32, 32
          %166 = vsyncadd %s159, %s165
          %s167 = smul.addr %s163, 16
          %s168 = scalar_lea.hbm %s2, %s167
          %s170 = sshll.u32 %s162, 4
          %s171 = int_to_ptr.vmem [resolvable:$true] %s170
          %173 = dma.hbm_to_vmem [thread:$0]  %s168, 32, %s171, %s159
        $region28: #{crdecoder_forward.10} parent=19 // pred_fallthru
          _
      $region20: #{crdecoder_forward.10} parent=5 // pred_fallthru
        _
      %p174 = scmp.le.s32.totalorder 1, %s15
      %p175 = scmp.lt.s32.totalorder %s15, 3
      %p176 = pnand %p174, %p175
      %p177 = pneg %p176
      // Predicated region
      $region29: #{crdecoder_forward.10} parent=5 // pred_check
        _
      $region30: #{crdecoder_forward.10} parent=5 // pred_check_branch
        %179 = sbr.rel (%p176) target = $region32
      $region31: #{crdecoder_forward.10} parent=5 // pred_region
        %s180 = ssub.s32 %s15, 1
        %s181 = sand.u32 %s49, 1
        %s182 = scalar_lea.sflag [#allocation3], %s181
        %s183 = sand.u32 %s49, 1
        %s184 = smul.addr %s183, 8
        %s185 = scalar_lea.vmem [#allocation2], %s184
        // Predicated region
        $region33: #{crdecoder_forward.10} parent=31 // pred_check
          %p186 = pneg %p62
        $region34: #{crdecoder_forward.10} parent=31 // pred_check_branch
          %188 = sbr.rel (%p186) target = $region36
        $region35: #{crdecoder_forward.10} parent=31 // pred_region
          %189 = dma.done %s182, 128
        $region36: #{crdecoder_forward.10} parent=31 // pred_fallthru
          _
        %s190 = sand.u32 %s75, 1
        %s191 = scalar_lea.sflag [#allocation5], %s190
        %s192 = sand.u32 %s75, 1
        %s193 = smul.addr %s192, 2
        %s194 = scalar_lea.vmem [#allocation4], %s193
        // Predicated region
        $region37: #{crdecoder_forward.10} parent=31 // pred_check
          %p195 = pneg %p88
        $region38: #{crdecoder_forward.10} parent=31 // pred_check_branch
          %197 = sbr.rel (%p195) target = $region40
        $region39: #{crdecoder_forward.10} parent=31 // pred_region
          %198 = dma.done %s191, 32
        $region40: #{crdecoder_forward.10} parent=31 // pred_fallthru
          _
        %p199 = pneg %p36
        %p200 = pneg %p33
        %s201 = sand.u32 %s49, 1
        %s202 = scalar_lea.sflag [#allocation3], %s201
        %s203 = sand.u32 %s49, 1
        %s204 = smul.addr %s203, 8
        %s205 = scalar_lea.vmem [#allocation2], %s204
        %p206 = pneg %p62
        %p207 = pneg %p59
        %s208 = sand.u32 %s75, 1
        %s209 = scalar_lea.sflag [#allocation5], %s208
        %s210 = sand.u32 %s75, 1
        %s211 = smul.addr %s210, 2
        %s212 = scalar_lea.vmem [#allocation4], %s211
        %p213 = pneg %p88
        %p214 = pneg %p85
        %p215 = pneg %p114
        %p216 = pneg %p111
        %s217 = smul.u32 2, %s20
        %p218 = scmp.lt.s32.totalorder %s217, 3
        %s219 = scalar_select %p218, %s217, 3
        %s220 = scalar_lea.vmem %s3, %s219
        %s221 = smul.u32 2, %s20
        %s222 = smul.u32 2, %s20
        %s223 = smul.u32 2, %s20
        %p224 = scmp.lt.s32.totalorder %s223, 3
        %s225 = scalar_select %p224, %s223, 3
        %s226 = scalar_lea.vmem %s3, %s225
        %s227 = smul.u32 2, %s20
        %v229 = vld [vmem:[%s0] sm:$0x1]
        %v230 = vld [vmem:[%s185] sm:$0xff]
        %v231 = vld [vmem:[%s194] sm:$0x3]
        %v233 = vlaneseq
        %v234 = vshrl.u32 %v233, 7
        %v235 = vsub.s32 0, %v234
        %v236 = vrot.slane %v231, %v235
        %v237 = vlaneseq
        %v238 = vshrl.u32 %v237, 7
        %v239 = vsub.s32 1, %v238
        %v240 = vrot.slane %v231, %v239
        %v244 = vunpack.c.l.b16 %v230
        %v245 = vunpack.c.h.b16 %v230
        %v246 = vpack.c.b16 %v244, %v244
        %v247 = vpack.c.b16 %v245, %v245
        %vm248 = vcmask 64512
        %v250 = vsel %vm248, %v229, 0
        %vm252 = vcmask 1043456
        %v254 = vsel %vm252, %v246, 0
        %v257 = vsel %vm252, %v247, 0
        %259 = vmatprep.subr.bf16.mxu0 %v257
        %260 = vmatpush1.bf16.msra.mxu0 %v254
        %261 = vmatprep.subr.bf16.mxu0 0
        %262 = vmatpush1.bf16.msra.mxu0 0
        %263 = vmatprep.subr.bf16.mxu0 0
        %264 = vmatpush1.bf16.msra.mxu0 0
        %265 = vmatprep.subr.bf16.mxu0 0
        %266 = vmatpush1.bf16.msra.mxu0 0
        %267 = vmatprep.subr.bf16.mxu0 0
        %268 = vmatpush1.bf16.msra.mxu0 0
        %269 = vmatprep.subr.bf16.mxu0 0
        %270 = vmatpush1.bf16.msra.mxu0 0
        %271 = vmatprep.subr.bf16.mxu0 0
        %272 = vmatpush1.bf16.msra.mxu0 0
        %273 = vmatprep.subr.bf16.mxu0 0
        %274 = vmatpush1.bf16.msra.mxu0 0
        %275 = vmatprep.subr.bf16.mxu0 0
        %276 = vmatpush1.bf16.msra.mxu0 0
        %277 = vmatprep.subr.bf16.mxu0 0
        %278 = vmatpush1.bf16.msra.mxu0 0
        %279 = vmatprep.subr.bf16.mxu0 0
        %280 = vmatpush1.bf16.msra.mxu0 0
        %281 = vmatprep.subr.bf16.mxu0 0
        %282 = vmatpush1.bf16.msra.mxu0 0
        %283 = vmatprep.subr.bf16.mxu0 0
        %284 = vmatpush1.bf16.msra.mxu0 0
        %285 = vmatprep.subr.bf16.mxu0 0
        %286 = vmatpush1.bf16.msra.mxu0 0
        %287 = vmatprep.subr.bf16.mxu0 0
        %288 = vmatpush1.bf16.msra.mxu0 0
        %289 = vmatprep.subr.bf16.mxu0 0
        %290 = vmatpush1.bf16.msra.mxu0 0
        %291 = vmatprep.mubr.bf16.mxu0 0
        %292 = vmatmul.mubr.bf16.gmra.mrb[0].mxu0 %v250
        %v293 = vpop.f32.mrb[0].mxu0
        %v294 = vadd.f32 %v236, %v293
        %v295 = vpop.f32.mrb[0].mxu0
        %v296 = vadd.f32 %v240, %v295
        %v297 = vpop.f32.mrb[0].mxu0
        %v298 = vpop.f32.mrb[0].mxu0
        %299 = vdwg.mxu0
        %vm300 = vcmp.ge.f32.partialorder %v294, 0.0
        %vm301 = vcmp.ge.f32.partialorder %v296, 0.0
        %v302 = vmul.f32 %v294, 0.01
        %v303 = vmul.f32 %v296, 0.01
        %v304 = vsel %vm300, %v294, %v302
        %v305 = vsel %vm301, %v296, %v303
        %v306 = vpack.c.bf16 %v304, %v304
        %v307 = vpack.c.bf16 %v305, %v305
        %v310 = vcombine.low %v306, %v307
        %v312 = vunpack.c.l.s4 1966171168
        %v313 = vunpack.c.0.s8 %v312
        %v314 = vlaneseq
        %v315 = vshrl.u32 %v314, 7
        %v316 = vsub.s32 %v313, %v315
        %v317 = vrot.slane %v310, %v316
        %v319 = vunpack.c.l.s4 1966171168
        %v320 = vunpack.c.0.s8 %v319
        %v321 = vlaneseq
        %v322 = vshrl.u32 %v321, 7
        %v323 = vsub.s32 %v320, %v322
        %v324 = vrot.slane %v317, %v323
        %326 = vst [vmem:[%s226] sm:$0x3] %v324
        %s327 = smul.u32 2, %s20
        %p328 = scmp.lt.s32.totalorder %s327, 3
        %s329 = scalar_select %p328, %s327, 3
        %s330 = scalar_lea.vmem %s3, %s329
        // Predicated region
        $region41: #{crdecoder_forward.10} parent=31 // pred_check
          %p331 = pneg %p111
        $region42: #{crdecoder_forward.10} parent=31 // pred_check_branch
          %333 = sbr.rel (%p331) target = $region44
        $region43: #{crdecoder_forward.10} parent=31 // pred_region
          %s334 = smul.u32 2, %s20
        $region44: #{crdecoder_forward.10} parent=31 // pred_fallthru
          _
      $region32: #{crdecoder_forward.10} parent=5 // pred_fallthru
        _
      %p335 = scmp.le.s32.totalorder 2, %s15
      // Predicated region
      $region45: #{crdecoder_forward.10} parent=5 // pred_check
        %p336 = pneg %p335
      $region46: #{crdecoder_forward.10} parent=5 // pred_check_branch
        %338 = sbr.rel (%p336) target = $region48
      $region47: #{crdecoder_forward.10} parent=5 // pred_region
        %s339 = ssub.s32 %s15, 2
        // Predicated region
        $region49: #{crdecoder_forward.10} parent=47 // pred_check
          %p340 = pneg %p117
        $region50: #{crdecoder_forward.10} parent=47 // pred_check_branch
          %342 = sbr.rel (%p340) target = $region52
        $region51: #{crdecoder_forward.10} parent=47 // pred_region
          %s343 = smul.u32 2, %s21
          %p344 = scmp.lt.s32.totalorder %s343, 3
          %s345 = scalar_select %p344, %s343, 3
          %s346 = scalar_lea.vmem %s3, %s345
        $region52: #{crdecoder_forward.10} parent=47 // pred_fallthru
          _
      $region48: #{crdecoder_forward.10} parent=5 // pred_fallthru
        _
    $region6: #{crdecoder_forward.10} parent=1 // loop_footer
      %s19 = sadd.s32 1, %s15
    $region7: #{crdecoder_forward.10} parent=1 // loop_footer_branch
      %14 = sbr.rel target = $region3
    $region8: #{crdecoder_forward.10} parent=1 // loop_exit
      _
    %347 = vsyncpa [#allocation3], 1
    %s348 = scalar_lea.sflag [#allocation3], 1
    %349 = vsyncpa %s348, 1
    %350 = vsyncpa [#allocation5], 1
    %s351 = scalar_lea.sflag [#allocation5], 1
    %352 = vsyncpa %s351, 1

// kernel: crdecoder_forward.11
$region0: #{crdecoder_forward.11}
  #allocation0 [shape = 'u32[]', space=smem, size = 0x4, offset = 0x4, fixed_abs, tag = 'smem constant byte address 0x4 - core index']
  #allocation1 [shape = 'u32[144,128]{1,0:T(1,128)}', space=vmem, size = 0x12000, scoped, tag = 'internal scratch']
  %s0 = inlined_call_operand.hbm [shape: bf16[24,72], index: 0, kind: input, shape index: {}]
  %s1 = inlined_call_operand.vmem [shape: bf16[2,72,36], index: 1, kind: input, shape index: {}]
  %s2 = inlined_call_operand.vmem [shape: f32[24,1], index: 2, kind: input, shape index: {}]
  %s3 = inlined_call_operand.vmem [shape: bf16[2,8,36], index: 3, kind: output, shape index: {}]
  %s4 = sld [smem:[#allocation0]]
  $region49: #{crdecoder_forward.11} parent=0
    _
  %s6 = ssub.s32 1, %s4
  %s7 = scalar_select 0, %s6, %s4
  $region1: #{crdecoder_forward.11} parent=0
    #allocation2 [shape = 'u8[6144]{0}', space=vmem, size = 0x1800, scoped, tag = 'input window, operand 0, single buffered']
    #allocation3 [shape = 's32[2]{0}', space=sflag, size = 0x8, scoped, tag = 'scoped memory for crdecoder_forward.11']
    %8 = vsyncpa [#allocation3], 0
    loop: start=0, step=1, limit=4
    $region2: #{crdecoder_forward.11} parent=1 // loop_pre_header
      _
    $region3: #{crdecoder_forward.11} parent=1 // loop_header
      %s10 = sphi 0, %s14
      %p11 = scmp.ge.s32.totalorder %s10, 4
      %s18 = sphi 0, %s18
      %s20 = sphi 0, %s18
      %s21 = sphi 0, %s20
      %s35 = sphi 0, %s21
      %s41 = sphi 0, %s43
      %s44 = sphi 0, %s41
      %s45 = sphi 0, %s44
      %s61 = sphi 0, %s45
      %s65 = sphi 0, %s65
      %s67 = sphi 0, %s65
      %s68 = sphi 0, %s67
      %s82 = sphi 0, %s68
      %s88 = sphi 0, %s90
      %s91 = sphi 0, %s88
      %s92 = sphi 0, %s91
      %s108 = sphi 0, %s92
    $region4: #{crdecoder_forward.11} parent=1 // loop_header_branch
      %13 = sbr.rel (%p11) target = $region8
    $region5: #{crdecoder_forward.11} parent=1 // loop_body
      %s15 = ssub.s32 %s10, 1
      %s16 = ssub.s32 %s10, 2
      %s17 = sadd.s32 %s10, 1
      %s19 = sadd.s32 %s18, 1
      %p22 = scmp.eq.s32.totalorder %s10, 1
      %p23 = scmp.ne.s32.totalorder %s18, %s20
      %p24 = scmp.eq.s32.totalorder %s10, 0
      %p25 = por %p23, %p24
      %p26 = scmp.ne.s32.totalorder %s18, %s20
      %p27 = scmp.eq.s32.totalorder %s15, 1
      %p28 = por %p26, %p27
      %p29 = scmp.ne.s32.totalorder %s20, %s21
      %p30 = scmp.eq.s32.totalorder %s15, 0
      %p31 = por %p29, %p30
      %p32 = scmp.ne.s32.totalorder %s20, %s21
      %p33 = scmp.eq.s32.totalorder %s16, 1
      %p34 = por %p32, %p33
      %p36 = scmp.ne.s32.totalorder %s21, %s35
      %p37 = scmp.eq.s32.totalorder %s16, 0
      %p38 = por %p36, %p37
      %s39 = ssub.s32 %s10, %s17
      %p40 = scmp.eq.s32.totalorder %s39, 0
      %s42 = sadd.s32 %s41, 1
      %s43 = scalar_select %p40, %s41, %s42
      %p46 = pneg %p40
      %p47 = scmp.eq.s32.totalorder %s10, 1
      %p48 = por %p46, %p47
      %p49 = scmp.ne.s32.totalorder %s41, %s44
      %p50 = scmp.eq.s32.totalorder %s10, 0
      %p51 = por %p49, %p50
      %p52 = scmp.ne.s32.totalorder %s41, %s44
      %p53 = scmp.eq.s32.totalorder %s15, 1
      %p54 = por %p52, %p53
      %p55 = scmp.ne.s32.totalorder %s44, %s45
      %p56 = scmp.eq.s32.totalorder %s15, 0
      %p57 = por %p55, %p56
      %p58 = scmp.ne.s32.totalorder %s44, %s45
      %p59 = scmp.eq.s32.totalorder %s16, 1
      %p60 = por %p58, %p59
      %p62 = scmp.ne.s32.totalorder %s45, %s61
      %p63 = scmp.eq.s32.totalorder %s16, 0
      %p64 = por %p62, %p63
      %s66 = sadd.s32 %s65, 1
      %p69 = scmp.eq.s32.totalorder %s10, 1
      %p70 = scmp.ne.s32.totalorder %s65, %s67
      %p71 = scmp.eq.s32.totalorder %s10, 0
      %p72 = por %p70, %p71
      %p73 = scmp.ne.s32.totalorder %s65, %s67
      %p74 = scmp.eq.s32.totalorder %s15, 1
      %p75 = por %p73, %p74
      %p76 = scmp.ne.s32.totalorder %s67, %s68
      %p77 = scmp.eq.s32.totalorder %s15, 0
      %p78 = por %p76, %p77
      %p79 = scmp.ne.s32.totalorder %s67, %s68
      %p80 = scmp.eq.s32.totalorder %s16, 1
      %p81 = por %p79, %p80
      %p83 = scmp.ne.s32.totalorder %s68, %s82
      %p84 = scmp.eq.s32.totalorder %s16, 0
      %p85 = por %p83, %p84
      %s86 = ssub.s32 %s10, %s17
      %p87 = scmp.eq.s32.totalorder %s86, 0
      %s89 = sadd.s32 %s88, 1
      %s90 = scalar_select %p87, %s88, %s89
      %p93 = pneg %p87
      %p94 = scmp.eq.s32.totalorder %s10, 1
      %p95 = por %p93, %p94
      %p96 = scmp.ne.s32.totalorder %s88, %s91
      %p97 = scmp.eq.s32.totalorder %s10, 0
      %p98 = por %p96, %p97
      %p99 = scmp.ne.s32.totalorder %s88, %s91
      %p100 = scmp.eq.s32.totalorder %s15, 1
      %p101 = por %p99, %p100
      %p102 = scmp.ne.s32.totalorder %s91, %s92
      %p103 = scmp.eq.s32.totalorder %s15, 0
      %p104 = por %p102, %p103
      %p105 = scmp.ne.s32.totalorder %s91, %s92
      %p106 = scmp.eq.s32.totalorder %s16, 1
      %p107 = por %p105, %p106
      %p109 = scmp.ne.s32.totalorder %s92, %s108
      %p110 = scmp.eq.s32.totalorder %s16, 0
      %p111 = por %p109, %p110
      %p112 = scmp.le.s32.totalorder 1, %s10
      %p113 = scmp.lt.s32.totalorder %s10, 3
      %p114 = pnand %p112, %p113
      %p115 = pneg %p114
      // Predicated region
      $region9: #{crdecoder_forward.11} parent=5 // pred_check
        _
      $region10: #{crdecoder_forward.11} parent=5 // pred_check_branch
        %117 = sbr.rel (%p114) target = $region12
      $region11: #{crdecoder_forward.11} parent=5 // pred_region
        %s118 = ssub.s32 %s10, 1
        // Predicated region
        $region13: #{crdecoder_forward.11} parent=11 // pred_check
          %p119 = pneg %p31
        $region14: #{crdecoder_forward.11} parent=11 // pred_check_branch
          %121 = sbr.rel (%p119) target = $region16
        $region15: #{crdecoder_forward.11} parent=11 // pred_region
          %s123 = ssub.s32 192, 192
          %124 = vsyncadd [#allocation3], %s123
          %s125 = sshll.u32 [#allocation2], 4
          %s126 = int_to_ptr.vmem [resolvable:$true] %s125
          %131 = dma.hbm_to_vmem [thread:$0]  %s0, 192, %s126, [#allocation3], 64, 64, 4
        $region16: #{crdecoder_forward.11} parent=11 // pred_fallthru
          _
        // Predicated region
        $region17: #{crdecoder_forward.11} parent=11 // pred_check
          %p132 = pneg %p78
        $region18: #{crdecoder_forward.11} parent=11 // pred_check_branch
          %134 = sbr.rel (%p132) target = $region20
        $region19: #{crdecoder_forward.11} parent=11 // pred_region
          _
        $region20: #{crdecoder_forward.11} parent=11 // pred_fallthru
          _
      $region12: #{crdecoder_forward.11} parent=5 // pred_fallthru
        _
      %p135 = scmp.lt.s32.totalorder %s10, 2
      // Predicated region
      $region21: #{crdecoder_forward.11} parent=5 // pred_check
        %p136 = pneg %p135
      $region22: #{crdecoder_forward.11} parent=5 // pred_check_branch
        %138 = sbr.rel (%p136) target = $region24
      $region23: #{crdecoder_forward.11} parent=5 // pred_region
        // Predicated region
        $region25: #{crdecoder_forward.11} parent=23 // pred_check
          %p139 = pneg %p51
        $region26: #{crdecoder_forward.11} parent=23 // pred_check_branch
          %141 = sbr.rel (%p139) target = $region28
        $region27: #{crdecoder_forward.11} parent=23 // pred_region
          %p142 = scmp.lt.s32.totalorder %s10, 1
          %s143 = scalar_select %p142, %s10, 1
          %s144 = smul.addr %s143, 9
          %s145 = smul.addr %s144, 4
          %s146 = scalar_lea.vmem %s1, %s145
        $region28: #{crdecoder_forward.11} parent=23 // pred_fallthru
          _
      $region24: #{crdecoder_forward.11} parent=5 // pred_fallthru
        _
      %p147 = scmp.le.s32.totalorder 1, %s10
      %p148 = scmp.lt.s32.totalorder %s10, 3
      %p149 = pnand %p147, %p148
      %p150 = pneg %p149
      // Predicated region
      $region29: #{crdecoder_forward.11} parent=5 // pred_check
        _
      $region30: #{crdecoder_forward.11} parent=5 // pred_check_branch
        %152 = sbr.rel (%p149) target = $region32
      $region31: #{crdecoder_forward.11} parent=5 // pred_region
        %s153 = ssub.s32 %s10, 1
        // Predicated region
        $region33: #{crdecoder_forward.11} parent=31 // pred_check
          %p154 = pneg %p31
        $region34: #{crdecoder_forward.11} parent=31 // pred_check_branch
          %156 = sbr.rel (%p154) target = $region36
        $region35: #{crdecoder_forward.11} parent=31 // pred_region
          %157 = dma.done [#allocation3], 192
        $region36: #{crdecoder_forward.11} parent=31 // pred_fallthru
          _
        %p158 = pneg %p31
        %p159 = pneg %p28
        %p160 = scmp.lt.s32.totalorder %s15, 1
        %s161 = scalar_select %p160, %s15, 1
        %s162 = smul.addr %s161, 9
        %s163 = smul.addr %s162, 4
        %s164 = scalar_lea.vmem %s1, %s163
        %p165 = pneg %p57
        %p166 = pneg %p54
        %p167 = pneg %p78
        %p168 = pneg %p75
        %p169 = pneg %p104
        %p170 = pneg %p101
        %p171 = scmp.lt.s32.totalorder %s15, 1
        %s172 = scalar_select %p171, %s15, 1
        %s173 = smul.addr %s172, 4
        %s174 = scalar_lea.vmem %s3, %s173
        %p175 = scmp.lt.s32.totalorder %s15, 1
        %s176 = scalar_select %p175, %s15, 1
        %s177 = smul.addr %s176, 9
        %s178 = smul.addr %s177, 4
        %s179 = scalar_lea.vmem %s1, %s178
        %p180 = scmp.lt.s32.totalorder %s15, 1
        %s181 = scalar_select %p180, %s15, 1
        %s182 = smul.addr %s181, 4
        %s183 = scalar_lea.vmem %s3, %s182
        %v185 = vld [vmem:[#allocation2] sm:$0xf]
        %v186 = vld [vmem:[#allocation2 + $0x4] sm:$0xf]
        %v187 = vld [vmem:[#allocation2 + $0x8] sm:$0xf]
        %v188 = vld [vmem:[%s179] sm:$0xf]
        %v189 = vld [vmem:[%s179 + $0x4] sm:$0xf]
        %v190 = vld [vmem:[%s179 + $0x8] sm:$0xf]
        %v191 = vld [vmem:[%s179 + $0xc] sm:$0xf]
        %v192 = vld [vmem:[%s179 + $0x10] sm:$0xf]
        %v193 = vld [vmem:[%s179 + $0x14] sm:$0xf]
        %v194 = vld [vmem:[%s179 + $0x18] sm:$0xf]
        %v195 = vld [vmem:[%s179 + $0x1c] sm:$0xf]
        %v196 = vld [vmem:[%s179 + $0x20] sm:$0xf]
        %v197 = vld [vmem:[%s2] sm:$0xff]
        %v198 = vld [vmem:[%s2 + $0x8] sm:$0xff]
        %v199 = vld [vmem:[%s2 + $0x10] sm:$0xff]
        %201 = vset.pattern.permute.xlu0 0
        %202 = vperm.xlu0 %201, %v197
        %v203 = vpop.permute.xlu0 %202
        %206 = vset.pattern.permute.xlu0 0
        %207 = vperm.xlu0 %206, %v198
        %v208 = vpop.permute.xlu0 %207
        %211 = vset.pattern.permute.xlu0 0
        %212 = vperm.xlu0 %211, %v199
        %v213 = vpop.permute.xlu0 %212
        %v218 = vunpack.c.l.b16 %v185
        %v219 = vunpack.c.l.b16 %v186
        %v220 = vunpack.c.l.b16 %v187
        %v221 = vpack.c.b16 %v219, %v218
        %v222 = vpack.c.b16 %v220, %v220
        %v232 = vunpack.c.l.b16 %v188
        %v233 = vunpack.c.l.b16 %v189
        %v234 = vunpack.c.l.b16 %v190
        %v235 = vunpack.c.l.b16 %v191
        %v236 = vunpack.c.l.b16 %v192
        %v237 = vunpack.c.l.b16 %v193
        %v238 = vunpack.c.l.b16 %v194
        %v239 = vunpack.c.l.b16 %v195
        %v240 = vunpack.c.l.b16 %v196
        %v241 = vpack.c.b16 %v233, %v232
        %v242 = vpack.c.b16 %v235, %v234
        %v243 = vpack.c.b16 %v237, %v236
        %v244 = vpack.c.b16 %v239, %v238
        %v245 = vpack.c.b16 %v240, %v240
        %vm250 = vcmask 588800
        %v252 = vsel %vm250, %v221, 0
        %v255 = vsel %vm250, %v222, 0
        %vm257 = vcmask 1043456
        %v259 = vsel %vm257, %v245, 0
        %261 = vmatprep.subr.bf16.mxu0 0
        %262 = vmatpush1.bf16.msra.mxu0 %v241
        %263 = vmatprep.subr.bf16.mxu0 0
        %264 = vmatpush1.bf16.msra.mxu0 %v242
        %265 = vmatprep.subr.bf16.mxu0 0
        %266 = vmatpush1.bf16.msra.mxu0 %v243
        %267 = vmatprep.subr.bf16.mxu0 0
        %268 = vmatpush1.bf16.msra.mxu0 %v244
        %269 = vmatprep.subr.bf16.mxu0 0
        %270 = vmatpush1.bf16.msra.mxu0 %v259
        %271 = vmatprep.subr.bf16.mxu0 0
        %272 = vmatpush1.bf16.msra.mxu0 0
        %273 = vmatprep.subr.bf16.mxu0 0
        %274 = vmatpush1.bf16.msra.mxu0 0
        %275 = vmatprep.subr.bf16.mxu0 0
        %276 = vmatpush1.bf16.msra.mxu0 0
        %277 = vmatprep.subr.bf16.mxu0 0
        %278 = vmatpush1.bf16.msra.mxu0 0
        %279 = vmatprep.subr.bf16.mxu0 0
        %280 = vmatpush1.bf16.msra.mxu0 0
        %281 = vmatprep.subr.bf16.mxu0 0
        %282 = vmatpush1.bf16.msra.mxu0 0
        %283 = vmatprep.subr.bf16.mxu0 0
        %284 = vmatpush1.bf16.msra.mxu0 0
        %285 = vmatprep.subr.bf16.mxu0 0
        %286 = vmatpush1.bf16.msra.mxu0 0
        %287 = vmatprep.subr.bf16.mxu0 0
        %288 = vmatpush1.bf16.msra.mxu0 0
        %289 = vmatprep.subr.bf16.mxu0 0
        %290 = vmatpush1.bf16.msra.mxu0 0
        %291 = vmatprep.subr.bf16.mxu0 0
        %292 = vmatpush1.bf16.msra.mxu0 0
        %293 = vmatprep.mubr.bf16.mxu0 0
        %294 = vmatmul.mubr.bf16.gmra.mrb[0].mxu0 %v252
        %v295 = vpop.f32.mrb[0].mxu0
        %v296 = vadd.f32 %v203, %v295
        %v297 = vpop.f32.mrb[0].mxu0
        %v298 = vpop.f32.mrb[0].mxu0
        %v299 = vadd.f32 %v208, %v298
        %v300 = vpop.f32.mrb[0].mxu0
        %301 = vmatprep.mubr.bf16.mxu0 0
        %302 = vmatmul.mubr.bf16.gmra.mrb[0].mxu0 %v255
        %v303 = vpop.f32.mrb[0].mxu0
        %v304 = vadd.f32 %v213, %v303
        %v305 = vpop.f32.mrb[0].mxu0
        %v306 = vpop.f32.mrb[0].mxu0
        %v307 = vpop.f32.mrb[0].mxu0
        %308 = vdwg.mxu0
        %vm309 = vcmp.ge.f32.partialorder %v296, 0.0
        %vm310 = vcmp.ge.f32.partialorder %v299, 0.0
        %vm311 = vcmp.ge.f32.partialorder %v304, 0.0
        %v312 = vmul.f32 %v296, 0.01
        %v313 = vmul.f32 %v299, 0.01
        %v314 = vmul.f32 %v304, 0.01
        %v315 = vsel %vm309, %v296, %v312
        %v316 = vsel %vm310, %v299, %v313
        %v317 = vsel %vm311, %v304, %v314
        %318 = vxpose.xlu0.b32.start [1/16] %v316, 128
        %319 = vxpose.xlu0.b32.cont [2/16] 0.0, 128
        %320 = vxpose.xlu0.b32.cont [3/16] 0.0, 128
        %321 = vxpose.xlu0.b32.cont [4/16] 0.0, 128
        %322 = vxpose.xlu0.b32.cont [5/16] 0.0, 128
        %323 = vxpose.xlu0.b32.cont [6/16] 0.0, 128
        %324 = vxpose.xlu0.b32.cont [7/16] 0.0, 128
        %325 = vxpose.xlu0.b32.cont [8/16] 0.0, 128
        %326 = vxpose.xlu0.b32.cont [9/16] 0.0, 128
        %327 = vxpose.xlu0.b32.cont [10/16] 0.0, 128
        %328 = vxpose.xlu0.b32.cont [11/16] 0.0, 128
        %329 = vxpose.xlu0.b32.cont [12/16] 0.0, 128
        %330 = vxpose.xlu0.b32.cont [13/16] 0.0, 128
        %331 = vxpose.xlu0.b32.cont [14/16] 0.0, 128
        %332 = vxpose.xlu0.b32.cont [15/16] 0.0, 128
        %333 = vxpose.xlu0.b32.end [16/16] 0.0, 128
        %v334 = vpop.trf.xlu0
        %v335 = vpop.trf.xlu0
        %v336 = vpop.trf.xlu0
        %v337 = vpop.trf.xlu0
        %v338 = vpop.trf.xlu0
        %v339 = vpop.trf.xlu0
        %v340 = vpop.trf.xlu0
        %v341 = vpop.trf.xlu0
        %v342 = vpop.trf.xlu0
        %v343 = vpop.trf.xlu0
        %v344 = vpop.trf.xlu0
        %v345 = vpop.trf.xlu0
        %v346 = vpop.trf.xlu0
        %v347 = vpop.trf.xlu0
        %v348 = vpop.trf.xlu0
        %v349 = vpop.trf.xlu0
        %vm350 = vcmask 64512
        %v352 = vsel %vm350, %v334, 0
        %v355 = vsel %vm350, %v335, 0
        %v358 = vsel %vm350, %v336, 0
        %v361 = vsel %vm350, %v337, 0
        %v364 = vsel %vm350, %v338, 0
        %366 = vmatprep.subr.mxu0 0.0
        %367 = vmatpush1.msra.mxu0 %v315
        %368 = vmatprep.subr.mxu0 0.0
        %369 = vmatpush1.msra.mxu0 0.0
        %370 = vmatprep.subr.mxu0 0.0
        %371 = vmatpush1.msra.mxu0 0.0
        %372 = vmatprep.subr.mxu0 0.0
        %373 = vmatpush1.msra.mxu0 0.0
        %374 = vmatprep.subr.mxu0 0.0
        %375 = vmatpush1.msra.mxu0 0.0
        %376 = vmatprep.subr.mxu0 0.0
        %377 = vmatpush1.msra.mxu0 0.0
        %378 = vmatprep.subr.mxu0 0.0
        %379 = vmatpush1.msra.mxu0 0.0
        %380 = vmatprep.subr.mxu0 0.0
        %381 = vmatpush1.msra.mxu0 0.0
        %382 = vmatprep.subr.mxu0 0.0
        %383 = vmatpush1.msra.mxu0 0.0
        %384 = vmatprep.subr.mxu0 0.0
        %385 = vmatpush1.msra.mxu0 0.0
        %386 = vmatprep.subr.mxu0 0.0
        %387 = vmatpush1.msra.mxu0 0.0
        %388 = vmatprep.subr.mxu0 0.0
        %389 = vmatpush1.msra.mxu0 0.0
        %390 = vmatprep.subr.mxu0 0.0
        %391 = vmatpush1.msra.mxu0 0.0
        %392 = vmatprep.subr.mxu0 0.0
        %393 = vmatpush1.msra.mxu0 0.0
        %394 = vmatprep.subr.mxu0 0.0
        %395 = vmatpush1.msra.mxu0 0.0
        %396 = vmatprep.subr.mxu0 0.0
        %397 = vmatpush1.msra.mxu0 0.0
        %398 = vmatprep.subr.mxu0 0.0
        %399 = vmatpush1.msra.mxu0 0.0
        %400 = vmatprep.subr.mxu0 0.0
        %401 = vmatpush1.msra.mxu0 0.0
        %402 = vmatprep.subr.mxu0 0.0
        %403 = vmatpush1.msra.mxu0 0.0
        %404 = vmatprep.subr.mxu0 0.0
        %405 = vmatpush1.msra.mxu0 0.0
        %406 = vmatprep.subr.mxu0 0.0
        %407 = vmatpush1.msra.mxu0 0.0
        %408 = vmatprep.subr.mxu0 0.0
        %409 = vmatpush1.msra.mxu0 0.0
        %410 = vmatprep.subr.mxu0 0.0
        %411 = vmatpush1.msra.mxu0 0.0
        %412 = vmatprep.subr.mxu0 0.0
        %413 = vmatpush1.msra.mxu0 0.0
        %414 = vmatprep.subr.mxu0 0.0
        %415 = vmatpush1.msra.mxu0 0.0
        %416 = vmatprep.subr.mxu0 0.0
        %417 = vmatpush1.msra.mxu0 0.0
        %418 = vmatprep.subr.mxu0 0.0
        %419 = vmatpush1.msra.mxu0 0.0
        %420 = vmatprep.subr.mxu0 0.0
        %421 = vmatpush1.msra.mxu0 0.0
        %422 = vmatprep.subr.mxu0 0.0
        %423 = vmatpush1.msra.mxu0 0.0
        %424 = vmatprep.subr.mxu0 0.0
        %425 = vmatpush1.msra.mxu0 0.0
        %426 = vmatprep.subr.mxu0 0.0
        %427 = vmatpush1.msra.mxu0 0.0
        %428 = vmatprep.subr.mxu0 0.0
        %429 = vmatpush1.msra.mxu0 0.0
        %430 = vmatprep.mubr.f32.mxu0 0.0
        %431 = vmatmul.mubr.f32.gmra.mrb[0].mxu0 %v352
        %v432 = vpop.f32.mrb[0].mxu0
        %v433 = vadd.f32 0.0, %v432
        %v434 = vpop.f32.mrb[0].mxu0
        %435 = vmatprep.mubr.f32.mxu0 0.0
        %436 = vmatmul.mubr.f32.gmra.mrb[0].mxu0 %v355
        %v437 = vpop.f32.mrb[0].mxu0
        %v438 = vadd.f32 0.0, %v437
        %v439 = vpop.f32.mrb[0].mxu0
        %440 = vmatprep.mubr.f32.mxu0 0.0
        %441 = vmatmul.mubr.f32.gmra.mrb[0].mxu0 %v358
        %v442 = vpop.f32.mrb[0].mxu0
        %v443 = vadd.f32 0.0, %v442
        %v444 = vpop.f32.mrb[0].mxu0
        %445 = vmatprep.mubr.f32.mxu0 0.0
        %446 = vmatmul.mubr.f32.gmra.mrb[0].mxu0 %v361
        %v447 = vpop.f32.mrb[0].mxu0
        %v448 = vadd.f32 0.0, %v447
        %v449 = vpop.f32.mrb[0].mxu0
        %450 = vmatprep.mubr.f32.mxu0 0.0
        %451 = vmatmul.mubr.f32.gmra.mrb[0].mxu0 %v364
        %v452 = vpop.f32.mrb[0].mxu0
        %v453 = vadd.f32 0.0, %v452
        %v454 = vpop.f32.mrb[0].mxu0
        %455 = vdwg.mxu0
        %vm456 = vcmask 293888
        %v457 = vsel %vm456, %v433, -inf
        %458 = vmax.xlane.f32.xlu0 %v457
        %v459 = vpop.xlane.xlu0 %458
        %v460 = vsel %vm456, %v438, -inf
        %461 = vmax.xlane.f32.xlu0 %v460
        %v462 = vpop.xlane.xlu0 %461
        %v463 = vsel %vm456, %v443, -inf
        %464 = vmax.xlane.f32.xlu0 %v463
        %v465 = vpop.xlane.xlu0 %464
        %v466 = vsel %vm456, %v448, -inf
        %467 = vmax.xlane.f32.xlu0 %v466
        %v468 = vpop.xlane.xlu0 %467
        %vm469 = vcmask 289792
        %v470 = vsel %vm469, %v453, -inf
        %471 = vmax.xlane.f32.xlu0 %v470
        %v472 = vpop.xlane.xlu0 %471
        %v473 = vsub.f32 %v433, %v459
        %v474 = vsub.f32 %v438, %v462
        %v475 = vsub.f32 %v443, %v465
        %v476 = vsub.f32 %v448, %v468
        %v477 = vsub.f32 %v453, %v472
        %v478 = vmul.f32 %v473, 1.442695
        %v479 = vpow.pop %v478
        %v480 = vmul.f32 %v474, 1.442695
        %v481 = vpow.pop %v480
        %v482 = vmul.f32 %v475, 1.442695
        %v483 = vpow.pop %v482
        %v484 = vmul.f32 %v476, 1.442695
        %v485 = vpow.pop %v484
        %v486 = vmul.f32 %v477, 1.442695
        %v487 = vpow.pop %v486
        %v488 = vsel %vm456, %v479, 0.0
        %489 = vadd.xlane.f32.xlu0 %v488
        %v490 = vpop.xlane.xlu0 %489
        %v491 = vsel %vm456, %v481, 0.0
        %492 = vadd.xlane.f32.xlu0 %v491
        %v493 = vpop.xlane.xlu0 %492
        %v494 = vsel %vm456, %v483, 0.0
        %495 = vadd.xlane.f32.xlu0 %v494
        %v496 = vpop.xlane.xlu0 %495
        %v497 = vsel %vm456, %v485, 0.0
        %498 = vadd.xlane.f32.xlu0 %v497
        %v499 = vpop.xlane.xlu0 %498
        %v500 = vsel %vm469, %v487, 0.0
        %501 = vadd.xlane.f32.xlu0 %v500
        %v502 = vpop.xlane.xlu0 %501
        %v503 = vrcp.pop %v490
        %v504 = vrcp.pop %v493
        %v505 = vrcp.pop %v496
        %v506 = vrcp.pop %v499
        %v507 = vrcp.pop %v502
        %v508 = vmul.f32 %v479, %v503
        %v509 = vmul.f32 %v481, %v504
        %v510 = vmul.f32 %v483, %v505
        %v511 = vmul.f32 %v485, %v506
        %v512 = vmul.f32 %v487, %v507
        %v514 = vsel %vm456, %v317, 0
        %v517 = vsel %vm257, %v512, 0
        %519 = vmatprep.subr.mxu0 0.0
        %520 = vmatpush1.msra.mxu0 %v508
        %521 = vmatprep.subr.mxu0 0.0
        %522 = vmatpush1.msra.mxu0 %v509
        %523 = vmatprep.subr.mxu0 0.0
        %524 = vmatpush1.msra.mxu0 %v510
        %525 = vmatprep.subr.mxu0 0.0
        %526 = vmatpush1.msra.mxu0 %v511
        %527 = vmatprep.subr.mxu0 0.0
        %528 = vmatpush1.msra.mxu0 %v517
        %529 = vmatprep.subr.mxu0 0.0
        %530 = vmatpush1.msra.mxu0 0.0
        %531 = vmatprep.subr.mxu0 0.0
        %532 = vmatpush1.msra.mxu0 0.0
        %533 = vmatprep.subr.mxu0 0.0
        %534 = vmatpush1.msra.mxu0 0.0
        %535 = vmatprep.subr.mxu0 0.0
        %536 = vmatpush1.msra.mxu0 0.0
        %537 = vmatprep.subr.mxu0 0.0
        %538 = vmatpush1.msra.mxu0 0.0
        %539 = vmatprep.subr.mxu0 0.0
        %540 = vmatpush1.msra.mxu0 0.0
        %541 = vmatprep.subr.mxu0 0.0
        %542 = vmatpush1.msra.mxu0 0.0
        %543 = vmatprep.subr.mxu0 0.0
        %544 = vmatpush1.msra.mxu0 0.0
        %545 = vmatprep.subr.mxu0 0.0
        %546 = vmatpush1.msra.mxu0 0.0
        %547 = vmatprep.subr.mxu0 0.0
        %548 = vmatpush1.msra.mxu0 0.0
        %549 = vmatprep.subr.mxu0 0.0
        %550 = vmatpush1.msra.mxu0 0.0
        %551 = vmatprep.subr.mxu0 0.0
        %552 = vmatpush1.msra.mxu0 0.0
        %553 = vmatprep.subr.mxu0 0.0
        %554 = vmatpush1.msra.mxu0 0.0
        %555 = vmatprep.subr.mxu0 0.0
        %556 = vmatpush1.msra.mxu0 0.0
        %557 = vmatprep.subr.mxu0 0.0
        %558 = vmatpush1.msra.mxu0 0.0
        %559 = vmatprep.subr.mxu0 0.0
        %560 = vmatpush1.msra.mxu0 0.0
        %561 = vmatprep.subr.mxu0 0.0
        %562 = vmatpush1.msra.mxu0 0.0
        %563 = vmatprep.subr.mxu0 0.0
        %564 = vmatpush1.msra.mxu0 0.0
        %565 = vmatprep.subr.mxu0 0.0
        %566 = vmatpush1.msra.mxu0 0.0
        %567 = vmatprep.subr.mxu0 0.0
        %568 = vmatpush1.msra.mxu0 0.0
        %569 = vmatprep.subr.mxu0 0.0
        %570 = vmatpush1.msra.mxu0 0.0
        %571 = vmatprep.subr.mxu0 0.0
        %572 = vmatpush1.msra.mxu0 0.0
        %573 = vmatprep.subr.mxu0 0.0
        %574 = vmatpush1.msra.mxu0 0.0
        %575 = vmatprep.subr.mxu0 0.0
        %576 = vmatpush1.msra.mxu0 0.0
        %577 = vmatprep.subr.mxu0 0.0
        %578 = vmatpush1.msra.mxu0 0.0
        %579 = vmatprep.subr.mxu0 0.0
        %580 = vmatpush1.msra.mxu0 0.0
        %581 = vmatprep.subr.mxu0 0.0
        %582 = vmatpush1.msra.mxu0 0.0
        %583 = vmatprep.mubr.f32.mxu0 0.0
        %584 = vmatmul.mubr.f32.gmra.mrb[0].mxu0 %v514
        %v585 = vpop.f32.mrb[0].mxu0
        %v586 = vadd.f32 0.0, %v585
        %v587 = vpop.f32.mrb[0].mxu0
        %588 = vdwg.mxu0
        %v589 = vpack.c.bf16 %v586, %v586
        %590 = vst.msk [vmem:[%s183] sm:$0xf] %vm469, %v589
        %p591 = scmp.lt.s32.totalorder %s15, 1
        %s592 = scalar_select %p591, %s15, 1
        %s593 = smul.addr %s592, 4
        %s594 = scalar_lea.vmem %s3, %s593
        // Predicated region
        $region37: #{crdecoder_forward.11} parent=31 // pred_check
          %p595 = pneg %p101
        $region38: #{crdecoder_forward.11} parent=31 // pred_check_branch
          %597 = sbr.rel (%p595) target = $region40
        $region39: #{crdecoder_forward.11} parent=31 // pred_region
          _
        $region40: #{crdecoder_forward.11} parent=31 // pred_fallthru
          _
      $region32: #{crdecoder_forward.11} parent=5 // pred_fallthru
        _
      %p598 = scmp.le.s32.totalorder 2, %s10
      // Predicated region
      $region41: #{crdecoder_forward.11} parent=5 // pred_check
        %p599 = pneg %p598
      $region42: #{crdecoder_forward.11} parent=5 // pred_check_branch
        %601 = sbr.rel (%p599) target = $region44
      $region43: #{crdecoder_forward.11} parent=5 // pred_region
        %s602 = ssub.s32 %s10, 2
        // Predicated region
        $region45: #{crdecoder_forward.11} parent=43 // pred_check
          %p603 = pneg %p107
        $region46: #{crdecoder_forward.11} parent=43 // pred_check_branch
          %605 = sbr.rel (%p603) target = $region48
        $region47: #{crdecoder_forward.11} parent=43 // pred_region
          %p606 = scmp.lt.s32.totalorder %s16, 1
          %s607 = scalar_select %p606, %s16, 1
          %s608 = smul.addr %s607, 4
          %s609 = scalar_lea.vmem %s3, %s608
        $region48: #{crdecoder_forward.11} parent=43 // pred_fallthru
          _
      $region44: #{crdecoder_forward.11} parent=5 // pred_fallthru
        _
    $region6: #{crdecoder_forward.11} parent=1 // loop_footer
      %s14 = sadd.s32 1, %s10
    $region7: #{crdecoder_forward.11} parent=1 // loop_footer_branch
      %9 = sbr.rel target = $region3
    $region8: #{crdecoder_forward.11} parent=1 // loop_exit
      _
    %610 = vsyncpa [#allocation3], 1
    %s611 = scalar_lea.sflag [#allocation3], 1
    %612 = vsyncpa %s611, 1

// kernel: crdecoder_forward.12
$region0: #{crdecoder_forward.12}
  #allocation0 [shape = 'u32[]', space=smem, size = 0x4, offset = 0x4, fixed_abs, tag = 'smem constant byte address 0x4 - core index']
  #allocation1 [shape = 'u32[144,128]{1,0:T(1,128)}', space=vmem, size = 0x12000, scoped, tag = 'internal scratch']
  %s0 = inlined_call_operand.hbm [shape: bf16[8,72], index: 0, kind: input, shape index: {}]
  %s1 = inlined_call_operand.vmem [shape: bf16[72,128], index: 1, kind: input, shape index: {}]
  %s2 = inlined_call_operand.vmem [shape: f32[8,1], index: 2, kind: input, shape index: {}]
  %s3 = inlined_call_operand.vmem [shape: bf16[8,128], index: 3, kind: input, shape index: {}]
  %s4 = inlined_call_operand.vmem [shape: bf16[8,128], index: 4, kind: output, shape index: {}]
  %s5 = sld [smem:[#allocation0]]
  $region30: #{crdecoder_forward.12} parent=0
    _
  %s7 = ssub.s32 1, %s5
  %s8 = scalar_select 0, %s7, %s5
  $region1: #{crdecoder_forward.12} parent=0
    #allocation2 [shape = 'u8[2048]{0}', space=vmem, size = 0x800, scoped, tag = 'input window, operand 0, single buffered']
    #allocation3 [shape = 's32[1]{0}', space=sflag, size = 0x4, scoped, tag = 'scoped memory for crdecoder_forward.12']
    %9 = vsyncpa [#allocation3], 0
    // Predicated region
    $region2: #{crdecoder_forward.12} parent=1 // pred_check
      _
    $region3: #{crdecoder_forward.12} parent=1 // pred_check_branch
      %11 = sbr.rel (0) target = $region5
    $region4: #{crdecoder_forward.12} parent=1 // pred_region
      %s13 = ssub.s32 64, 64
      %14 = vsyncadd [#allocation3], %s13
      %s16 = sshll.u32 [#allocation2], 4
      %s17 = int_to_ptr.vmem [resolvable:$true] %s16
      %19 = dma.hbm_to_vmem [thread:$0]  %s0, 64, %s17, [#allocation3]
    $region5: #{crdecoder_forward.12} parent=1 // pred_fallthru
      _
    // Predicated region
    $region6: #{crdecoder_forward.12} parent=1 // pred_check
      _
    $region7: #{crdecoder_forward.12} parent=1 // pred_check_branch
      %21 = sbr.rel (0) target = $region9
    $region8: #{crdecoder_forward.12} parent=1 // pred_region
      _
    $region9: #{crdecoder_forward.12} parent=1 // pred_fallthru
      _
    // Predicated region
    $region10: #{crdecoder_forward.12} parent=1 // pred_check
      _
    $region11: #{crdecoder_forward.12} parent=1 // pred_check_branch
      %23 = sbr.rel (0) target = $region13
    $region12: #{crdecoder_forward.12} parent=1 // pred_region
      _
    $region13: #{crdecoder_forward.12} parent=1 // pred_fallthru
      _
    // Predicated region
    $region14: #{crdecoder_forward.12} parent=1 // pred_check
      _
    $region15: #{crdecoder_forward.12} parent=1 // pred_check_branch
      %25 = sbr.rel (0) target = $region17
    $region16: #{crdecoder_forward.12} parent=1 // pred_region
      _
    $region17: #{crdecoder_forward.12} parent=1 // pred_fallthru
      _
    // Predicated region
    $region18: #{crdecoder_forward.12} parent=1 // pred_check
      _
    $region19: #{crdecoder_forward.12} parent=1 // pred_check_branch
      %27 = sbr.rel (0) target = $region21
    $region20: #{crdecoder_forward.12} parent=1 // pred_region
      %28 = dma.done [#allocation3], 64
    $region21: #{crdecoder_forward.12} parent=1 // pred_fallthru
      _
    %v30 = vld [vmem:[#allocation2] sm:$0xf]
    %v31 = vld [vmem:[%s1] sm:$0xf]
    %v32 = vld [vmem:[%s1 + $0x4] sm:$0xf]
    %v33 = vld [vmem:[%s1 + $0x8] sm:$0xf]
    %v34 = vld [vmem:[%s1 + $0xc] sm:$0xf]
    %v35 = vld [vmem:[%s1 + $0x10] sm:$0xf]
    %v36 = vld [vmem:[%s1 + $0x14] sm:$0xf]
    %v37 = vld [vmem:[%s1 + $0x18] sm:$0xf]
    %v38 = vld [vmem:[%s1 + $0x1c] sm:$0xf]
    %v39 = vld [vmem:[%s1 + $0x20] sm:$0xf]
    %v40 = vld [vmem:[%s2] sm:$0xff]
    %42 = vset.pattern.permute.xlu0 0
    %43 = vperm.xlu0 %42, %v40
    %v44 = vpop.permute.xlu0 %43
    %v55 = vunpack.c.l.b16 %v31
    %v56 = vunpack.c.l.b16 %v32
    %v57 = vunpack.c.l.b16 %v33
    %v58 = vunpack.c.l.b16 %v34
    %v59 = vunpack.c.l.b16 %v35
    %v60 = vunpack.c.l.b16 %v36
    %v61 = vunpack.c.l.b16 %v37
    %v62 = vunpack.c.l.b16 %v38
    %v63 = vunpack.c.l.b16 %v39
    %v64 = vpack.c.b16 %v56, %v55
    %v65 = vpack.c.b16 %v58, %v57
    %v66 = vpack.c.b16 %v60, %v59
    %v67 = vpack.c.b16 %v62, %v61
    %v68 = vpack.c.b16 %v63, %v63
    %vm73 = vcmask 588800
    %v75 = vsel %vm73, %v30, 0
    %vm77 = vcmask 1043456
    %v79 = vsel %vm77, %v68, 0
    %81 = vmatprep.subr.bf16.mxu0 0
    %82 = vmatpush1.bf16.msra.mxu0 %v64
    %83 = vmatprep.subr.bf16.mxu0 0
    %84 = vmatpush1.bf16.msra.mxu0 %v65
    %85 = vmatprep.subr.bf16.mxu0 0
    %86 = vmatpush1.bf16.msra.mxu0 %v66
    %87 = vmatprep.subr.bf16.mxu0 0
    %88 = vmatpush1.bf16.msra.mxu0 %v67
    %89 = vmatprep.subr.bf16.mxu0 0
    %90 = vmatpush1.bf16.msra.mxu0 %v79
    %91 = vmatprep.subr.bf16.mxu0 0
    %92 = vmatpush1.bf16.msra.mxu0 0
    %93 = vmatprep.subr.bf16.mxu0 0
    %94 = vmatpush1.bf16.msra.mxu0 0
    %95 = vmatprep.subr.bf16.mxu0 0
    %96 = vmatpush1.bf16.msra.mxu0 0
    %97 = vmatprep.subr.bf16.mxu0 0
    %98 = vmatpush1.bf16.msra.mxu0 0
    %99 = vmatprep.subr.bf16.mxu0 0
    %100 = vmatpush1.bf16.msra.mxu0 0
    %101 = vmatprep.subr.bf16.mxu0 0
    %102 = vmatpush1.bf16.msra.mxu0 0
    %103 = vmatprep.subr.bf16.mxu0 0
    %104 = vmatpush1.bf16.msra.mxu0 0
    %105 = vmatprep.subr.bf16.mxu0 0
    %106 = vmatpush1.bf16.msra.mxu0 0
    %107 = vmatprep.subr.bf16.mxu0 0
    %108 = vmatpush1.bf16.msra.mxu0 0
    %109 = vmatprep.subr.bf16.mxu0 0
    %110 = vmatpush1.bf16.msra.mxu0 0
    %111 = vmatprep.subr.bf16.mxu0 0
    %112 = vmatpush1.bf16.msra.mxu0 0
    %113 = vmatprep.mubr.bf16.mxu0 0
    %114 = vmatmul.mubr.bf16.gmra.mrb[0].mxu0 %v75
    %v115 = vpop.f32.mrb[0].mxu0
    %v116 = vadd.f32 %v44, %v115
    %v117 = vpop.f32.mrb[0].mxu0
    %v118 = vpop.f32.mrb[0].mxu0
    %v119 = vpop.f32.mrb[0].mxu0
    %120 = vdwg.mxu0
    %vm121 = vcmp.ge.f32.partialorder %v116, 0.0
    %v122 = vmul.f32 %v116, 0.01
    %v123 = vsel %vm121, %v116, %v122
    %v124 = vld [vmem:[%s3] sm:$0xf]
    %v125 = vunpack.c.l.bf16 %v124
    %v126 = vadd.f32 %v123, %v125
    %v127 = vpack.c.bf16 %v126, %v126
    %128 = vst [vmem:[%s4] sm:$0xf] %v127
    // Predicated region
    $region22: #{crdecoder_forward.12} parent=1 // pred_check
      _
    $region23: #{crdecoder_forward.12} parent=1 // pred_check_branch
      %130 = sbr.rel (0) target = $region25
    $region24: #{crdecoder_forward.12} parent=1 // pred_region
      _
    $region25: #{crdecoder_forward.12} parent=1 // pred_fallthru
      _
    // Predicated region
    $region26: #{crdecoder_forward.12} parent=1 // pred_check
      _
    $region27: #{crdecoder_forward.12} parent=1 // pred_check_branch
      %132 = sbr.rel (0) target = $region29
    $region28: #{crdecoder_forward.12} parent=1 // pred_region
      _
    $region29: #{crdecoder_forward.12} parent=1 // pred_fallthru
      _
    %133 = vsyncpa [#allocation3], 1

// kernel: crdecoder_forward.13
$region0: #{crdecoder_forward.13}
  #allocation0 [shape = 'u32[]', space=smem, size = 0x4, offset = 0x4, fixed_abs, tag = 'smem constant byte address 0x4 - core index']
  #allocation1 [shape = 'u32[144,128]{1,0:T(1,128)}', space=vmem, size = 0x12000, scoped, tag = 'internal scratch']
  %s0 = inlined_call_operand.vmem [shape: bf16[32,72], index: 0, kind: input, shape index: {}]
  %s1 = inlined_call_operand.vmem [shape: bf16[72,128], index: 1, kind: input, shape index: {}]
  %s2 = inlined_call_operand.vmem [shape: f32[32,1], index: 2, kind: input, shape index: {}]
  %s3 = inlined_call_operand.vmem [shape: bf16[32,128], index: 3, kind: output, shape index: {}]
  %s4 = sld [smem:[#allocation0]]
  $region22: #{crdecoder_forward.13} parent=0
    _
  %s6 = ssub.s32 1, %s4
  %s7 = scalar_select 0, %s6, %s4
  // Predicated region
  $region2: #{crdecoder_forward.13} parent=0 // pred_check
    _
  $region3: #{crdecoder_forward.13} parent=0 // pred_check_branch
    %9 = sbr.rel (0) target = $region5
  $region4: #{crdecoder_forward.13} parent=0 // pred_region
    _
  $region5: #{crdecoder_forward.13} parent=0 // pred_fallthru
    _
  // Predicated region
  $region6: #{crdecoder_forward.13} parent=0 // pred_check
    _
  $region7: #{crdecoder_forward.13} parent=0 // pred_check_branch
    %11 = sbr.rel (0) target = $region9
  $region8: #{crdecoder_forward.13} parent=0 // pred_region
    _
  $region9: #{crdecoder_forward.13} parent=0 // pred_fallthru
    _
  // Predicated region
  $region10: #{crdecoder_forward.13} parent=0 // pred_check
    _
  $region11: #{crdecoder_forward.13} parent=0 // pred_check_branch
    %13 = sbr.rel (0) target = $region13
  $region12: #{crdecoder_forward.13} parent=0 // pred_region
    _
  $region13: #{crdecoder_forward.13} parent=0 // pred_fallthru
    _
  %v15 = vld [vmem:[%s0] sm:$0xf]
  %v16 = vld [vmem:[%s0 + $0x4] sm:$0xf]
  %v17 = vld [vmem:[%s0 + $0x8] sm:$0xf]
  %v18 = vld [vmem:[%s0 + $0xc] sm:$0xf]
  %v19 = vld [vmem:[%s1] sm:$0xf]
  %v20 = vld [vmem:[%s1 + $0x4] sm:$0xf]
  %v21 = vld [vmem:[%s1 + $0x8] sm:$0xf]
  %v22 = vld [vmem:[%s1 + $0xc] sm:$0xf]
  %v23 = vld [vmem:[%s1 + $0x10] sm:$0xf]
  %v24 = vld [vmem:[%s1 + $0x14] sm:$0xf]
  %v25 = vld [vmem:[%s1 + $0x18] sm:$0xf]
  %v26 = vld [vmem:[%s1 + $0x1c] sm:$0xf]
  %v27 = vld [vmem:[%s1 + $0x20] sm:$0xf]
  %v28 = vld [vmem:[%s2] sm:$0xff]
  %v29 = vld [vmem:[%s2 + $0x8] sm:$0xff]
  %v30 = vld [vmem:[%s2 + $0x10] sm:$0xff]
  %v31 = vld [vmem:[%s2 + $0x18] sm:$0xff]
  %33 = vset.pattern.permute.xlu0 0
  %34 = vperm.xlu0 %33, %v28
  %v35 = vpop.permute.xlu0 %34
  %38 = vset.pattern.permute.xlu0 0
  %39 = vperm.xlu0 %38, %v29
  %v40 = vpop.permute.xlu0 %39
  %43 = vset.pattern.permute.xlu0 0
  %44 = vperm.xlu0 %43, %v30
  %v45 = vpop.permute.xlu0 %44
  %48 = vset.pattern.permute.xlu0 0
  %49 = vperm.xlu0 %48, %v31
  %v50 = vpop.permute.xlu0 %49
  %v56 = vunpack.c.l.b16 %v15
  %v57 = vunpack.c.l.b16 %v16
  %v58 = vunpack.c.l.b16 %v17
  %v59 = vunpack.c.l.b16 %v18
  %v60 = vpack.c.b16 %v57, %v56
  %v61 = vpack.c.b16 %v59, %v58
  %v71 = vunpack.c.l.b16 %v19
  %v72 = vunpack.c.l.b16 %v20
  %v73 = vunpack.c.l.b16 %v21
  %v74 = vunpack.c.l.b16 %v22
  %v75 = vunpack.c.l.b16 %v23
  %v76 = vunpack.c.l.b16 %v24
  %v77 = vunpack.c.l.b16 %v25
  %v78 = vunpack.c.l.b16 %v26
  %v79 = vunpack.c.l.b16 %v27
  %v80 = vpack.c.b16 %v72, %v71
  %v81 = vpack.c.b16 %v74, %v73
  %v82 = vpack.c.b16 %v76, %v75
  %v83 = vpack.c.b16 %v78, %v77
  %v84 = vpack.c.b16 %v79, %v79
  %vm89 = vcmask 588800
  %v91 = vsel %vm89, %v60, 0
  %v94 = vsel %vm89, %v61, 0
  %vm96 = vcmask 1043456
  %v98 = vsel %vm96, %v84, 0
  %100 = vmatprep.subr.bf16.mxu0 0
  %101 = vmatpush1.bf16.msra.mxu0 %v80
  %102 = vmatprep.subr.bf16.mxu0 0
  %103 = vmatpush1.bf16.msra.mxu0 %v81
  %104 = vmatprep.subr.bf16.mxu0 0
  %105 = vmatpush1.bf16.msra.mxu0 %v82
  %106 = vmatprep.subr.bf16.mxu0 0
  %107 = vmatpush1.bf16.msra.mxu0 %v83
  %108 = vmatprep.subr.bf16.mxu0 0
  %109 = vmatpush1.bf16.msra.mxu0 %v98
  %110 = vmatprep.subr.bf16.mxu0 0
  %111 = vmatpush1.bf16.msra.mxu0 0
  %112 = vmatprep.subr.bf16.mxu0 0
  %113 = vmatpush1.bf16.msra.mxu0 0
  %114 = vmatprep.subr.bf16.mxu0 0
  %115 = vmatpush1.bf16.msra.mxu0 0
  %116 = vmatprep.subr.bf16.mxu0 0
  %117 = vmatpush1.bf16.msra.mxu0 0
  %118 = vmatprep.subr.bf16.mxu0 0
  %119 = vmatpush1.bf16.msra.mxu0 0
  %120 = vmatprep.subr.bf16.mxu0 0
  %121 = vmatpush1.bf16.msra.mxu0 0
  %122 = vmatprep.subr.bf16.mxu0 0
  %123 = vmatpush1.bf16.msra.mxu0 0
  %124 = vmatprep.subr.bf16.mxu0 0
  %125 = vmatpush1.bf16.msra.mxu0 0
  %126 = vmatprep.subr.bf16.mxu0 0
  %127 = vmatpush1.bf16.msra.mxu0 0
  %128 = vmatprep.subr.bf16.mxu0 0
  %129 = vmatpush1.bf16.msra.mxu0 0
  %130 = vmatprep.subr.bf16.mxu0 0
  %131 = vmatpush1.bf16.msra.mxu0 0
  %132 = vmatprep.mubr.bf16.mxu0 0
  %133 = vmatmul.mubr.bf16.gmra.mrb[0].mxu0 %v91
  %v134 = vpop.f32.mrb[0].mxu0
  %v135 = vadd.f32 %v35, %v134
  %v136 = vpop.f32.mrb[0].mxu0
  %v137 = vpop.f32.mrb[0].mxu0
  %v138 = vadd.f32 %v40, %v137
  %v139 = vpop.f32.mrb[0].mxu0
  %140 = vmatprep.mubr.bf16.mxu0 0
  %141 = vmatmul.mubr.bf16.gmra.mrb[0].mxu0 %v94
  %v142 = vpop.f32.mrb[0].mxu0
  %v143 = vadd.f32 %v45, %v142
  %v144 = vpop.f32.mrb[0].mxu0
  %v145 = vpop.f32.mrb[0].mxu0
  %v146 = vadd.f32 %v50, %v145
  %v147 = vpop.f32.mrb[0].mxu0
  %148 = vdwg.mxu0
  %vm149 = vcmp.ge.f32.partialorder %v135, 0.0
  %vm150 = vcmp.ge.f32.partialorder %v138, 0.0
  %vm151 = vcmp.ge.f32.partialorder %v143, 0.0
  %vm152 = vcmp.ge.f32.partialorder %v146, 0.0
  %v153 = vmul.f32 %v135, 0.01
  %v154 = vmul.f32 %v138, 0.01
  %v155 = vmul.f32 %v143, 0.01
  %v156 = vmul.f32 %v146, 0.01
  %v157 = vsel %vm149, %v135, %v153
  %v158 = vsel %vm150, %v138, %v154
  %v159 = vsel %vm151, %v143, %v155
  %v160 = vsel %vm152, %v146, %v156
  %v161 = vpack.c.bf16 %v158, %v157
  %v162 = vpack.c.bf16 %v160, %v159
  %v165 = vunpack.c.l.b16 %v161
  %v166 = vunpack.c.h.b16 %v161
  %v167 = vunpack.c.l.b16 %v162
  %v168 = vunpack.c.h.b16 %v162
  %v169 = vpack.c.b16 %v165, %v165
  %v170 = vpack.c.b16 %v166, %v166
  %v171 = vpack.c.b16 %v167, %v167
  %v172 = vpack.c.b16 %v168, %v168
  %177 = vst [vmem:[%s3] sm:$0xf] %v169
  %178 = vst [vmem:[%s3 + $0x4] sm:$0xf] %v170
  %179 = vst [vmem:[%s3 + $0x8] sm:$0xf] %v171
  %180 = vst [vmem:[%s3 + $0xc] sm:$0xf] %v172
  // Predicated region
  $region14: #{crdecoder_forward.13} parent=0 // pred_check
    _
  $region15: #{crdecoder_forward.13} parent=0 // pred_check_branch
    %182 = sbr.rel (0) target = $region17
  $region16: #{crdecoder_forward.13} parent=0 // pred_region
    _
  $region17: #{crdecoder_forward.13} parent=0 // pred_fallthru
    _
  // Predicated region
  $region18: #{crdecoder_forward.13} parent=0 // pred_check
    _
  $region19: #{crdecoder_forward.13} parent=0 // pred_check_branch
    %184 = sbr.rel (0) target = $region21
  $region20: #{crdecoder_forward.13} parent=0 // pred_region
    _
  $region21: #{crdecoder_forward.13} parent=0 // pred_fallthru
    _

// kernel: crdecoder_forward.14
$region0: #{crdecoder_forward.14}
  #allocation0 [shape = 'u32[]', space=smem, size = 0x4, offset = 0x4, fixed_abs, tag = 'smem constant byte address 0x4 - core index']
  #allocation1 [shape = 'u32[144,128]{1,0:T(1,128)}', space=vmem, size = 0x12000, scoped, tag = 'internal scratch']
  %s0 = inlined_call_operand.vmem [shape: bf16[64,360], index: 0, kind: input, shape index: {}]
  %s1 = inlined_call_operand.vmem [shape: bf16[360,128], index: 1, kind: input, shape index: {}]
  %s2 = inlined_call_operand.vmem [shape: f32[64,1], index: 2, kind: input, shape index: {}]
  %s3 = inlined_call_operand.vmem [shape: bf16[64,128], index: 3, kind: output, shape index: {}]
  %s4 = sld [smem:[#allocation0]]
  $region22: #{crdecoder_forward.14} parent=0
    _
  %s6 = ssub.s32 1, %s4
  %s7 = scalar_select 0, %s6, %s4
  // Predicated region
  $region2: #{crdecoder_forward.14} parent=0 // pred_check
    _
  $region3: #{crdecoder_forward.14} parent=0 // pred_check_branch
    %9 = sbr.rel (0) target = $region5
  $region4: #{crdecoder_forward.14} parent=0 // pred_region
    _
  $region5: #{crdecoder_forward.14} parent=0 // pred_fallthru
    _
  // Predicated region
  $region6: #{crdecoder_forward.14} parent=0 // pred_check
    _
  $region7: #{crdecoder_forward.14} parent=0 // pred_check_branch
    %11 = sbr.rel (0) target = $region9
  $region8: #{crdecoder_forward.14} parent=0 // pred_region
    _
  $region9: #{crdecoder_forward.14} parent=0 // pred_fallthru
    _
  // Predicated region
  $region10: #{crdecoder_forward.14} parent=0 // pred_check
    _
  $region11: #{crdecoder_forward.14} parent=0 // pred_check_branch
    %13 = sbr.rel (0) target = $region13
  $region12: #{crdecoder_forward.14} parent=0 // pred_region
    _
  $region13: #{crdecoder_forward.14} parent=0 // pred_fallthru
    _
  %v15 = vld [vmem:[%s0] sm:$0xff]
  %v16 = vld [vmem:[%s0 + $0x8] sm:$0xf]
  %v17 = vld [vmem:[%s0 + $0xc] sm:$0xff]
  %v18 = vld [vmem:[%s0 + $0x14] sm:$0xf]
  %v19 = vld [vmem:[%s0 + $0x18] sm:$0xff]
  %v20 = vld [vmem:[%s0 + $0x20] sm:$0xf]
  %v21 = vld [vmem:[%s0 + $0x24] sm:$0xff]
  %v22 = vld [vmem:[%s0 + $0x2c] sm:$0xf]
  %v23 = vld [vmem:[%s0 + $0x30] sm:$0xff]
  %v24 = vld [vmem:[%s0 + $0x38] sm:$0xf]
  %v25 = vld [vmem:[%s0 + $0x3c] sm:$0xff]
  %v26 = vld [vmem:[%s0 + $0x44] sm:$0xf]
  %v27 = vld [vmem:[%s0 + $0x48] sm:$0xff]
  %v28 = vld [vmem:[%s0 + $0x50] sm:$0xf]
  %v29 = vld [vmem:[%s0 + $0x54] sm:$0xff]
  %v30 = vld [vmem:[%s0 + $0x5c] sm:$0xf]
  %v31 = vld [vmem:[%s1] sm:$0xf]
  %v32 = vld [vmem:[%s1 + $0x4] sm:$0xf]
  %v33 = vld [vmem:[%s1 + $0x8] sm:$0xf]
  %v34 = vld [vmem:[%s1 + $0xc] sm:$0xf]
  %v35 = vld [vmem:[%s1 + $0x10] sm:$0xf]
  %v36 = vld [vmem:[%s1 + $0x14] sm:$0xf]
  %v37 = vld [vmem:[%s1 + $0x18] sm:$0xf]
  %v38 = vld [vmem:[%s1 + $0x1c] sm:$0xf]
  %v39 = vld [vmem:[%s1 + $0x20] sm:$0xf]
  %v40 = vld [vmem:[%s1 + $0x24] sm:$0xf]
  %v41 = vld [vmem:[%s1 + $0x28] sm:$0xf]
  %v42 = vld [vmem:[%s1 + $0x2c] sm:$0xf]
  %v43 = vld [vmem:[%s1 + $0x30] sm:$0xf]
  %v44 = vld [vmem:[%s1 + $0x34] sm:$0xf]
  %v45 = vld [vmem:[%s1 + $0x38] sm:$0xf]
  %v46 = vld [vmem:[%s1 + $0x3c] sm:$0xf]
  %v47 = vld [vmem:[%s1 + $0x40] sm:$0xf]
  %v48 = vld [vmem:[%s1 + $0x44] sm:$0xf]
  %v49 = vld [vmem:[%s1 + $0x48] sm:$0xf]
  %v50 = vld [vmem:[%s1 + $0x4c] sm:$0xf]
  %v51 = vld [vmem:[%s1 + $0x50] sm:$0xf]
  %v52 = vld [vmem:[%s1 + $0x54] sm:$0xf]
  %v53 = vld [vmem:[%s1 + $0x58] sm:$0xf]
  %v54 = vld [vmem:[%s1 + $0x5c] sm:$0xf]
  %v55 = vld [vmem:[%s1 + $0x60] sm:$0xf]
  %v56 = vld [vmem:[%s1 + $0x64] sm:$0xf]
  %v57 = vld [vmem:[%s1 + $0x68] sm:$0xf]
  %v58 = vld [vmem:[%s1 + $0x6c] sm:$0xf]
  %v59 = vld [vmem:[%s1 + $0x70] sm:$0xf]
  %v60 = vld [vmem:[%s1 + $0x74] sm:$0xf]
  %v61 = vld [vmem:[%s1 + $0x78] sm:$0xf]
  %v62 = vld [vmem:[%s1 + $0x7c] sm:$0xf]
  %v63 = vld [vmem:[%s1 + $0x80] sm:$0xf]
  %v64 = vld [vmem:[%s1 + $0x84] sm:$0xf]
  %v65 = vld [vmem:[%s1 + $0x88] sm:$0xf]
  %v66 = vld [vmem:[%s1 + $0x8c] sm:$0xf]
  %v67 = vld [vmem:[%s1 + $0x90] sm:$0xf]
  %v68 = vld [vmem:[%s1 + $0x94] sm:$0xf]
  %v69 = vld [vmem:[%s1 + $0x98] sm:$0xf]
  %v70 = vld [vmem:[%s1 + $0x9c] sm:$0xf]
  %v71 = vld [vmem:[%s1 + $0xa0] sm:$0xf]
  %v72 = vld [vmem:[%s1 + $0xa4] sm:$0xf]
  %v73 = vld [vmem:[%s1 + $0xa8] sm:$0xf]
  %v74 = vld [vmem:[%s1 + $0xac] sm:$0xf]
  %v75 = vld [vmem:[%s1 + $0xb0] sm:$0xf]
  %v76 = vld [vmem:[%s2] sm:$0xff]
  %v77 = vld [vmem:[%s2 + $0x8] sm:$0xff]
  %v78 = vld [vmem:[%s2 + $0x10] sm:$0xff]
  %v79 = vld [vmem:[%s2 + $0x18] sm:$0xff]
  %v80 = vld [vmem:[%s2 + $0x20] sm:$0xff]
  %v81 = vld [vmem:[%s2 + $0x28] sm:$0xff]
  %v82 = vld [vmem:[%s2 + $0x30] sm:$0xff]
  %v83 = vld [vmem:[%s2 + $0x38] sm:$0xff]
  %85 = vset.pattern.permute.xlu0 0
  %86 = vperm.xlu0 %85, %v76
  %v87 = vpop.permute.xlu0 %86
  %90 = vset.pattern.permute.xlu0 0
  %91 = vperm.xlu0 %90, %v77
  %v92 = vpop.permute.xlu0 %91
  %95 = vset.pattern.permute.xlu0 0
  %96 = vperm.xlu0 %95, %v78
  %v97 = vpop.permute.xlu0 %96
  %100 = vset.pattern.permute.xlu0 0
  %101 = vperm.xlu0 %100, %v79
  %v102 = vpop.permute.xlu0 %101
  %105 = vset.pattern.permute.xlu0 0
  %106 = vperm.xlu0 %105, %v80
  %v107 = vpop.permute.xlu0 %106
  %110 = vset.pattern.permute.xlu0 0
  %111 = vperm.xlu0 %110, %v81
  %v112 = vpop.permute.xlu0 %111
  %115 = vset.pattern.permute.xlu0 0
  %116 = vperm.xlu0 %115, %v82
  %v117 = vpop.permute.xlu0 %116
  %120 = vset.pattern.permute.xlu0 0
  %121 = vperm.xlu0 %120, %v83
  %v122 = vpop.permute.xlu0 %121
  %v140 = vunpack.c.l.b16 %v15
  %v141 = vunpack.c.h.b16 %v15
  %v142 = vunpack.c.l.b16 %v16
  %v143 = vunpack.c.l.b16 %v17
  %v144 = vunpack.c.h.b16 %v17
  %v145 = vunpack.c.l.b16 %v18
  %v146 = vunpack.c.l.b16 %v19
  %v147 = vunpack.c.h.b16 %v19
  %v148 = vunpack.c.l.b16 %v20
  %v149 = vunpack.c.l.b16 %v21
  %v150 = vunpack.c.h.b16 %v21
  %v151 = vunpack.c.l.b16 %v22
  %v152 = vunpack.c.l.b16 %v23
  %v153 = vunpack.c.h.b16 %v23
  %v154 = vunpack.c.l.b16 %v24
  %v155 = vunpack.c.l.b16 %v25
  %v156 = vunpack.c.h.b16 %v25
  %v157 = vunpack.c.l.b16 %v26
  %v158 = vunpack.c.l.b16 %v27
  %v159 = vunpack.c.h.b16 %v27
  %v160 = vunpack.c.l.b16 %v28
  %v161 = vunpack.c.l.b16 %v29
  %v162 = vunpack.c.h.b16 %v29
  %v163 = vunpack.c.l.b16 %v30
  %v164 = vpack.c.b16 %v143, %v140
  %v165 = vpack.c.b16 %v144, %v141
  %v166 = vpack.c.b16 %v145, %v142
  %v167 = vpack.c.b16 %v149, %v146
  %v168 = vpack.c.b16 %v150, %v147
  %v169 = vpack.c.b16 %v151, %v148
  %v170 = vpack.c.b16 %v155, %v152
  %v171 = vpack.c.b16 %v156, %v153
  %v172 = vpack.c.b16 %v157, %v154
  %v173 = vpack.c.b16 %v161, %v158
  %v174 = vpack.c.b16 %v162, %v159
  %v175 = vpack.c.b16 %v163, %v160
  %v229 = vunpack.c.l.b16 %v31
  %v230 = vunpack.c.l.b16 %v32
  %v231 = vunpack.c.l.b16 %v33
  %v232 = vunpack.c.l.b16 %v34
  %v233 = vunpack.c.l.b16 %v35
  %v234 = vunpack.c.l.b16 %v36
  %v235 = vunpack.c.l.b16 %v37
  %v236 = vunpack.c.l.b16 %v38
  %v237 = vunpack.c.l.b16 %v39
  %v238 = vunpack.c.l.b16 %v40
  %v239 = vunpack.c.l.b16 %v41
  %v240 = vunpack.c.l.b16 %v42
  %v241 = vunpack.c.l.b16 %v43
  %v242 = vunpack.c.l.b16 %v44
  %v243 = vunpack.c.l.b16 %v45
  %v244 = vunpack.c.l.b16 %v46
  %v245 = vunpack.c.l.b16 %v47
  %v246 = vunpack.c.l.b16 %v48
  %v247 = vunpack.c.l.b16 %v49
  %v248 = vunpack.c.l.b16 %v50
  %v249 = vunpack.c.l.b16 %v51
  %v250 = vunpack.c.l.b16 %v52
  %v251 = vunpack.c.l.b16 %v53
  %v252 = vunpack.c.l.b16 %v54
  %v253 = vunpack.c.l.b16 %v55
  %v254 = vunpack.c.l.b16 %v56
  %v255 = vunpack.c.l.b16 %v57
  %v256 = vunpack.c.l.b16 %v58
  %v257 = vunpack.c.l.b16 %v59
  %v258 = vunpack.c.l.b16 %v60
  %v259 = vunpack.c.l.b16 %v61
  %v260 = vunpack.c.l.b16 %v62
  %v261 = vunpack.c.l.b16 %v63
  %v262 = vunpack.c.l.b16 %v64
  %v263 = vunpack.c.l.b16 %v65
  %v264 = vunpack.c.l.b16 %v66
  %v265 = vunpack.c.l.b16 %v67
  %v266 = vunpack.c.l.b16 %v68
  %v267 = vunpack.c.l.b16 %v69
  %v268 = vunpack.c.l.b16 %v70
  %v269 = vunpack.c.l.b16 %v71
  %v270 = vunpack.c.l.b16 %v72
  %v271 = vunpack.c.l.b16 %v73
  %v272 = vunpack.c.l.b16 %v74
  %v273 = vunpack.c.l.b16 %v75
  %v274 = vpack.c.b16 %v230, %v229
  %v275 = vpack.c.b16 %v232, %v231
  %v276 = vpack.c.b16 %v234, %v233
  %v277 = vpack.c.b16 %v236, %v235
  %v278 = vpack.c.b16 %v238, %v237
  %v279 = vpack.c.b16 %v240, %v239
  %v280 = vpack.c.b16 %v242, %v241
  %v281 = vpack.c.b16 %v244, %v243
  %v282 = vpack.c.b16 %v246, %v245
  %v283 = vpack.c.b16 %v248, %v247
  %v284 = vpack.c.b16 %v250, %v249
  %v285 = vpack.c.b16 %v252, %v251
  %v286 = vpack.c.b16 %v254, %v253
  %v287 = vpack.c.b16 %v256, %v255
  %v288 = vpack.c.b16 %v258, %v257
  %v289 = vpack.c.b16 %v260, %v259
  %v290 = vpack.c.b16 %v262, %v261
  %v291 = vpack.c.b16 %v264, %v263
  %v292 = vpack.c.b16 %v266, %v265
  %v293 = vpack.c.b16 %v268, %v267
  %v294 = vpack.c.b16 %v270, %v269
  %v295 = vpack.c.b16 %v272, %v271
  %v296 = vpack.c.b16 %v273, %v273
  %vm319 = vcmask 850944
  %v321 = vsel %vm319, %v166, 0
  %v324 = vsel %vm319, %v169, 0
  %v327 = vsel %vm319, %v172, 0
  %v330 = vsel %vm319, %v175, 0
  %vm332 = vcmask 1043456
  %v334 = vsel %vm332, %v296, 0
  %336 = vmatprep.subr.bf16.mxu0 0
  %337 = vmatpush1.bf16.msra.mxu0 %v274
  %338 = vmatprep.subr.bf16.mxu0 0
  %339 = vmatpush1.bf16.msra.mxu0 %v275
  %340 = vmatprep.subr.bf16.mxu0 0
  %341 = vmatpush1.bf16.msra.mxu0 %v276
  %342 = vmatprep.subr.bf16.mxu0 0
  %343 = vmatpush1.bf16.msra.mxu0 %v277
  %344 = vmatprep.subr.bf16.mxu0 0
  %345 = vmatpush1.bf16.msra.mxu0 %v278
  %346 = vmatprep.subr.bf16.mxu0 0
  %347 = vmatpush1.bf16.msra.mxu0 %v279
  %348 = vmatprep.subr.bf16.mxu0 0
  %349 = vmatpush1.bf16.msra.mxu0 %v280
  %350 = vmatprep.subr.bf16.mxu0 0
  %351 = vmatpush1.bf16.msra.mxu0 %v281
  %352 = vmatprep.subr.bf16.mxu0 0
  %353 = vmatpush1.bf16.msra.mxu0 %v282
  %354 = vmatprep.subr.bf16.mxu0 0
  %355 = vmatpush1.bf16.msra.mxu0 %v283
  %356 = vmatprep.subr.bf16.mxu0 0
  %357 = vmatpush1.bf16.msra.mxu0 %v284
  %358 = vmatprep.subr.bf16.mxu0 0
  %359 = vmatpush1.bf16.msra.mxu0 %v285
  %360 = vmatprep.subr.bf16.mxu0 0
  %361 = vmatpush1.bf16.msra.mxu0 %v286
  %362 = vmatprep.subr.bf16.mxu0 0
  %363 = vmatpush1.bf16.msra.mxu0 %v287
  %364 = vmatprep.subr.bf16.mxu0 0
  %365 = vmatpush1.bf16.msra.mxu0 %v288
  %366 = vmatprep.subr.bf16.mxu0 0
  %367 = vmatpush1.bf16.msra.mxu0 %v289
  %368 = vmatprep.mubr.bf16.mxu0 %v165
  %369 = vmatmul.mubr.bf16.gmra.mrb[0].mxu0 %v164
  %v370 = vpop.f32.mrb[0].mxu0
  %v371 = vadd.f32 %v87, %v370
  %v372 = vpop.f32.mrb[0].mxu0
  %v373 = vpop.f32.mrb[0].mxu0
  %v374 = vadd.f32 %v92, %v373
  %v375 = vpop.f32.mrb[0].mxu0
  %376 = vmatprep.mubr.bf16.mxu0 %v168
  %377 = vmatmul.mubr.bf16.gmra.mrb[0].mxu0 %v167
  %v378 = vpop.f32.mrb[0].mxu0
  %v379 = vadd.f32 %v97, %v378
  %v380 = vpop.f32.mrb[0].mxu0
  %v381 = vpop.f32.mrb[0].mxu0
  %v382 = vadd.f32 %v102, %v381
  %v383 = vpop.f32.mrb[0].mxu0
  %384 = vmatprep.mubr.bf16.mxu0 %v171
  %385 = vmatmul.mubr.bf16.gmra.mrb[0].mxu0 %v170
  %v386 = vpop.f32.mrb[0].mxu0
  %v387 = vadd.f32 %v107, %v386
  %v388 = vpop.f32.mrb[0].mxu0
  %v389 = vpop.f32.mrb[0].mxu0
  %v390 = vadd.f32 %v112, %v389
  %v391 = vpop.f32.mrb[0].mxu0
  %392 = vmatprep.mubr.bf16.mxu0 %v174
  %393 = vmatmul.mubr.bf16.gmra.mrb[0].mxu0 %v173
  %v394 = vpop.f32.mrb[0].mxu0
  %v395 = vadd.f32 %v117, %v394
  %v396 = vpop.f32.mrb[0].mxu0
  %v397 = vpop.f32.mrb[0].mxu0
  %v398 = vadd.f32 %v122, %v397
  %v399 = vpop.f32.mrb[0].mxu0
  %400 = vdwg.mxu0
  %401 = vmatprep.subr.bf16.mxu0 0
  %402 = vmatpush1.bf16.msra.mxu0 %v290
  %403 = vmatprep.subr.bf16.mxu0 0
  %404 = vmatpush1.bf16.msra.mxu0 %v291
  %405 = vmatprep.subr.bf16.mxu0 0
  %406 = vmatpush1.bf16.msra.mxu0 %v292
  %407 = vmatprep.subr.bf16.mxu0 0
  %408 = vmatpush1.bf16.msra.mxu0 %v293
  %409 = vmatprep.subr.bf16.mxu0 0
  %410 = vmatpush1.bf16.msra.mxu0 %v294
  %411 = vmatprep.subr.bf16.mxu0 0
  %412 = vmatpush1.bf16.msra.mxu0 %v295
  %413 = vmatprep.subr.bf16.mxu0 0
  %414 = vmatpush1.bf16.msra.mxu0 %v334
  %415 = vmatprep.subr.bf16.mxu0 0
  %416 = vmatpush1.bf16.msra.mxu0 0
  %417 = vmatprep.subr.bf16.mxu0 0
  %418 = vmatpush1.bf16.msra.mxu0 0
  %419 = vmatprep.subr.bf16.mxu0 0
  %420 = vmatpush1.bf16.msra.mxu0 0
  %421 = vmatprep.subr.bf16.mxu0 0
  %422 = vmatpush1.bf16.msra.mxu0 0
  %423 = vmatprep.subr.bf16.mxu0 0
  %424 = vmatpush1.bf16.msra.mxu0 0
  %425 = vmatprep.subr.bf16.mxu0 0
  %426 = vmatpush1.bf16.msra.mxu0 0
  %427 = vmatprep.subr.bf16.mxu0 0
  %428 = vmatpush1.bf16.msra.mxu0 0
  %429 = vmatprep.subr.bf16.mxu0 0
  %430 = vmatpush1.bf16.msra.mxu0 0
  %431 = vmatprep.subr.bf16.mxu0 0
  %432 = vmatpush1.bf16.msra.mxu0 0
  %433 = vmatprep.mubr.bf16.mxu0 0
  %434 = vmatmul.mubr.bf16.gmra.mrb[0].mxu0 %v321
  %v435 = vpop.f32.mrb[0].mxu0
  %v436 = vadd.f32 %v371, %v435
  %v437 = vpop.f32.mrb[0].mxu0
  %v438 = vpop.f32.mrb[0].mxu0
  %v439 = vadd.f32 %v374, %v438
  %v440 = vpop.f32.mrb[0].mxu0
  %441 = vmatprep.mubr.bf16.mxu0 0
  %442 = vmatmul.mubr.bf16.gmra.mrb[0].mxu0 %v324
  %v443 = vpop.f32.mrb[0].mxu0
  %v444 = vadd.f32 %v379, %v443
  %v445 = vpop.f32.mrb[0].mxu0
  %v446 = vpop.f32.mrb[0].mxu0
  %v447 = vadd.f32 %v382, %v446
  %v448 = vpop.f32.mrb[0].mxu0
  %449 = vmatprep.mubr.bf16.mxu0 0
  %450 = vmatmul.mubr.bf16.gmra.mrb[0].mxu0 %v327
  %v451 = vpop.f32.mrb[0].mxu0
  %v452 = vadd.f32 %v387, %v451
  %v453 = vpop.f32.mrb[0].mxu0
  %v454 = vpop.f32.mrb[0].mxu0
  %v455 = vadd.f32 %v390, %v454
  %v456 = vpop.f32.mrb[0].mxu0
  %457 = vmatprep.mubr.bf16.mxu0 0
  %458 = vmatmul.mubr.bf16.gmra.mrb[0].mxu0 %v330
  %v459 = vpop.f32.mrb[0].mxu0
  %v460 = vadd.f32 %v395, %v459
  %v461 = vpop.f32.mrb[0].mxu0
  %v462 = vpop.f32.mrb[0].mxu0
  %v463 = vadd.f32 %v398, %v462
  %v464 = vpop.f32.mrb[0].mxu0
  %465 = vdwg.mxu0
  %vm466 = vcmp.ge.f32.partialorder %v436, 0.0
  %vm467 = vcmp.ge.f32.partialorder %v439, 0.0
  %vm468 = vcmp.ge.f32.partialorder %v444, 0.0
  %vm469 = vcmp.ge.f32.partialorder %v447, 0.0
  %vm470 = vcmp.ge.f32.partialorder %v452, 0.0
  %vm471 = vcmp.ge.f32.partialorder %v455, 0.0
  %vm472 = vcmp.ge.f32.partialorder %v460, 0.0
  %vm473 = vcmp.ge.f32.partialorder %v463, 0.0
  %v474 = vmul.f32 %v436, 0.01
  %v475 = vmul.f32 %v439, 0.01
  %v476 = vmul.f32 %v444, 0.01
  %v477 = vmul.f32 %v447, 0.01
  %v478 = vmul.f32 %v452, 0.01
  %v479 = vmul.f32 %v455, 0.01
  %v480 = vmul.f32 %v460, 0.01
  %v481 = vmul.f32 %v463, 0.01
  %v482 = vsel %vm466, %v436, %v474
  %v483 = vsel %vm467, %v439, %v475
  %v484 = vsel %vm468, %v444, %v476
  %v485 = vsel %vm469, %v447, %v477
  %v486 = vsel %vm470, %v452, %v478
  %v487 = vsel %vm471, %v455, %v479
  %v488 = vsel %vm472, %v460, %v480
  %v489 = vsel %vm473, %v463, %v481
  %v490 = vpack.c.bf16 %v483, %v482
  %v491 = vpack.c.bf16 %v485, %v484
  %v492 = vpack.c.bf16 %v487, %v486
  %v493 = vpack.c.bf16 %v489, %v488
  %v498 = vunpack.c.l.b16 %v490
  %v499 = vunpack.c.h.b16 %v490
  %v500 = vunpack.c.l.b16 %v491
  %v501 = vunpack.c.h.b16 %v491
  %v502 = vunpack.c.l.b16 %v492
  %v503 = vunpack.c.h.b16 %v492
  %v504 = vunpack.c.l.b16 %v493
  %v505 = vunpack.c.h.b16 %v493
  %v506 = vpack.c.b16 %v498, %v498
  %v507 = vpack.c.b16 %v499, %v499
  %v508 = vpack.c.b16 %v500, %v500
  %v509 = vpack.c.b16 %v501, %v501
  %v510 = vpack.c.b16 %v502, %v502
  %v511 = vpack.c.b16 %v503, %v503
  %v512 = vpack.c.b16 %v504, %v504
  %v513 = vpack.c.b16 %v505, %v505
  %522 = vst [vmem:[%s3] sm:$0xf] %v506
  %523 = vst [vmem:[%s3 + $0x4] sm:$0xf] %v507
  %524 = vst [vmem:[%s3 + $0x8] sm:$0xf] %v508
  %525 = vst [vmem:[%s3 + $0xc] sm:$0xf] %v509
  %526 = vst [vmem:[%s3 + $0x10] sm:$0xf] %v510
  %527 = vst [vmem:[%s3 + $0x14] sm:$0xf] %v511
  %528 = vst [vmem:[%s3 + $0x18] sm:$0xf] %v512
  %529 = vst [vmem:[%s3 + $0x1c] sm:$0xf] %v513
  // Predicated region
  $region14: #{crdecoder_forward.14} parent=0 // pred_check
    _
  $region15: #{crdecoder_forward.14} parent=0 // pred_check_branch
    %531 = sbr.rel (0) target = $region17
  $region16: #{crdecoder_forward.14} parent=0 // pred_region
    _
  $region17: #{crdecoder_forward.14} parent=0 // pred_fallthru
    _
  // Predicated region
  $region18: #{crdecoder_forward.14} parent=0 // pred_check
    _
  $region19: #{crdecoder_forward.14} parent=0 // pred_check_branch
    %533 = sbr.rel (0) target = $region21
  $region20: #{crdecoder_forward.14} parent=0 // pred_region
    _
  $region21: #{crdecoder_forward.14} parent=0 // pred_fallthru
    _

// kernel: crdecoder_forward.15
$region0: #{crdecoder_forward.15}
  #allocation0 [shape = 'u32[]', space=smem, size = 0x4, offset = 0x4, fixed_abs, tag = 'smem constant byte address 0x4 - core index']
  #allocation1 [shape = 'u32[144,128]{1,0:T(1,128)}', space=vmem, size = 0x12000, scoped, tag = 'internal scratch']
  %s0 = inlined_call_operand.vmem [shape: bf16[8,936], index: 0, kind: input, shape index: {}]
  %s1 = inlined_call_operand.vmem [shape: bf16[936,128], index: 1, kind: input, shape index: {}]
  %s2 = inlined_call_operand.vmem [shape: f32[8,1], index: 2, kind: input, shape index: {}]
  %s3 = inlined_call_operand.vmem [shape: bf16[8,104], index: 3, kind: input, shape index: {}]
  %s4 = inlined_call_operand.vmem [shape: bf16[104,128], index: 4, kind: input, shape index: {}]
  %s5 = inlined_call_operand.vmem [shape: bf16[8,8], index: 5, kind: input, shape index: {}]
  %s6 = inlined_call_operand.vmem [shape: f32[8,1], index: 6, kind: input, shape index: {}]
  %s7 = inlined_call_operand.vmem [shape: bf16[8,128], index: 7, kind: output, shape index: {}]
  %s8 = sld [smem:[#allocation0]]
  $region38: #{crdecoder_forward.15} parent=0
    _
  %s10 = ssub.s32 1, %s8
  %s11 = scalar_select 0, %s10, %s8
  // Predicated region
  $region2: #{crdecoder_forward.15} parent=0 // pred_check
    _
  $region3: #{crdecoder_forward.15} parent=0 // pred_check_branch
    %13 = sbr.rel (0) target = $region5
  $region4: #{crdecoder_forward.15} parent=0 // pred_region
    _
  $region5: #{crdecoder_forward.15} parent=0 // pred_fallthru
    _
  // Predicated region
  $region6: #{crdecoder_forward.15} parent=0 // pred_check
    _
  $region7: #{crdecoder_forward.15} parent=0 // pred_check_branch
    %15 = sbr.rel (0) target = $region9
  $region8: #{crdecoder_forward.15} parent=0 // pred_region
    _
  $region9: #{crdecoder_forward.15} parent=0 // pred_fallthru
    _
  // Predicated region
  $region10: #{crdecoder_forward.15} parent=0 // pred_check
    _
  $region11: #{crdecoder_forward.15} parent=0 // pred_check_branch
    %17 = sbr.rel (0) target = $region13
  $region12: #{crdecoder_forward.15} parent=0 // pred_region
    _
  $region13: #{crdecoder_forward.15} parent=0 // pred_fallthru
    _
  // Predicated region
  $region14: #{crdecoder_forward.15} parent=0 // pred_check
    _
  $region15: #{crdecoder_forward.15} parent=0 // pred_check_branch
    %19 = sbr.rel (0) target = $region17
  $region16: #{crdecoder_forward.15} parent=0 // pred_region
    _
  $region17: #{crdecoder_forward.15} parent=0 // pred_fallthru
    _
  // Predicated region
  $region18: #{crdecoder_forward.15} parent=0 // pred_check
    _
  $region19: #{crdecoder_forward.15} parent=0 // pred_check_branch
    %21 = sbr.rel (0) target = $region21
  $region20: #{crdecoder_forward.15} parent=0 // pred_region
    _
  $region21: #{crdecoder_forward.15} parent=0 // pred_fallthru
    _
  // Predicated region
  $region22: #{crdecoder_forward.15} parent=0 // pred_check
    _
  $region23: #{crdecoder_forward.15} parent=0 // pred_check_branch
    %23 = sbr.rel (0) target = $region25
  $region24: #{crdecoder_forward.15} parent=0 // pred_region
    _
  $region25: #{crdecoder_forward.15} parent=0 // pred_fallthru
    _
  // Predicated region
  $region26: #{crdecoder_forward.15} parent=0 // pred_check
    _
  $region27: #{crdecoder_forward.15} parent=0 // pred_check_branch
    %25 = sbr.rel (0) target = $region29
  $region28: #{crdecoder_forward.15} parent=0 // pred_region
    _
  $region29: #{crdecoder_forward.15} parent=0 // pred_fallthru
    _
  %v27 = vld [vmem:[%s0] sm:$0xff]
  %v28 = vld [vmem:[%s0 + $0x8] sm:$0xff]
  %v29 = vld [vmem:[%s0 + $0x10] sm:$0xff]
  %v30 = vld [vmem:[%s0 + $0x18] sm:$0xff]
  %v31 = vld [vmem:[%s1] sm:$0xf]
  %v32 = vld [vmem:[%s1 + $0x4] sm:$0xf]
  %v33 = vld [vmem:[%s1 + $0x8] sm:$0xf]
  %v34 = vld [vmem:[%s1 + $0xc] sm:$0xf]
  %v35 = vld [vmem:[%s1 + $0x10] sm:$0xf]
  %v36 = vld [vmem:[%s1 + $0x14] sm:$0xf]
  %v37 = vld [vmem:[%s1 + $0x18] sm:$0xf]
  %v38 = vld [vmem:[%s1 + $0x1c] sm:$0xf]
  %v39 = vld [vmem:[%s1 + $0x20] sm:$0xf]
  %v40 = vld [vmem:[%s1 + $0x24] sm:$0xf]
  %v41 = vld [vmem:[%s1 + $0x28] sm:$0xf]
  %v42 = vld [vmem:[%s1 + $0x2c] sm:$0xf]
  %v43 = vld [vmem:[%s1 + $0x30] sm:$0xf]
  %v44 = vld [vmem:[%s1 + $0x34] sm:$0xf]
  %v45 = vld [vmem:[%s1 + $0x38] sm:$0xf]
  %v46 = vld [vmem:[%s1 + $0x3c] sm:$0xf]
  %v47 = vld [vmem:[%s1 + $0x40] sm:$0xf]
  %v48 = vld [vmem:[%s1 + $0x44] sm:$0xf]
  %v49 = vld [vmem:[%s1 + $0x48] sm:$0xf]
  %v50 = vld [vmem:[%s1 + $0x4c] sm:$0xf]
  %v51 = vld [vmem:[%s1 + $0x50] sm:$0xf]
  %v52 = vld [vmem:[%s1 + $0x54] sm:$0xf]
  %v53 = vld [vmem:[%s1 + $0x58] sm:$0xf]
  %v54 = vld [vmem:[%s1 + $0x5c] sm:$0xf]
  %v55 = vld [vmem:[%s1 + $0x60] sm:$0xf]
  %v56 = vld [vmem:[%s1 + $0x64] sm:$0xf]
  %v57 = vld [vmem:[%s1 + $0x68] sm:$0xf]
  %v58 = vld [vmem:[%s1 + $0x6c] sm:$0xf]
  %v59 = vld [vmem:[%s1 + $0x70] sm:$0xf]
  %v60 = vld [vmem:[%s1 + $0x74] sm:$0xf]
  %v61 = vld [vmem:[%s1 + $0x78] sm:$0xf]
  %v62 = vld [vmem:[%s1 + $0x7c] sm:$0xf]
  %v63 = vld [vmem:[%s1 + $0x80] sm:$0xf]
  %v64 = vld [vmem:[%s1 + $0x84] sm:$0xf]
  %v65 = vld [vmem:[%s1 + $0x88] sm:$0xf]
  %v66 = vld [vmem:[%s1 + $0x8c] sm:$0xf]
  %v67 = vld [vmem:[%s1 + $0x90] sm:$0xf]
  %v68 = vld [vmem:[%s1 + $0x94] sm:$0xf]
  %v69 = vld [vmem:[%s1 + $0x98] sm:$0xf]
  %v70 = vld [vmem:[%s1 + $0x9c] sm:$0xf]
  %v71 = vld [vmem:[%s1 + $0xa0] sm:$0xf]
  %v72 = vld [vmem:[%s1 + $0xa4] sm:$0xf]
  %v73 = vld [vmem:[%s1 + $0xa8] sm:$0xf]
  %v74 = vld [vmem:[%s1 + $0xac] sm:$0xf]
  %v75 = vld [vmem:[%s1 + $0xb0] sm:$0xf]
  %v76 = vld [vmem:[%s1 + $0xb4] sm:$0xf]
  %v77 = vld [vmem:[%s1 + $0xb8] sm:$0xf]
  %v78 = vld [vmem:[%s1 + $0xbc] sm:$0xf]
  %v79 = vld [vmem:[%s1 + $0xc0] sm:$0xf]
  %v80 = vld [vmem:[%s1 + $0xc4] sm:$0xf]
  %v81 = vld [vmem:[%s1 + $0xc8] sm:$0xf]
  %v82 = vld [vmem:[%s1 + $0xcc] sm:$0xf]
  %v83 = vld [vmem:[%s1 + $0xd0] sm:$0xf]
  %v84 = vld [vmem:[%s1 + $0xd4] sm:$0xf]
  %v85 = vld [vmem:[%s1 + $0xd8] sm:$0xf]
  %v86 = vld [vmem:[%s1 + $0xdc] sm:$0xf]
  %v87 = vld [vmem:[%s1 + $0xe0] sm:$0xf]
  %v88 = vld [vmem:[%s1 + $0xe4] sm:$0xf]
  %v89 = vld [vmem:[%s1 + $0xe8] sm:$0xf]
  %v90 = vld [vmem:[%s1 + $0xec] sm:$0xf]
  %v91 = vld [vmem:[%s1 + $0xf0] sm:$0xf]
  %v92 = vld [vmem:[%s1 + $0xf4] sm:$0xf]
  %v93 = vld [vmem:[%s1 + $0xf8] sm:$0xf]
  %v94 = vld [vmem:[%s1 + $0xfc] sm:$0xf]
  %v95 = vld [vmem:[%s1 + $0x100] sm:$0xf]
  %v96 = vld [vmem:[%s1 + $0x104] sm:$0xf]
  %v97 = vld [vmem:[%s1 + $0x108] sm:$0xf]
  %v98 = vld [vmem:[%s1 + $0x10c] sm:$0xf]
  %v99 = vld [vmem:[%s1 + $0x110] sm:$0xf]
  %v100 = vld [vmem:[%s1 + $0x114] sm:$0xf]
  %v101 = vld [vmem:[%s1 + $0x118] sm:$0xf]
  %v102 = vld [vmem:[%s1 + $0x11c] sm:$0xf]
  %v103 = vld [vmem:[%s1 + $0x120] sm:$0xf]
  %v104 = vld [vmem:[%s1 + $0x124] sm:$0xf]
  %v105 = vld [vmem:[%s1 + $0x128] sm:$0xf]
  %v106 = vld [vmem:[%s1 + $0x12c] sm:$0xf]
  %v107 = vld [vmem:[%s1 + $0x130] sm:$0xf]
  %v108 = vld [vmem:[%s1 + $0x134] sm:$0xf]
  %v109 = vld [vmem:[%s1 + $0x138] sm:$0xf]
  %v110 = vld [vmem:[%s1 + $0x13c] sm:$0xf]
  %v111 = vld [vmem:[%s1 + $0x140] sm:$0xf]
  %v112 = vld [vmem:[%s1 + $0x144] sm:$0xf]
  %v113 = vld [vmem:[%s1 + $0x148] sm:$0xf]
  %v114 = vld [vmem:[%s1 + $0x14c] sm:$0xf]
  %v115 = vld [vmem:[%s1 + $0x150] sm:$0xf]
  %v116 = vld [vmem:[%s1 + $0x154] sm:$0xf]
  %v117 = vld [vmem:[%s1 + $0x158] sm:$0xf]
  %v118 = vld [vmem:[%s1 + $0x15c] sm:$0xf]
  %v119 = vld [vmem:[%s1 + $0x160] sm:$0xf]
  %v120 = vld [vmem:[%s1 + $0x164] sm:$0xf]
  %v121 = vld [vmem:[%s1 + $0x168] sm:$0xf]
  %v122 = vld [vmem:[%s1 + $0x16c] sm:$0xf]
  %v123 = vld [vmem:[%s1 + $0x170] sm:$0xf]
  %v124 = vld [vmem:[%s1 + $0x174] sm:$0xf]
  %v125 = vld [vmem:[%s1 + $0x178] sm:$0xf]
  %v126 = vld [vmem:[%s1 + $0x17c] sm:$0xf]
  %v127 = vld [vmem:[%s1 + $0x180] sm:$0xf]
  %v128 = vld [vmem:[%s1 + $0x184] sm:$0xf]
  %v129 = vld [vmem:[%s1 + $0x188] sm:$0xf]
  %v130 = vld [vmem:[%s1 + $0x18c] sm:$0xf]
  %v131 = vld [vmem:[%s1 + $0x190] sm:$0xf]
  %v132 = vld [vmem:[%s1 + $0x194] sm:$0xf]
  %v133 = vld [vmem:[%s1 + $0x198] sm:$0xf]
  %v134 = vld [vmem:[%s1 + $0x19c] sm:$0xf]
  %v135 = vld [vmem:[%s1 + $0x1a0] sm:$0xf]
  %v136 = vld [vmem:[%s1 + $0x1a4] sm:$0xf]
  %v137 = vld [vmem:[%s1 + $0x1a8] sm:$0xf]
  %v138 = vld [vmem:[%s1 + $0x1ac] sm:$0xf]
  %v139 = vld [vmem:[%s1 + $0x1b0] sm:$0xf]
  %v140 = vld [vmem:[%s1 + $0x1b4] sm:$0xf]
  %v141 = vld [vmem:[%s1 + $0x1b8] sm:$0xf]
  %v142 = vld [vmem:[%s1 + $0x1bc] sm:$0xf]
  %v143 = vld [vmem:[%s1 + $0x1c0] sm:$0xf]
  %v144 = vld [vmem:[%s1 + $0x1c4] sm:$0xf]
  %v145 = vld [vmem:[%s1 + $0x1c8] sm:$0xf]
  %v146 = vld [vmem:[%s1 + $0x1cc] sm:$0xf]
  %v147 = vld [vmem:[%s1 + $0x1d0] sm:$0xf]
  %v148 = vld [vmem:[%s2] sm:$0xff]
  %150 = vset.pattern.permute.xlu0 0
  %151 = vperm.xlu0 %150, %v148
  %v152 = vpop.permute.xlu0 %151
  %v158 = vunpack.c.l.b16 %v27
  %v159 = vunpack.c.h.b16 %v27
  %v160 = vunpack.c.l.b16 %v28
  %v161 = vunpack.c.h.b16 %v28
  %v162 = vunpack.c.l.b16 %v29
  %v163 = vunpack.c.h.b16 %v29
  %v164 = vunpack.c.l.b16 %v30
  %v165 = vunpack.c.h.b16 %v30
  %v166 = vpack.c.b16 %v158, %v158
  %v167 = vpack.c.b16 %v159, %v159
  %v168 = vpack.c.b16 %v160, %v160
  %v169 = vpack.c.b16 %v161, %v161
  %v170 = vpack.c.b16 %v162, %v162
  %v171 = vpack.c.b16 %v163, %v163
  %v172 = vpack.c.b16 %v164, %v164
  %v173 = vpack.c.b16 %v165, %v165
  %v298 = vunpack.c.l.b16 %v31
  %v299 = vunpack.c.l.b16 %v32
  %v300 = vunpack.c.l.b16 %v33
  %v301 = vunpack.c.l.b16 %v34
  %v302 = vunpack.c.l.b16 %v35
  %v303 = vunpack.c.l.b16 %v36
  %v304 = vunpack.c.l.b16 %v37
  %v305 = vunpack.c.l.b16 %v38
  %v306 = vunpack.c.l.b16 %v39
  %v307 = vunpack.c.l.b16 %v40
  %v308 = vunpack.c.l.b16 %v41
  %v309 = vunpack.c.l.b16 %v42
  %v310 = vunpack.c.l.b16 %v43
  %v311 = vunpack.c.l.b16 %v44
  %v312 = vunpack.c.l.b16 %v45
  %v313 = vunpack.c.l.b16 %v46
  %v314 = vunpack.c.l.b16 %v47
  %v315 = vunpack.c.l.b16 %v48
  %v316 = vunpack.c.l.b16 %v49
  %v317 = vunpack.c.l.b16 %v50
  %v318 = vunpack.c.l.b16 %v51
  %v319 = vunpack.c.l.b16 %v52
  %v320 = vunpack.c.l.b16 %v53
  %v321 = vunpack.c.l.b16 %v54
  %v322 = vunpack.c.l.b16 %v55
  %v323 = vunpack.c.l.b16 %v56
  %v324 = vunpack.c.l.b16 %v57
  %v325 = vunpack.c.l.b16 %v58
  %v326 = vunpack.c.l.b16 %v59
  %v327 = vunpack.c.l.b16 %v60
  %v328 = vunpack.c.l.b16 %v61
  %v329 = vunpack.c.l.b16 %v62
  %v330 = vunpack.c.l.b16 %v63
  %v331 = vunpack.c.l.b16 %v64
  %v332 = vunpack.c.l.b16 %v65
  %v333 = vunpack.c.l.b16 %v66
  %v334 = vunpack.c.l.b16 %v67
  %v335 = vunpack.c.l.b16 %v68
  %v336 = vunpack.c.l.b16 %v69
  %v337 = vunpack.c.l.b16 %v70
  %v338 = vunpack.c.l.b16 %v71
  %v339 = vunpack.c.l.b16 %v72
  %v340 = vunpack.c.l.b16 %v73
  %v341 = vunpack.c.l.b16 %v74
  %v342 = vunpack.c.l.b16 %v75
  %v343 = vunpack.c.l.b16 %v76
  %v344 = vunpack.c.l.b16 %v77
  %v345 = vunpack.c.l.b16 %v78
  %v346 = vunpack.c.l.b16 %v79
  %v347 = vunpack.c.l.b16 %v80
  %v348 = vunpack.c.l.b16 %v81
  %v349 = vunpack.c.l.b16 %v82
  %v350 = vunpack.c.l.b16 %v83
  %v351 = vunpack.c.l.b16 %v84
  %v352 = vunpack.c.l.b16 %v85
  %v353 = vunpack.c.l.b16 %v86
  %v354 = vunpack.c.l.b16 %v87
  %v355 = vunpack.c.l.b16 %v88
  %v356 = vunpack.c.l.b16 %v89
  %v357 = vunpack.c.l.b16 %v90
  %v358 = vunpack.c.l.b16 %v91
  %v359 = vunpack.c.l.b16 %v92
  %v360 = vunpack.c.l.b16 %v93
  %v361 = vunpack.c.l.b16 %v94
  %v362 = vunpack.c.l.b16 %v95
  %v363 = vunpack.c.l.b16 %v96
  %v364 = vunpack.c.l.b16 %v97
  %v365 = vunpack.c.l.b16 %v98
  %v366 = vunpack.c.l.b16 %v99
  %v367 = vunpack.c.l.b16 %v100
  %v368 = vunpack.c.l.b16 %v101
  %v369 = vunpack.c.l.b16 %v102
  %v370 = vunpack.c.l.b16 %v103
  %v371 = vunpack.c.l.b16 %v104
  %v372 = vunpack.c.l.b16 %v105
  %v373 = vunpack.c.l.b16 %v106
  %v374 = vunpack.c.l.b16 %v107
  %v375 = vunpack.c.l.b16 %v108
  %v376 = vunpack.c.l.b16 %v109
  %v377 = vunpack.c.l.b16 %v110
  %v378 = vunpack.c.l.b16 %v111
  %v379 = vunpack.c.l.b16 %v112
  %v380 = vunpack.c.l.b16 %v113
  %v381 = vunpack.c.l.b16 %v114
  %v382 = vunpack.c.l.b16 %v115
  %v383 = vunpack.c.l.b16 %v116
  %v384 = vunpack.c.l.b16 %v117
  %v385 = vunpack.c.l.b16 %v118
  %v386 = vunpack.c.l.b16 %v119
  %v387 = vunpack.c.l.b16 %v120
  %v388 = vunpack.c.l.b16 %v121
  %v389 = vunpack.c.l.b16 %v122
  %v390 = vunpack.c.l.b16 %v123
  %v391 = vunpack.c.l.b16 %v124
  %v392 = vunpack.c.l.b16 %v125
  %v393 = vunpack.c.l.b16 %v126
  %v394 = vunpack.c.l.b16 %v127
  %v395 = vunpack.c.l.b16 %v128
  %v396 = vunpack.c.l.b16 %v129
  %v397 = vunpack.c.l.b16 %v130
  %v398 = vunpack.c.l.b16 %v131
  %v399 = vunpack.c.l.b16 %v132
  %v400 = vunpack.c.l.b16 %v133
  %v401 = vunpack.c.l.b16 %v134
  %v402 = vunpack.c.l.b16 %v135
  %v403 = vunpack.c.l.b16 %v136
  %v404 = vunpack.c.l.b16 %v137
  %v405 = vunpack.c.l.b16 %v138
  %v406 = vunpack.c.l.b16 %v139
  %v407 = vunpack.c.l.b16 %v140
  %v408 = vunpack.c.l.b16 %v141
  %v409 = vunpack.c.l.b16 %v142
  %v410 = vunpack.c.l.b16 %v143
  %v411 = vunpack.c.l.b16 %v144
  %v412 = vunpack.c.l.b16 %v145
  %v413 = vunpack.c.l.b16 %v146
  %v414 = vunpack.c.l.b16 %v147
  %v415 = vpack.c.b16 %v299, %v298
  %v416 = vpack.c.b16 %v301, %v300
  %v417 = vpack.c.b16 %v303, %v302
  %v418 = vpack.c.b16 %v305, %v304
  %v419 = vpack.c.b16 %v307, %v306
  %v420 = vpack.c.b16 %v309, %v308
  %v421 = vpack.c.b16 %v311, %v310
  %v422 = vpack.c.b16 %v313, %v312
  %v423 = vpack.c.b16 %v315, %v314
  %v424 = vpack.c.b16 %v317, %v316
  %v425 = vpack.c.b16 %v319, %v318
  %v426 = vpack.c.b16 %v321, %v320
  %v427 = vpack.c.b16 %v323, %v322
  %v428 = vpack.c.b16 %v325, %v324
  %v429 = vpack.c.b16 %v327, %v326
  %v430 = vpack.c.b16 %v329, %v328
  %v431 = vpack.c.b16 %v331, %v330
  %v432 = vpack.c.b16 %v333, %v332
  %v433 = vpack.c.b16 %v335, %v334
  %v434 = vpack.c.b16 %v337, %v336
  %v435 = vpack.c.b16 %v339, %v338
  %v436 = vpack.c.b16 %v341, %v340
  %v437 = vpack.c.b16 %v343, %v342
  %v438 = vpack.c.b16 %v345, %v344
  %v439 = vpack.c.b16 %v347, %v346
  %v440 = vpack.c.b16 %v349, %v348
  %v441 = vpack.c.b16 %v351, %v350
  %v442 = vpack.c.b16 %v353, %v352
  %v443 = vpack.c.b16 %v355, %v354
  %v444 = vpack.c.b16 %v357, %v356
  %v445 = vpack.c.b16 %v359, %v358
  %v446 = vpack.c.b16 %v361, %v360
  %v447 = vpack.c.b16 %v363, %v362
  %v448 = vpack.c.b16 %v365, %v364
  %v449 = vpack.c.b16 %v367, %v366
  %v450 = vpack.c.b16 %v369, %v368
  %v451 = vpack.c.b16 %v371, %v370
  %v452 = vpack.c.b16 %v373, %v372
  %v453 = vpack.c.b16 %v375, %v374
  %v454 = vpack.c.b16 %v377, %v376
  %v455 = vpack.c.b16 %v379, %v378
  %v456 = vpack.c.b16 %v381, %v380
  %v457 = vpack.c.b16 %v383, %v382
  %v458 = vpack.c.b16 %v385, %v384
  %v459 = vpack.c.b16 %v387, %v386
  %v460 = vpack.c.b16 %v389, %v388
  %v461 = vpack.c.b16 %v391, %v390
  %v462 = vpack.c.b16 %v393, %v392
  %v463 = vpack.c.b16 %v395, %v394
  %v464 = vpack.c.b16 %v397, %v396
  %v465 = vpack.c.b16 %v399, %v398
  %v466 = vpack.c.b16 %v401, %v400
  %v467 = vpack.c.b16 %v403, %v402
  %v468 = vpack.c.b16 %v405, %v404
  %v469 = vpack.c.b16 %v407, %v406
  %v470 = vpack.c.b16 %v409, %v408
  %v471 = vpack.c.b16 %v411, %v410
  %v472 = vpack.c.b16 %v413, %v412
  %v473 = vpack.c.b16 %v414, %v414
  %vm532 = vcmask 326656
  %v534 = vsel %vm532, %v173, 0
  %vm536 = vcmask 1043456
  %v538 = vsel %vm536, %v473, 0
  %540 = vmatprep.subr.bf16.mxu0 0
  %541 = vmatpush1.bf16.msra.mxu0 %v415
  %542 = vmatprep.subr.bf16.mxu0 0
  %543 = vmatpush1.bf16.msra.mxu0 %v416
  %544 = vmatprep.subr.bf16.mxu0 0
  %545 = vmatpush1.bf16.msra.mxu0 %v417
  %546 = vmatprep.subr.bf16.mxu0 0
  %547 = vmatpush1.bf16.msra.mxu0 %v418
  %548 = vmatprep.subr.bf16.mxu0 0
  %549 = vmatpush1.bf16.msra.mxu0 %v419
  %550 = vmatprep.subr.bf16.mxu0 0
  %551 = vmatpush1.bf16.msra.mxu0 %v420
  %552 = vmatprep.subr.bf16.mxu0 0
  %553 = vmatpush1.bf16.msra.mxu0 %v421
  %554 = vmatprep.subr.bf16.mxu0 0
  %555 = vmatpush1.bf16.msra.mxu0 %v422
  %556 = vmatprep.subr.bf16.mxu0 0
  %557 = vmatpush1.bf16.msra.mxu0 %v423
  %558 = vmatprep.subr.bf16.mxu0 0
  %559 = vmatpush1.bf16.msra.mxu0 %v424
  %560 = vmatprep.subr.bf16.mxu0 0
  %561 = vmatpush1.bf16.msra.mxu0 %v425
  %562 = vmatprep.subr.bf16.mxu0 0
  %563 = vmatpush1.bf16.msra.mxu0 %v426
  %564 = vmatprep.subr.bf16.mxu0 0
  %565 = vmatpush1.bf16.msra.mxu0 %v427
  %566 = vmatprep.subr.bf16.mxu0 0
  %567 = vmatpush1.bf16.msra.mxu0 %v428
  %568 = vmatprep.subr.bf16.mxu0 0
  %569 = vmatpush1.bf16.msra.mxu0 %v429
  %570 = vmatprep.subr.bf16.mxu0 0
  %571 = vmatpush1.bf16.msra.mxu0 %v430
  %572 = vmatprep.mubr.bf16.mxu0 %v167
  %573 = vmatmul.mubr.bf16.gmra.mrb[0].mxu0 %v166
  %v574 = vpop.f32.mrb[0].mxu0
  %v575 = vadd.f32 %v152, %v574
  %v576 = vpop.f32.mrb[0].mxu0
  %v577 = vpop.f32.mrb[0].mxu0
  %v578 = vpop.f32.mrb[0].mxu0
  %579 = vdwg.mxu0
  %580 = vmatprep.subr.bf16.mxu0 0
  %581 = vmatpush1.bf16.msra.mxu0 %v431
  %582 = vmatprep.subr.bf16.mxu0 0
  %583 = vmatpush1.bf16.msra.mxu0 %v432
  %584 = vmatprep.subr.bf16.mxu0 0
  %585 = vmatpush1.bf16.msra.mxu0 %v433
  %586 = vmatprep.subr.bf16.mxu0 0
  %587 = vmatpush1.bf16.msra.mxu0 %v434
  %588 = vmatprep.subr.bf16.mxu0 0
  %589 = vmatpush1.bf16.msra.mxu0 %v435
  %590 = vmatprep.subr.bf16.mxu0 0
  %591 = vmatpush1.bf16.msra.mxu0 %v436
  %592 = vmatprep.subr.bf16.mxu0 0
  %593 = vmatpush1.bf16.msra.mxu0 %v437
  %594 = vmatprep.subr.bf16.mxu0 0
  %595 = vmatpush1.bf16.msra.mxu0 %v438
  %596 = vmatprep.subr.bf16.mxu0 0
  %597 = vmatpush1.bf16.msra.mxu0 %v439
  %598 = vmatprep.subr.bf16.mxu0 0
  %599 = vmatpush1.bf16.msra.mxu0 %v440
  %600 = vmatprep.subr.bf16.mxu0 0
  %601 = vmatpush1.bf16.msra.mxu0 %v441
  %602 = vmatprep.subr.bf16.mxu0 0
  %603 = vmatpush1.bf16.msra.mxu0 %v442
  %604 = vmatprep.subr.bf16.mxu0 0
  %605 = vmatpush1.bf16.msra.mxu0 %v443
  %606 = vmatprep.subr.bf16.mxu0 0
  %607 = vmatpush1.bf16.msra.mxu0 %v444
  %608 = vmatprep.subr.bf16.mxu0 0
  %609 = vmatpush1.bf16.msra.mxu0 %v445
  %610 = vmatprep.subr.bf16.mxu0 0
  %611 = vmatpush1.bf16.msra.mxu0 %v446
  %612 = vmatprep.mubr.bf16.mxu0 %v169
  %613 = vmatmul.mubr.bf16.gmra.mrb[0].mxu0 %v168
  %v614 = vpop.f32.mrb[0].mxu0
  %v615 = vadd.f32 %v575, %v614
  %v616 = vpop.f32.mrb[0].mxu0
  %v617 = vpop.f32.mrb[0].mxu0
  %v618 = vpop.f32.mrb[0].mxu0
  %619 = vdwg.mxu0
  %620 = vmatprep.subr.bf16.mxu0 0
  %621 = vmatpush1.bf16.msra.mxu0 %v447
  %622 = vmatprep.subr.bf16.mxu0 0
  %623 = vmatpush1.bf16.msra.mxu0 %v448
  %624 = vmatprep.subr.bf16.mxu0 0
  %625 = vmatpush1.bf16.msra.mxu0 %v449
  %626 = vmatprep.subr.bf16.mxu0 0
  %627 = vmatpush1.bf16.msra.mxu0 %v450
  %628 = vmatprep.subr.bf16.mxu0 0
  %629 = vmatpush1.bf16.msra.mxu0 %v451
  %630 = vmatprep.subr.bf16.mxu0 0
  %631 = vmatpush1.bf16.msra.mxu0 %v452
  %632 = vmatprep.subr.bf16.mxu0 0
  %633 = vmatpush1.bf16.msra.mxu0 %v453
  %634 = vmatprep.subr.bf16.mxu0 0
  %635 = vmatpush1.bf16.msra.mxu0 %v454
  %636 = vmatprep.subr.bf16.mxu0 0
  %637 = vmatpush1.bf16.msra.mxu0 %v455
  %638 = vmatprep.subr.bf16.mxu0 0
  %639 = vmatpush1.bf16.msra.mxu0 %v456
  %640 = vmatprep.subr.bf16.mxu0 0
  %641 = vmatpush1.bf16.msra.mxu0 %v457
  %642 = vmatprep.subr.bf16.mxu0 0
  %643 = vmatpush1.bf16.msra.mxu0 %v458
  %644 = vmatprep.subr.bf16.mxu0 0
  %645 = vmatpush1.bf16.msra.mxu0 %v459
  %646 = vmatprep.subr.bf16.mxu0 0
  %647 = vmatpush1.bf16.msra.mxu0 %v460
  %648 = vmatprep.subr.bf16.mxu0 0
  %649 = vmatpush1.bf16.msra.mxu0 %v461
  %650 = vmatprep.subr.bf16.mxu0 0
  %651 = vmatpush1.bf16.msra.mxu0 %v462
  %652 = vmatprep.mubr.bf16.mxu0 %v171
  %653 = vmatmul.mubr.bf16.gmra.mrb[0].mxu0 %v170
  %v654 = vpop.f32.mrb[0].mxu0
  %v655 = vadd.f32 %v615, %v654
  %v656 = vpop.f32.mrb[0].mxu0
  %v657 = vpop.f32.mrb[0].mxu0
  %v658 = vpop.f32.mrb[0].mxu0
  %659 = vdwg.mxu0
  %660 = vmatprep.subr.bf16.mxu0 0
  %661 = vmatpush1.bf16.msra.mxu0 %v463
  %662 = vmatprep.subr.bf16.mxu0 0
  %663 = vmatpush1.bf16.msra.mxu0 %v464
  %664 = vmatprep.subr.bf16.mxu0 0
  %665 = vmatpush1.bf16.msra.mxu0 %v465
  %666 = vmatprep.subr.bf16.mxu0 0
  %667 = vmatpush1.bf16.msra.mxu0 %v466
  %668 = vmatprep.subr.bf16.mxu0 0
  %669 = vmatpush1.bf16.msra.mxu0 %v467
  %670 = vmatprep.subr.bf16.mxu0 0
  %671 = vmatpush1.bf16.msra.mxu0 %v468
  %672 = vmatprep.subr.bf16.mxu0 0
  %673 = vmatpush1.bf16.msra.mxu0 %v469
  %674 = vmatprep.subr.bf16.mxu0 0
  %675 = vmatpush1.bf16.msra.mxu0 %v470
  %676 = vmatprep.subr.bf16.mxu0 0
  %677 = vmatpush1.bf16.msra.mxu0 %v471
  %678 = vmatprep.subr.bf16.mxu0 0
  %679 = vmatpush1.bf16.msra.mxu0 %v472
  %680 = vmatprep.subr.bf16.mxu0 0
  %681 = vmatpush1.bf16.msra.mxu0 %v538
  %682 = vmatprep.subr.bf16.mxu0 0
  %683 = vmatpush1.bf16.msra.mxu0 0
  %684 = vmatprep.subr.bf16.mxu0 0
  %685 = vmatpush1.bf16.msra.mxu0 0
  %686 = vmatprep.subr.bf16.mxu0 0
  %687 = vmatpush1.bf16.msra.mxu0 0
  %688 = vmatprep.subr.bf16.mxu0 0
  %689 = vmatpush1.bf16.msra.mxu0 0
  %690 = vmatprep.subr.bf16.mxu0 0
  %691 = vmatpush1.bf16.msra.mxu0 0
  %692 = vmatprep.mubr.bf16.mxu0 %v534
  %693 = vmatmul.mubr.bf16.gmra.mrb[0].mxu0 %v172
  %v694 = vpop.f32.mrb[0].mxu0
  %v695 = vadd.f32 %v655, %v694
  %v696 = vpop.f32.mrb[0].mxu0
  %v697 = vpop.f32.mrb[0].mxu0
  %v698 = vpop.f32.mrb[0].mxu0
  %699 = vdwg.mxu0
  %vm700 = vcmp.ge.f32.partialorder %v695, 0.0
  %v701 = vmul.f32 %v695, 0.01
  %v702 = vsel %vm700, %v695, %v701
  %v703 = vld [vmem:[%s3] sm:$0xf]
  %v704 = vld [vmem:[%s4] sm:$0xf]
  %v705 = vld [vmem:[%s4 + $0x4] sm:$0xf]
  %v706 = vld [vmem:[%s4 + $0x8] sm:$0xf]
  %v707 = vld [vmem:[%s4 + $0xc] sm:$0xf]
  %v708 = vld [vmem:[%s4 + $0x10] sm:$0xf]
  %v709 = vld [vmem:[%s4 + $0x14] sm:$0xf]
  %v710 = vld [vmem:[%s4 + $0x18] sm:$0xf]
  %v711 = vld [vmem:[%s4 + $0x1c] sm:$0xf]
  %v712 = vld [vmem:[%s4 + $0x20] sm:$0xf]
  %v713 = vld [vmem:[%s4 + $0x24] sm:$0xf]
  %v714 = vld [vmem:[%s4 + $0x28] sm:$0xf]
  %v715 = vld [vmem:[%s4 + $0x2c] sm:$0xf]
  %v716 = vld [vmem:[%s4 + $0x30] sm:$0xf]
  %v717 = vld [vmem:[%s5] sm:$0xf]
  %v718 = vpack.c.bf16 %v702, %v702
  %vm719 = vcmask 64512
  %v721 = vsel %vm719, %v717, 0
  %v724 = vsel %vm536, %v718, 0
  %726 = vmatprep.subr.bf16.mxu0 0
  %727 = vmatpush1.bf16.msra.mxu0 %v724
  %728 = vmatprep.subr.bf16.mxu0 0
  %729 = vmatpush1.bf16.msra.mxu0 0
  %730 = vmatprep.subr.bf16.mxu0 0
  %731 = vmatpush1.bf16.msra.mxu0 0
  %732 = vmatprep.subr.bf16.mxu0 0
  %733 = vmatpush1.bf16.msra.mxu0 0
  %734 = vmatprep.subr.bf16.mxu0 0
  %735 = vmatpush1.bf16.msra.mxu0 0
  %736 = vmatprep.subr.bf16.mxu0 0
  %737 = vmatpush1.bf16.msra.mxu0 0
  %738 = vmatprep.subr.bf16.mxu0 0
  %739 = vmatpush1.bf16.msra.mxu0 0
  %740 = vmatprep.subr.bf16.mxu0 0
  %741 = vmatpush1.bf16.msra.mxu0 0
  %742 = vmatprep.subr.bf16.mxu0 0
  %743 = vmatpush1.bf16.msra.mxu0 0
  %744 = vmatprep.subr.bf16.mxu0 0
  %745 = vmatpush1.bf16.msra.mxu0 0
  %746 = vmatprep.subr.bf16.mxu0 0
  %747 = vmatpush1.bf16.msra.mxu0 0
  %748 = vmatprep.subr.bf16.mxu0 0
  %749 = vmatpush1.bf16.msra.mxu0 0
  %750 = vmatprep.subr.bf16.mxu0 0
  %751 = vmatpush1.bf16.msra.mxu0 0
  %752 = vmatprep.subr.bf16.mxu0 0
  %753 = vmatpush1.bf16.msra.mxu0 0
  %754 = vmatprep.subr.bf16.mxu0 0
  %755 = vmatpush1.bf16.msra.mxu0 0
  %756 = vmatprep.subr.bf16.mxu0 0
  %757 = vmatpush1.bf16.msra.mxu0 0
  %758 = vmatprep.mubr.bf16.mxu0 0
  %759 = vmatmul.mubr.bf16.gmra.mrb[0].mxu0 %v721
  %v760 = vpop.f32.mrb[0].mxu0
  %v761 = vadd.f32 0.0, %v760
  %v762 = vpop.f32.mrb[0].mxu0
  %v763 = vpop.f32.mrb[0].mxu0
  %v764 = vpop.f32.mrb[0].mxu0
  %765 = vdwg.mxu0
  %v779 = vunpack.c.l.b16 %v704
  %v780 = vunpack.c.l.b16 %v705
  %v781 = vunpack.c.l.b16 %v706
  %v782 = vunpack.c.l.b16 %v707
  %v783 = vunpack.c.l.b16 %v708
  %v784 = vunpack.c.l.b16 %v709
  %v785 = vunpack.c.l.b16 %v710
  %v786 = vunpack.c.l.b16 %v711
  %v787 = vunpack.c.l.b16 %v712
  %v788 = vunpack.c.l.b16 %v713
  %v789 = vunpack.c.l.b16 %v714
  %v790 = vunpack.c.l.b16 %v715
  %v791 = vunpack.c.l.b16 %v716
  %v792 = vpack.c.b16 %v780, %v779
  %v793 = vpack.c.b16 %v782, %v781
  %v794 = vpack.c.b16 %v784, %v783
  %v795 = vpack.c.b16 %v786, %v785
  %v796 = vpack.c.b16 %v788, %v787
  %v797 = vpack.c.b16 %v790, %v789
  %v798 = vpack.c.b16 %v791, %v791
  %vm805 = vcmask 850944
  %v807 = vsel %vm805, %v703, 0
  %v810 = vsel %vm536, %v798, 0
  %812 = vmatprep.subr.bf16.mxu0 0
  %813 = vmatpush1.bf16.msra.mxu0 %v792
  %814 = vmatprep.subr.bf16.mxu0 0
  %815 = vmatpush1.bf16.msra.mxu0 %v793
  %816 = vmatprep.subr.bf16.mxu0 0
  %817 = vmatpush1.bf16.msra.mxu0 %v794
  %818 = vmatprep.subr.bf16.mxu0 0
  %819 = vmatpush1.bf16.msra.mxu0 %v795
  %820 = vmatprep.subr.bf16.mxu0 0
  %821 = vmatpush1.bf16.msra.mxu0 %v796
  %822 = vmatprep.subr.bf16.mxu0 0
  %823 = vmatpush1.bf16.msra.mxu0 %v797
  %824 = vmatprep.subr.bf16.mxu0 0
  %825 = vmatpush1.bf16.msra.mxu0 %v810
  %826 = vmatprep.subr.bf16.mxu0 0
  %827 = vmatpush1.bf16.msra.mxu0 0
  %828 = vmatprep.subr.bf16.mxu0 0
  %829 = vmatpush1.bf16.msra.mxu0 0
  %830 = vmatprep.subr.bf16.mxu0 0
  %831 = vmatpush1.bf16.msra.mxu0 0
  %832 = vmatprep.subr.bf16.mxu0 0
  %833 = vmatpush1.bf16.msra.mxu0 0
  %834 = vmatprep.subr.bf16.mxu0 0
  %835 = vmatpush1.bf16.msra.mxu0 0
  %836 = vmatprep.subr.bf16.mxu0 0
  %837 = vmatpush1.bf16.msra.mxu0 0
  %838 = vmatprep.subr.bf16.mxu0 0
  %839 = vmatpush1.bf16.msra.mxu0 0
  %840 = vmatprep.subr.bf16.mxu0 0
  %841 = vmatpush1.bf16.msra.mxu0 0
  %842 = vmatprep.subr.bf16.mxu0 0
  %843 = vmatpush1.bf16.msra.mxu0 0
  %844 = vmatprep.mubr.bf16.mxu0 0
  %845 = vmatmul.mubr.bf16.gmra.mrb[0].mxu0 %v807
  %v846 = vpop.f32.mrb[0].mxu0
  %v847 = vadd.f32 %v761, %v846
  %v848 = vpop.f32.mrb[0].mxu0
  %v849 = vpop.f32.mrb[0].mxu0
  %v850 = vpop.f32.mrb[0].mxu0
  %851 = vdwg.mxu0
  %v852 = vld [vmem:[%s6] sm:$0xff]
  %854 = vset.pattern.permute.xlu0 0
  %855 = vperm.xlu0 %854, %v852
  %v856 = vpop.permute.xlu0 %855
  %v858 = vadd.f32 %v847, %v856
  %vm859 = vcmp.ge.f32.partialorder %v858, 0.0
  %v860 = vmul.f32 %v858, 0.01
  %v861 = vsel %vm859, %v858, %v860
  %v862 = vpack.c.bf16 %v861, %v861
  %863 = vst [vmem:[%s7] sm:$0xf] %v862
  // Predicated region
  $region30: #{crdecoder_forward.15} parent=0 // pred_check
    _
  $region31: #{crdecoder_forward.15} parent=0 // pred_check_branch
    %865 = sbr.rel (0) target = $region33
  $region32: #{crdecoder_forward.15} parent=0 // pred_region
    _
  $region33: #{crdecoder_forward.15} parent=0 // pred_fallthru
    _
  // Predicated region
  $region34: #{crdecoder_forward.15} parent=0 // pred_check
    _
  $region35: #{crdecoder_forward.15} parent=0 // pred_check_branch
    %867 = sbr.rel (0) target = $region37
  $region36: #{crdecoder_forward.15} parent=0 // pred_region
    _
  $region37: #{crdecoder_forward.15} parent=0 // pred_fallthru
    _

// kernel: crdecoder_forward.19
$region0: #{crdecoder_forward.19}
  #allocation0 [shape = 'u32[]', space=smem, size = 0x4, offset = 0x4, fixed_abs, tag = 'smem constant byte address 0x4 - core index']
  #allocation1 [shape = 'u32[144,128]{1,0:T(1,128)}', space=vmem, size = 0x12000, scoped, tag = 'internal scratch']
  %s0 = inlined_call_operand.vmem [shape: bf16[8,72], index: 0, kind: input, shape index: {}]
  %s1 = inlined_call_operand.vmem [shape: bf16[72,128], index: 1, kind: input, shape index: {}]
  %s2 = inlined_call_operand.vmem [shape: f32[8,1], index: 2, kind: input, shape index: {}]
  %s3 = inlined_call_operand.vmem [shape: bf16[8,8], index: 3, kind: input, shape index: {}]
  %s4 = inlined_call_operand.vmem [shape: f32[8,1], index: 4, kind: input, shape index: {}]
  %s5 = inlined_call_operand.vmem [shape: f32[8,128], index: 5, kind: output, shape index: {}]
  %s6 = sld [smem:[#allocation0]]
  $region30: #{crdecoder_forward.19} parent=0
    _
  %s8 = ssub.s32 1, %s6
  %s9 = scalar_select 0, %s8, %s6
  // Predicated region
  $region2: #{crdecoder_forward.19} parent=0 // pred_check
    _
  $region3: #{crdecoder_forward.19} parent=0 // pred_check_branch
    %11 = sbr.rel (0) target = $region5
  $region4: #{crdecoder_forward.19} parent=0 // pred_region
    _
  $region5: #{crdecoder_forward.19} parent=0 // pred_fallthru
    _
  // Predicated region
  $region6: #{crdecoder_forward.19} parent=0 // pred_check
    _
  $region7: #{crdecoder_forward.19} parent=0 // pred_check_branch
    %13 = sbr.rel (0) target = $region9
  $region8: #{crdecoder_forward.19} parent=0 // pred_region
    _
  $region9: #{crdecoder_forward.19} parent=0 // pred_fallthru
    _
  // Predicated region
  $region10: #{crdecoder_forward.19} parent=0 // pred_check
    _
  $region11: #{crdecoder_forward.19} parent=0 // pred_check_branch
    %15 = sbr.rel (0) target = $region13
  $region12: #{crdecoder_forward.19} parent=0 // pred_region
    _
  $region13: #{crdecoder_forward.19} parent=0 // pred_fallthru
    _
  // Predicated region
  $region14: #{crdecoder_forward.19} parent=0 // pred_check
    _
  $region15: #{crdecoder_forward.19} parent=0 // pred_check_branch
    %17 = sbr.rel (0) target = $region17
  $region16: #{crdecoder_forward.19} parent=0 // pred_region
    _
  $region17: #{crdecoder_forward.19} parent=0 // pred_fallthru
    _
  // Predicated region
  $region18: #{crdecoder_forward.19} parent=0 // pred_check
    _
  $region19: #{crdecoder_forward.19} parent=0 // pred_check_branch
    %19 = sbr.rel (0) target = $region21
  $region20: #{crdecoder_forward.19} parent=0 // pred_region
    _
  $region21: #{crdecoder_forward.19} parent=0 // pred_fallthru
    _
  %v21 = vld [vmem:[%s0] sm:$0xf]
  %v22 = vld [vmem:[%s1] sm:$0xf]
  %v23 = vld [vmem:[%s1 + $0x4] sm:$0xf]
  %v24 = vld [vmem:[%s1 + $0x8] sm:$0xf]
  %v25 = vld [vmem:[%s1 + $0xc] sm:$0xf]
  %v26 = vld [vmem:[%s1 + $0x10] sm:$0xf]
  %v27 = vld [vmem:[%s1 + $0x14] sm:$0xf]
  %v28 = vld [vmem:[%s1 + $0x18] sm:$0xf]
  %v29 = vld [vmem:[%s1 + $0x1c] sm:$0xf]
  %v30 = vld [vmem:[%s1 + $0x20] sm:$0xf]
  %v31 = vld [vmem:[%s2] sm:$0xff]
  %33 = vset.pattern.permute.xlu0 0
  %34 = vperm.xlu0 %33, %v31
  %v35 = vpop.permute.xlu0 %34
  %v46 = vunpack.c.l.b16 %v22
  %v47 = vunpack.c.l.b16 %v23
  %v48 = vunpack.c.l.b16 %v24
  %v49 = vunpack.c.l.b16 %v25
  %v50 = vunpack.c.l.b16 %v26
  %v51 = vunpack.c.l.b16 %v27
  %v52 = vunpack.c.l.b16 %v28
  %v53 = vunpack.c.l.b16 %v29
  %v54 = vunpack.c.l.b16 %v30
  %v55 = vpack.c.b16 %v47, %v46
  %v56 = vpack.c.b16 %v49, %v48
  %v57 = vpack.c.b16 %v51, %v50
  %v58 = vpack.c.b16 %v53, %v52
  %v59 = vpack.c.b16 %v54, %v54
  %vm64 = vcmask 588800
  %v66 = vsel %vm64, %v21, 0
  %vm68 = vcmask 1043456
  %v70 = vsel %vm68, %v59, 0
  %72 = vmatprep.subr.bf16.mxu0 0
  %73 = vmatpush1.bf16.msra.mxu0 %v55
  %74 = vmatprep.subr.bf16.mxu0 0
  %75 = vmatpush1.bf16.msra.mxu0 %v56
  %76 = vmatprep.subr.bf16.mxu0 0
  %77 = vmatpush1.bf16.msra.mxu0 %v57
  %78 = vmatprep.subr.bf16.mxu0 0
  %79 = vmatpush1.bf16.msra.mxu0 %v58
  %80 = vmatprep.subr.bf16.mxu0 0
  %81 = vmatpush1.bf16.msra.mxu0 %v70
  %82 = vmatprep.subr.bf16.mxu0 0
  %83 = vmatpush1.bf16.msra.mxu0 0
  %84 = vmatprep.subr.bf16.mxu0 0
  %85 = vmatpush1.bf16.msra.mxu0 0
  %86 = vmatprep.subr.bf16.mxu0 0
  %87 = vmatpush1.bf16.msra.mxu0 0
  %88 = vmatprep.subr.bf16.mxu0 0
  %89 = vmatpush1.bf16.msra.mxu0 0
  %90 = vmatprep.subr.bf16.mxu0 0
  %91 = vmatpush1.bf16.msra.mxu0 0
  %92 = vmatprep.subr.bf16.mxu0 0
  %93 = vmatpush1.bf16.msra.mxu0 0
  %94 = vmatprep.subr.bf16.mxu0 0
  %95 = vmatpush1.bf16.msra.mxu0 0
  %96 = vmatprep.subr.bf16.mxu0 0
  %97 = vmatpush1.bf16.msra.mxu0 0
  %98 = vmatprep.subr.bf16.mxu0 0
  %99 = vmatpush1.bf16.msra.mxu0 0
  %100 = vmatprep.subr.bf16.mxu0 0
  %101 = vmatpush1.bf16.msra.mxu0 0
  %102 = vmatprep.subr.bf16.mxu0 0
  %103 = vmatpush1.bf16.msra.mxu0 0
  %104 = vmatprep.mubr.bf16.mxu0 0
  %105 = vmatmul.mubr.bf16.gmra.mrb[0].mxu0 %v66
  %v106 = vpop.f32.mrb[0].mxu0
  %v107 = vadd.f32 %v35, %v106
  %v108 = vpop.f32.mrb[0].mxu0
  %v109 = vpop.f32.mrb[0].mxu0
  %v110 = vpop.f32.mrb[0].mxu0
  %111 = vdwg.mxu0
  %vm112 = vcmp.ge.f32.partialorder %v107, 0.0
  %v113 = vmul.f32 %v107, 0.01
  %v114 = vsel %vm112, %v107, %v113
  %v115 = vld [vmem:[%s3] sm:$0xf]
  %v116 = vpack.c.bf16 %v114, %v114
  %v117 = vld [vmem:[%s4] sm:$0xff]
  %119 = vset.pattern.permute.xlu0 0
  %120 = vperm.xlu0 %119, %v117
  %v121 = vpop.permute.xlu0 %120
  %vm123 = vcmask 64512
  %v125 = vsel %vm123, %v115, 0
  %v128 = vsel %vm68, %v116, 0
  %130 = vmatprep.subr.bf16.mxu0 0
  %131 = vmatpush1.bf16.msra.mxu0 %v128
  %132 = vmatprep.subr.bf16.mxu0 0
  %133 = vmatpush1.bf16.msra.mxu0 0
  %134 = vmatprep.subr.bf16.mxu0 0
  %135 = vmatpush1.bf16.msra.mxu0 0
  %136 = vmatprep.subr.bf16.mxu0 0
  %137 = vmatpush1.bf16.msra.mxu0 0
  %138 = vmatprep.subr.bf16.mxu0 0
  %139 = vmatpush1.bf16.msra.mxu0 0
  %140 = vmatprep.subr.bf16.mxu0 0
  %141 = vmatpush1.bf16.msra.mxu0 0
  %142 = vmatprep.subr.bf16.mxu0 0
  %143 = vmatpush1.bf16.msra.mxu0 0
  %144 = vmatprep.subr.bf16.mxu0 0
  %145 = vmatpush1.bf16.msra.mxu0 0
  %146 = vmatprep.subr.bf16.mxu0 0
  %147 = vmatpush1.bf16.msra.mxu0 0
  %148 = vmatprep.subr.bf16.mxu0 0
  %149 = vmatpush1.bf16.msra.mxu0 0
  %150 = vmatprep.subr.bf16.mxu0 0
  %151 = vmatpush1.bf16.msra.mxu0 0
  %152 = vmatprep.subr.bf16.mxu0 0
  %153 = vmatpush1.bf16.msra.mxu0 0
  %154 = vmatprep.subr.bf16.mxu0 0
  %155 = vmatpush1.bf16.msra.mxu0 0
  %156 = vmatprep.subr.bf16.mxu0 0
  %157 = vmatpush1.bf16.msra.mxu0 0
  %158 = vmatprep.subr.bf16.mxu0 0
  %159 = vmatpush1.bf16.msra.mxu0 0
  %160 = vmatprep.subr.bf16.mxu0 0
  %161 = vmatpush1.bf16.msra.mxu0 0
  %162 = vmatprep.mubr.bf16.mxu0 0
  %163 = vmatmul.mubr.bf16.gmra.mrb[0].mxu0 %v125
  %v164 = vpop.f32.mrb[0].mxu0
  %v165 = vadd.f32 %v121, %v164
  %v166 = vpop.f32.mrb[0].mxu0
  %v167 = vpop.f32.mrb[0].mxu0
  %v168 = vpop.f32.mrb[0].mxu0
  %169 = vdwg.mxu0
  %170 = vst [vmem:[%s5] sm:$0xff] %v165
  // Predicated region
  $region22: #{crdecoder_forward.19} parent=0 // pred_check
    _
  $region23: #{crdecoder_forward.19} parent=0 // pred_check_branch
    %172 = sbr.rel (0) target = $region25
  $region24: #{crdecoder_forward.19} parent=0 // pred_region
    _
  $region25: #{crdecoder_forward.19} parent=0 // pred_fallthru
    _
  // Predicated region
  $region26: #{crdecoder_forward.19} parent=0 // pred_check
    _
  $region27: #{crdecoder_forward.19} parent=0 // pred_check_branch
    %174 = sbr.rel (0) target = $region29
  $region28: #{crdecoder_forward.19} parent=0 // pred_region
    _
  $region29: #{crdecoder_forward.19} parent=0 // pred_fallthru
    _

</llo_original>
